<compile_context>
chip_gen: v7x
topology: tpu7x:2x2x1
jax: 0.10.0
libtpu: 0.0.40
codegen_flags: <defaults>
</compile_context>

<pallas_src>
import jax
import jax.numpy as jnp
import numpy as np
from jax import lax
from jax.experimental import pallas as pl
from jax.experimental.pallas import tpu as pltpu


# ------------------------------ fused kernel -------------------------------

def _dot2d(lhs3, rhs2):
    """(TB, R, K) x (K, N) -> (TB*R, N) on the MXU; bf16 operands, f32 accum."""
    tb, r, k = lhs3.shape
    lhs2 = lhs3.reshape(tb * r, k).astype(rhs2.dtype)
    return jnp.dot(lhs2, rhs2, preferred_element_type=jnp.float32)


def _lenet4_kernel(x_ref, band1_ref, band2_ref, b1_ref, b2_ref,
                   w1eff_ref, fc1b_ref, fc2w_ref, fc2b_ref, o_ref):
    f32 = jnp.float32
    x = x_ref[...].astype(f32)          # (TB, 4, 8, 32): row-phase-split padded input
    tb = x.shape[0]
    b1v = b1_ref[...]                   # (1, 112) f32
    b2v = b2_ref[...]                   # (1, 160) f32

    # ---- conv1 + ReLU ------------------------------------------------------
    # Output rows are grouped by (row mod 4) so the H half of pool1/pool2 stays
    # a plain add of row planes.  Lane layout of each plane: lane = w*4 + c_out
    # with w = 0..27 (width still unpooled).
    r1 = []
    for phi in range(4):                # conv1 output rows phi, phi+4, ..., phi+24
        acc = jnp.zeros((tb * 7, 112), f32)
        for ki in range(5):
            ph, off = (phi + ki) % 4, (phi + ki) // 4
            acc = acc + _dot2d(x[:, ph, off:off + 7, :], band1_ref[ki])
        r1.append(jnp.maximum(acc + b1v, 0.0).reshape(tb, 7, 112))
    # H half of pool1 (W half is folded into band2), split by pooled-row parity.
    h1e = r1[0] + r1[1]                 # (TB, 7, 112) pooled rows 0, 2, ..., 12
    h1o = r1[2] + r1[3]                 # (TB, 7, 112) pooled rows 1, 3, ..., 13

    # ---- conv2 + ReLU ------------------------------------------------------
    # band2 already contains pool1's W averaging (0.25 * w2 on both members of
    # each W pair).  Output lane layout: lane = w*16 + c_out, w = 0..9 unpooled.
    g2 = jnp.zeros((tb * 5, 160), f32)
    for delta in range(2):              # conv2 output-row parity (for pool2's H half)
        acc = jnp.zeros((tb * 5, 160), f32)
        for ki in range(5):
            par, off = (delta + ki) % 2, (delta + ki) // 2
            src = h1e if par == 0 else h1o
            acc = acc + _dot2d(src[:, off:off + 5, :], band2_ref[ki])
        g2 = g2 + jnp.maximum(acc + b2v, 0.0)          # H half of pool2
    g2 = g2.reshape(tb, 5, 160)

    # ---- fc1 + ReLU --------------------------------------------------------
    # pool2's W half, the NCHW flatten and fc1's weight are folded into w1eff:
    # one (TB,160) x (160,120) matmul per pooled row.
    hacc = jnp.zeros((tb, 120), f32)
    for p in range(5):
        hacc = hacc + jnp.dot(g2[:, p, :].astype(w1eff_ref.dtype), w1eff_ref[p],
                              preferred_element_type=f32)
    h = jnp.maximum(hacc + fc1b_ref[...], 0.0)

    # ---- fc2 (the tiny (TB, 27) store is the only HBM write) ---------------
    out = jnp.dot(h.astype(fc2w_ref.dtype), fc2w_ref[...],
                  preferred_element_type=f32) + fc2b_ref[...]
    o_ref[...] = out.astype(o_ref.dtype)


# ------------------------- one-time weight folding --------------------------

def prepare_params(params):
    """Fold im2col, both 2x2 average pools and the NCHW flatten into dense
    band matrices, once, outside the kernel."""
    w1 = params["conv1_w"]              # (4, 1, 5, 5)
    w2 = params["conv2_w"]              # (16, 4, 5, 5)
    fc1_w = params["fc1_w"]             # (120, 400)
    bf16 = jnp.bfloat16

    # conv1 band: band1[ki, v, s*4 + co] = w1[co, 0, ki, v - s]  (0 <= v-s <= 4)
    v = np.arange(32)[:, None]
    s = np.arange(28)[None, :]
    kj = v - s
    valid = ((kj >= 0) & (kj <= 4)).astype(np.float32)          # (32, 28)
    g = w1[:, 0][:, :, np.clip(kj, 0, 4)] * valid[None, None]   # (4,5,32,28) [co,ki,v,s]
    band1 = jnp.transpose(g, (1, 2, 3, 0)).reshape(5, 32, 112)

    # conv2 band with pool1's W half folded in:
    #   band2[ki, w*4+ci, j*16+co] = 0.25 * w2[co, ci, ki, w//2 - j]
    w_ = np.arange(28)[:, None]
    j = np.arange(10)[None, :]
    kj2 = w_ // 2 - j
    valid2 = ((kj2 >= 0) & (kj2 <= 4)).astype(np.float32)       # (28, 10)
    g2 = w2[:, :, :, np.clip(kj2, 0, 4)] * valid2[None, None, None]   # (16,4,5,28,10)
    band2 = 0.25 * jnp.transpose(g2, (2, 3, 1, 4, 0)).reshape(5, 112, 160)

    # fc1 with pool2's W half + NCHW flatten folded in:
    #   w1eff[p, j*16+co, o] = 0.25 * fc1_w[o, co*25 + p*5 + j//2]
    fc1_wr = fc1_w.reshape(120, 16, 5, 5)                        # [o, co, p, q]
    g3 = fc1_wr[:, :, :, np.arange(10) // 2]                     # (120, 16, 5, 10)
    w1eff = 0.25 * jnp.transpose(g3, (2, 3, 1, 0)).reshape(5, 160, 120)

    return {
        "band1": band1.astype(bf16),
        "band2": band2.astype(bf16),
        "w1eff": w1eff.astype(bf16),
        "b1v": jnp.tile(params["conv1_b"], 28).reshape(1, 112).astype(jnp.float32),
        "b2v": jnp.tile(params["conv2_b"], 10).reshape(1, 160).astype(jnp.float32),
        "fc1_b": params["fc1_b"].reshape(1, 120).astype(jnp.float32),
        "fc2_w": params["fc2_w"].T.astype(bf16),                 # (120, 27)
        "fc2_b": params["fc2_b"].reshape(1, 27).astype(jnp.float32),
    }


# --------------------------------- wrapper ----------------------------------

def lenet4_forward(x, kparams, *, batch_tile=8):
    """x: (B, 1, 28, 28) float32, NCHW like the PyTorch module."""
    B = x.shape[0]
    xpad = jnp.pad(x.reshape(B, 28, 28), ((0, 0), (2, 2), (2, 2)))    # (B, 32, 32)
    # Split rows by (row mod 4): xph[b, psi, t, :] = xpad[b, 4*t + psi, :]
    xph = jnp.transpose(xpad.reshape(B, 8, 4, 32), (0, 2, 1, 3))      # (B, 4, 8, 32)

    tb = max(1, min(batch_tile, B))
    bp = ((B + tb - 1) // tb) * tb
    if bp != B:
        xph = jnp.pad(xph, ((0, bp - B), (0, 0), (0, 0), (0, 0)))

    out = pl.pallas_call(
        _lenet4_kernel,
        out_shape=jax.ShapeDtypeStruct((bp, 27), jnp.float32),
        grid=(bp // tb,),
        in_specs=[
            pl.BlockSpec((tb, 4, 8, 32), lambda b: (b, 0, 0, 0)),     # input tile
            pl.BlockSpec((5, 32, 112), lambda b: (0, 0, 0)),          # band1
            pl.BlockSpec((5, 112, 160), lambda b: (0, 0, 0)),         # band2
            pl.BlockSpec((1, 112), lambda b: (0, 0)),                 # conv1 bias
            pl.BlockSpec((1, 160), lambda b: (0, 0)),                 # conv2 bias
            pl.BlockSpec((5, 160, 120), lambda b: (0, 0, 0)),         # fc1 eff. weight
            pl.BlockSpec((1, 120), lambda b: (0, 0)),                 # fc1 bias
            pl.BlockSpec((120, 27), lambda b: (0, 0)),                # fc2 weight
            pl.BlockSpec((1, 27), lambda b: (0, 0)),                  # fc2 bias
        ],
        out_specs=pl.BlockSpec((tb, 27), lambda b: (b, 0)),
        compiler_params=pltpu.CompilerParams(
            dimension_semantics=("parallel",)),
    )(xph.astype(jnp.float32), kparams["band1"], kparams["band2"],
      kparams["b1v"], kparams["b2v"], kparams["w1eff"],
      kparams["fc1_b"], kparams["fc2_w"], kparams["fc2_b"])
    return out[:B]


# ---------------------------- pure-JAX reference ----------------------------

def lenet4_reference(x, params):
    hp = lax.Precision.HIGHEST
    y = lax.conv_general_dilated(x, params["conv1_w"], (1, 1), ((2, 2), (2, 2)),
                                 dimension_numbers=("NCHW", "OIHW", "NCHW"),
                                 precision=hp)
    y = jax.nn.relu(y + params["conv1_b"][None, :, None, None])
    y = lax.reduce_window(y, 0.0, lax.add, (1, 1, 2, 2), (1, 1, 2, 2), "VALID") * 0.25
    y = lax.conv_general_dilated(y, params["conv2_w"], (1, 1), "VALID",
                                 dimension_numbers=("NCHW", "OIHW", "NCHW"),
                                 precision=hp)
    y = jax.nn.relu(y + params["conv2_b"][None, :, None, None])
    y = lax.reduce_window(y, 0.0, lax.add, (1, 1, 2, 2), (1, 1, 2, 2), "VALID") * 0.25
    y = y.reshape(x.shape[0], 400)
    y = jax.nn.relu(jnp.dot(y, params["fc1_w"].T, precision=hp) + params["fc1_b"])
    return jnp.dot(y, params["fc2_w"].T, precision=hp) + params["fc2_b"]


def init_params(key):
    ks = jax.random.split(key, 8)
    s = 0.1
    n = jax.random.normal
    return {
        "conv1_w": s * n(ks[0], (4, 1, 5, 5), jnp.float32),
        "conv1_b": s * n(ks[1], (4,), jnp.float32),
        "conv2_w": s * n(ks[2], (16, 4, 5, 5), jnp.float32),
        "conv2_b": s * n(ks[3], (16,), jnp.float32),
        "fc1_w": s * n(ks[4], (120, 400), jnp.float32),
        "fc1_b": s * n(ks[5], (120,), jnp.float32),
        "fc2_w": s * n(ks[6], (27, 120), jnp.float32),
        "fc2_b": s * n(ks[7], (27,), jnp.float32),
    }


if __name__ == "__main__":
    key = jax.random.PRNGKey(0)
    kx, kp = jax.random.split(key)
    # fc1 requires 16*5*5 flat features => 1x28x28 inputs; batch = 2
    x = jax.random.normal(kx, (2, 1, 28, 28), jnp.float32)
    params = init_params(kp)
    kparams = prepare_params(params)

    out = jax.jit(lenet4_forward)(x, kparams)
    out = jax.block_until_ready(out)
    assert out.shape == (2, 27), out.shape

    ref = lenet4_reference(x, params)
    err = float(jnp.max(jnp.abs(out - ref)))
    assert err < 5e-2, f"max abs error vs reference too large: {err}"
    print("KERNEL_OK")
</pallas_src>

<mosaic_0001>
module attributes {stable_mosaic.version = 11 : i64} {
  func.func @_lenet4_kernel(%arg0: i32, %arg1: memref<2x4x8x32xf32, #tpu.memory_space<vmem>>, %arg2: memref<5x32x112xbf16, #tpu.memory_space<vmem>>, %arg3: memref<5x112x160xbf16, #tpu.memory_space<vmem>>, %arg4: memref<1x112xf32, #tpu.memory_space<vmem>>, %arg5: memref<1x160xf32, #tpu.memory_space<vmem>>, %arg6: memref<5x160x120xbf16, #tpu.memory_space<vmem>>, %arg7: memref<1x120xf32, #tpu.memory_space<vmem>>, %arg8: memref<120x27xbf16, #tpu.memory_space<vmem>>, %arg9: memref<1x27xf32, #tpu.memory_space<vmem>>, %arg10: memref<2x27xf32, #tpu.memory_space<vmem>>) attributes {dimension_semantics = [#tpu.dimension_semantics<parallel>], iteration_bounds = array<i64: 1>, scalar_prefetch = 0 : i64, scratch_operands = 0 : i64, tpu.core_type = #tpu.core_type<tc>, window_params = [{transform_indices = @transform_0, window_bounds = array<i64: 2, 4, 8, 32>}, {pipeline_mode = #tpu.pipeline_mode<synchronous>, transform_indices = @transform_1, window_bounds = array<i64: 5, 32, 112>}, {pipeline_mode = #tpu.pipeline_mode<synchronous>, transform_indices = @transform_2, window_bounds = array<i64: 5, 112, 160>}, {pipeline_mode = #tpu.pipeline_mode<synchronous>, transform_indices = @transform_3, window_bounds = array<i64: 1, 112>}, {pipeline_mode = #tpu.pipeline_mode<synchronous>, transform_indices = @transform_4, window_bounds = array<i64: 1, 160>}, {pipeline_mode = #tpu.pipeline_mode<synchronous>, transform_indices = @transform_5, window_bounds = array<i64: 5, 160, 120>}, {pipeline_mode = #tpu.pipeline_mode<synchronous>, transform_indices = @transform_6, window_bounds = array<i64: 1, 120>}, {pipeline_mode = #tpu.pipeline_mode<synchronous>, transform_indices = @transform_7, window_bounds = array<i64: 120, 27>}, {pipeline_mode = #tpu.pipeline_mode<synchronous>, transform_indices = @transform_8, window_bounds = array<i64: 1, 27>}, {transform_indices = @transform_9, window_bounds = array<i64: 2, 27>}]} {
    %c0 = arith.constant 0 : index
    %c0_0 = arith.constant 0 : index
    %c0_1 = arith.constant 0 : index
    %c0_2 = arith.constant 0 : index
    %0 = vector.load %arg1[%c0, %c0_0, %c0_1, %c0_2] : memref<2x4x8x32xf32, #tpu.memory_space<vmem>>, vector<2x4x8x32xf32>
    %c0_3 = arith.constant 0 : index
    %c0_4 = arith.constant 0 : index
    %1 = vector.load %arg4[%c0_3, %c0_4] : memref<1x112xf32, #tpu.memory_space<vmem>>, vector<1x112xf32>
    %c0_5 = arith.constant 0 : index
    %c0_6 = arith.constant 0 : index
    %2 = vector.load %arg5[%c0_5, %c0_6] : memref<1x160xf32, #tpu.memory_space<vmem>>, vector<1x160xf32>
    %cst = arith.constant 0.000000e+00 : f32
    %3 = vector.broadcast %cst : f32 to vector<14x112xf32>
    %4 = vector.extract_strided_slice %0 {offsets = [0, 0, 0, 0], sizes = [2, 1, 7, 32], strides = [1, 1, 1, 1]} : vector<2x4x8x32xf32> to vector<2x1x7x32xf32>
    %5 = vector.shape_cast %4 : vector<2x1x7x32xf32> to vector<2x7x32xf32>
    %c0_7 = arith.constant 0 : index
    %c0_8 = arith.constant 0 : index
    %c0_9 = arith.constant 0 : index
    %6 = vector.load %arg2[%c0_7, %c0_8, %c0_9] : memref<5x32x112xbf16, #tpu.memory_space<vmem>>, vector<1x32x112xbf16>
    %7 = vector.shape_cast %6 : vector<1x32x112xbf16> to vector<32x112xbf16>
    %8 = vector.shape_cast %5 : vector<2x7x32xf32> to vector<14x32xf32>
    %9 = arith.truncf %8 : vector<14x32xf32> to vector<14x32xbf16>
    %cst_10 = arith.constant dense<0.000000e+00> : vector<14x112xf32>
    %10 = tpu.matmul %9, %7, %cst_10 {dimension_numbers = #tpu.dot_dimension_numbers<[1], [0], [0], [1], [0, 0, 1, 1], [], []>} : vector<14x32xbf16>, vector<32x112xbf16>, vector<14x112xf32> -> vector<14x112xf32>
    %11 = arith.addf %3, %10 : vector<14x112xf32>
    %12 = vector.extract_strided_slice %0 {offsets = [0, 1, 0, 0], sizes = [2, 1, 7, 32], strides = [1, 1, 1, 1]} : vector<2x4x8x32xf32> to vector<2x1x7x32xf32>
    %13 = vector.shape_cast %12 : vector<2x1x7x32xf32> to vector<2x7x32xf32>
    %c1 = arith.constant 1 : index
    %c0_11 = arith.constant 0 : index
    %c0_12 = arith.constant 0 : index
    %14 = vector.load %arg2[%c1, %c0_11, %c0_12] : memref<5x32x112xbf16, #tpu.memory_space<vmem>>, vector<1x32x112xbf16>
    %15 = vector.shape_cast %14 : vector<1x32x112xbf16> to vector<32x112xbf16>
    %16 = vector.shape_cast %13 : vector<2x7x32xf32> to vector<14x32xf32>
    %17 = arith.truncf %16 : vector<14x32xf32> to vector<14x32xbf16>
    %cst_13 = arith.constant dense<0.000000e+00> : vector<14x112xf32>
    %18 = tpu.matmul %17, %15, %cst_13 {dimension_numbers = #tpu.dot_dimension_numbers<[1], [0], [0], [1], [0, 0, 1, 1], [], []>} : vector<14x32xbf16>, vector<32x112xbf16>, vector<14x112xf32> -> vector<14x112xf32>
    %19 = arith.addf %11, %18 : vector<14x112xf32>
    %20 = vector.extract_strided_slice %0 {offsets = [0, 2, 0, 0], sizes = [2, 1, 7, 32], strides = [1, 1, 1, 1]} : vector<2x4x8x32xf32> to vector<2x1x7x32xf32>
    %21 = vector.shape_cast %20 : vector<2x1x7x32xf32> to vector<2x7x32xf32>
    %c2 = arith.constant 2 : index
    %c0_14 = arith.constant 0 : index
    %c0_15 = arith.constant 0 : index
    %22 = vector.load %arg2[%c2, %c0_14, %c0_15] : memref<5x32x112xbf16, #tpu.memory_space<vmem>>, vector<1x32x112xbf16>
    %23 = vector.shape_cast %22 : vector<1x32x112xbf16> to vector<32x112xbf16>
    %24 = vector.shape_cast %21 : vector<2x7x32xf32> to vector<14x32xf32>
    %25 = arith.truncf %24 : vector<14x32xf32> to vector<14x32xbf16>
    %cst_16 = arith.constant dense<0.000000e+00> : vector<14x112xf32>
    %26 = tpu.matmul %25, %23, %cst_16 {dimension_numbers = #tpu.dot_dimension_numbers<[1], [0], [0], [1], [0, 0, 1, 1], [], []>} : vector<14x32xbf16>, vector<32x112xbf16>, vector<14x112xf32> -> vector<14x112xf32>
    %27 = arith.addf %19, %26 : vector<14x112xf32>
    %28 = vector.extract_strided_slice %0 {offsets = [0, 3, 0, 0], sizes = [2, 1, 7, 32], strides = [1, 1, 1, 1]} : vector<2x4x8x32xf32> to vector<2x1x7x32xf32>
    %29 = vector.shape_cast %28 : vector<2x1x7x32xf32> to vector<2x7x32xf32>
    %c3 = arith.constant 3 : index
    %c0_17 = arith.constant 0 : index
    %c0_18 = arith.constant 0 : index
    %30 = vector.load %arg2[%c3, %c0_17, %c0_18] : memref<5x32x112xbf16, #tpu.memory_space<vmem>>, vector<1x32x112xbf16>
    %31 = vector.shape_cast %30 : vector<1x32x112xbf16> to vector<32x112xbf16>
    %32 = vector.shape_cast %29 : vector<2x7x32xf32> to vector<14x32xf32>
    %33 = arith.truncf %32 : vector<14x32xf32> to vector<14x32xbf16>
    %cst_19 = arith.constant dense<0.000000e+00> : vector<14x112xf32>
    %34 = tpu.matmul %33, %31, %cst_19 {dimension_numbers = #tpu.dot_dimension_numbers<[1], [0], [0], [1], [0, 0, 1, 1], [], []>} : vector<14x32xbf16>, vector<32x112xbf16>, vector<14x112xf32> -> vector<14x112xf32>
    %35 = arith.addf %27, %34 : vector<14x112xf32>
    %36 = vector.extract_strided_slice %0 {offsets = [0, 0, 1, 0], sizes = [2, 1, 7, 32], strides = [1, 1, 1, 1]} : vector<2x4x8x32xf32> to vector<2x1x7x32xf32>
    %37 = vector.shape_cast %36 : vector<2x1x7x32xf32> to vector<2x7x32xf32>
    %c4 = arith.constant 4 : index
    %c0_20 = arith.constant 0 : index
    %c0_21 = arith.constant 0 : index
    %38 = vector.load %arg2[%c4, %c0_20, %c0_21] : memref<5x32x112xbf16, #tpu.memory_space<vmem>>, vector<1x32x112xbf16>
    %39 = vector.shape_cast %38 : vector<1x32x112xbf16> to vector<32x112xbf16>
    %40 = vector.shape_cast %37 : vector<2x7x32xf32> to vector<14x32xf32>
    %41 = arith.truncf %40 : vector<14x32xf32> to vector<14x32xbf16>
    %cst_22 = arith.constant dense<0.000000e+00> : vector<14x112xf32>
    %42 = tpu.matmul %41, %39, %cst_22 {dimension_numbers = #tpu.dot_dimension_numbers<[1], [0], [0], [1], [0, 0, 1, 1], [], []>} : vector<14x32xbf16>, vector<32x112xbf16>, vector<14x112xf32> -> vector<14x112xf32>
    %43 = arith.addf %35, %42 : vector<14x112xf32>
    %44 = vector.broadcast %1 : vector<1x112xf32> to vector<14x112xf32>
    %45 = arith.addf %43, %44 : vector<14x112xf32>
    %cst_23 = arith.constant 0.000000e+00 : f32
    %46 = vector.broadcast %cst_23 : f32 to vector<14x112xf32>
    %47 = arith.maximumf %45, %46 : vector<14x112xf32>
    %48 = vector.shape_cast %47 : vector<14x112xf32> to vector<2x7x112xf32>
    %cst_24 = arith.constant 0.000000e+00 : f32
    %49 = vector.broadcast %cst_24 : f32 to vector<14x112xf32>
    %50 = vector.extract_strided_slice %0 {offsets = [0, 1, 0, 0], sizes = [2, 1, 7, 32], strides = [1, 1, 1, 1]} : vector<2x4x8x32xf32> to vector<2x1x7x32xf32>
    %51 = vector.shape_cast %50 : vector<2x1x7x32xf32> to vector<2x7x32xf32>
    %c0_25 = arith.constant 0 : index
    %c0_26 = arith.constant 0 : index
    %c0_27 = arith.constant 0 : index
    %52 = vector.load %arg2[%c0_25, %c0_26, %c0_27] : memref<5x32x112xbf16, #tpu.memory_space<vmem>>, vector<1x32x112xbf16>
    %53 = vector.shape_cast %52 : vector<1x32x112xbf16> to vector<32x112xbf16>
    %54 = vector.shape_cast %51 : vector<2x7x32xf32> to vector<14x32xf32>
    %55 = arith.truncf %54 : vector<14x32xf32> to vector<14x32xbf16>
    %cst_28 = arith.constant dense<0.000000e+00> : vector<14x112xf32>
    %56 = tpu.matmul %55, %53, %cst_28 {dimension_numbers = #tpu.dot_dimension_numbers<[1], [0], [0], [1], [0, 0, 1, 1], [], []>} : vector<14x32xbf16>, vector<32x112xbf16>, vector<14x112xf32> -> vector<14x112xf32>
    %57 = arith.addf %49, %56 : vector<14x112xf32>
    %58 = vector.extract_strided_slice %0 {offsets = [0, 2, 0, 0], sizes = [2, 1, 7, 32], strides = [1, 1, 1, 1]} : vector<2x4x8x32xf32> to vector<2x1x7x32xf32>
    %59 = vector.shape_cast %58 : vector<2x1x7x32xf32> to vector<2x7x32xf32>
    %c1_29 = arith.constant 1 : index
    %c0_30 = arith.constant 0 : index
    %c0_31 = arith.constant 0 : index
    %60 = vector.load %arg2[%c1_29, %c0_30, %c0_31] : memref<5x32x112xbf16, #tpu.memory_space<vmem>>, vector<1x32x112xbf16>
    %61 = vector.shape_cast %60 : vector<1x32x112xbf16> to vector<32x112xbf16>
    %62 = vector.shape_cast %59 : vector<2x7x32xf32> to vector<14x32xf32>
    %63 = arith.truncf %62 : vector<14x32xf32> to vector<14x32xbf16>
    %cst_32 = arith.constant dense<0.000000e+00> : vector<14x112xf32>
    %64 = tpu.matmul %63, %61, %cst_32 {dimension_numbers = #tpu.dot_dimension_numbers<[1], [0], [0], [1], [0, 0, 1, 1], [], []>} : vector<14x32xbf16>, vector<32x112xbf16>, vector<14x112xf32> -> vector<14x112xf32>
    %65 = arith.addf %57, %64 : vector<14x112xf32>
    %66 = vector.extract_strided_slice %0 {offsets = [0, 3, 0, 0], sizes = [2, 1, 7, 32], strides = [1, 1, 1, 1]} : vector<2x4x8x32xf32> to vector<2x1x7x32xf32>
    %67 = vector.shape_cast %66 : vector<2x1x7x32xf32> to vector<2x7x32xf32>
    %c2_33 = arith.constant 2 : index
    %c0_34 = arith.constant 0 : index
    %c0_35 = arith.constant 0 : index
    %68 = vector.load %arg2[%c2_33, %c0_34, %c0_35] : memref<5x32x112xbf16, #tpu.memory_space<vmem>>, vector<1x32x112xbf16>
    %69 = vector.shape_cast %68 : vector<1x32x112xbf16> to vector<32x112xbf16>
    %70 = vector.shape_cast %67 : vector<2x7x32xf32> to vector<14x32xf32>
    %71 = arith.truncf %70 : vector<14x32xf32> to vector<14x32xbf16>
    %cst_36 = arith.constant dense<0.000000e+00> : vector<14x112xf32>
    %72 = tpu.matmul %71, %69, %cst_36 {dimension_numbers = #tpu.dot_dimension_numbers<[1], [0], [0], [1], [0, 0, 1, 1], [], []>} : vector<14x32xbf16>, vector<32x112xbf16>, vector<14x112xf32> -> vector<14x112xf32>
    %73 = arith.addf %65, %72 : vector<14x112xf32>
    %74 = vector.extract_strided_slice %0 {offsets = [0, 0, 1, 0], sizes = [2, 1, 7, 32], strides = [1, 1, 1, 1]} : vector<2x4x8x32xf32> to vector<2x1x7x32xf32>
    %75 = vector.shape_cast %74 : vector<2x1x7x32xf32> to vector<2x7x32xf32>
    %c3_37 = arith.constant 3 : index
    %c0_38 = arith.constant 0 : index
    %c0_39 = arith.constant 0 : index
    %76 = vector.load %arg2[%c3_37, %c0_38, %c0_39] : memref<5x32x112xbf16, #tpu.memory_space<vmem>>, vector<1x32x112xbf16>
    %77 = vector.shape_cast %76 : vector<1x32x112xbf16> to vector<32x112xbf16>
    %78 = vector.shape_cast %75 : vector<2x7x32xf32> to vector<14x32xf32>
    %79 = arith.truncf %78 : vector<14x32xf32> to vector<14x32xbf16>
    %cst_40 = arith.constant dense<0.000000e+00> : vector<14x112xf32>
    %80 = tpu.matmul %79, %77, %cst_40 {dimension_numbers = #tpu.dot_dimension_numbers<[1], [0], [0], [1], [0, 0, 1, 1], [], []>} : vector<14x32xbf16>, vector<32x112xbf16>, vector<14x112xf32> -> vector<14x112xf32>
    %81 = arith.addf %73, %80 : vector<14x112xf32>
    %82 = vector.extract_strided_slice %0 {offsets = [0, 1, 1, 0], sizes = [2, 1, 7, 32], strides = [1, 1, 1, 1]} : vector<2x4x8x32xf32> to vector<2x1x7x32xf32>
    %83 = vector.shape_cast %82 : vector<2x1x7x32xf32> to vector<2x7x32xf32>
    %c4_41 = arith.constant 4 : index
    %c0_42 = arith.constant 0 : index
    %c0_43 = arith.constant 0 : index
    %84 = vector.load %arg2[%c4_41, %c0_42, %c0_43] : memref<5x32x112xbf16, #tpu.memory_space<vmem>>, vector<1x32x112xbf16>
    %85 = vector.shape_cast %84 : vector<1x32x112xbf16> to vector<32x112xbf16>
    %86 = vector.shape_cast %83 : vector<2x7x32xf32> to vector<14x32xf32>
    %87 = arith.truncf %86 : vector<14x32xf32> to vector<14x32xbf16>
    %cst_44 = arith.constant dense<0.000000e+00> : vector<14x112xf32>
    %88 = tpu.matmul %87, %85, %cst_44 {dimension_numbers = #tpu.dot_dimension_numbers<[1], [0], [0], [1], [0, 0, 1, 1], [], []>} : vector<14x32xbf16>, vector<32x112xbf16>, vector<14x112xf32> -> vector<14x112xf32>
    %89 = arith.addf %81, %88 : vector<14x112xf32>
    %90 = vector.broadcast %1 : vector<1x112xf32> to vector<14x112xf32>
    %91 = arith.addf %89, %90 : vector<14x112xf32>
    %cst_45 = arith.constant 0.000000e+00 : f32
    %92 = vector.broadcast %cst_45 : f32 to vector<14x112xf32>
    %93 = arith.maximumf %91, %92 : vector<14x112xf32>
    %94 = vector.shape_cast %93 : vector<14x112xf32> to vector<2x7x112xf32>
    %cst_46 = arith.constant 0.000000e+00 : f32
    %95 = vector.broadcast %cst_46 : f32 to vector<14x112xf32>
    %96 = vector.extract_strided_slice %0 {offsets = [0, 2, 0, 0], sizes = [2, 1, 7, 32], strides = [1, 1, 1, 1]} : vector<2x4x8x32xf32> to vector<2x1x7x32xf32>
    %97 = vector.shape_cast %96 : vector<2x1x7x32xf32> to vector<2x7x32xf32>
    %c0_47 = arith.constant 0 : index
    %c0_48 = arith.constant 0 : index
    %c0_49 = arith.constant 0 : index
    %98 = vector.load %arg2[%c0_47, %c0_48, %c0_49] : memref<5x32x112xbf16, #tpu.memory_space<vmem>>, vector<1x32x112xbf16>
    %99 = vector.shape_cast %98 : vector<1x32x112xbf16> to vector<32x112xbf16>
    %100 = vector.shape_cast %97 : vector<2x7x32xf32> to vector<14x32xf32>
    %101 = arith.truncf %100 : vector<14x32xf32> to vector<14x32xbf16>
    %cst_50 = arith.constant dense<0.000000e+00> : vector<14x112xf32>
    %102 = tpu.matmul %101, %99, %cst_50 {dimension_numbers = #tpu.dot_dimension_numbers<[1], [0], [0], [1], [0, 0, 1, 1], [], []>} : vector<14x32xbf16>, vector<32x112xbf16>, vector<14x112xf32> -> vector<14x112xf32>
    %103 = arith.addf %95, %102 : vector<14x112xf32>
    %104 = vector.extract_strided_slice %0 {offsets = [0, 3, 0, 0], sizes = [2, 1, 7, 32], strides = [1, 1, 1, 1]} : vector<2x4x8x32xf32> to vector<2x1x7x32xf32>
    %105 = vector.shape_cast %104 : vector<2x1x7x32xf32> to vector<2x7x32xf32>
    %c1_51 = arith.constant 1 : index
    %c0_52 = arith.constant 0 : index
    %c0_53 = arith.constant 0 : index
    %106 = vector.load %arg2[%c1_51, %c0_52, %c0_53] : memref<5x32x112xbf16, #tpu.memory_space<vmem>>, vector<1x32x112xbf16>
    %107 = vector.shape_cast %106 : vector<1x32x112xbf16> to vector<32x112xbf16>
    %108 = vector.shape_cast %105 : vector<2x7x32xf32> to vector<14x32xf32>
    %109 = arith.truncf %108 : vector<14x32xf32> to vector<14x32xbf16>
    %cst_54 = arith.constant dense<0.000000e+00> : vector<14x112xf32>
    %110 = tpu.matmul %109, %107, %cst_54 {dimension_numbers = #tpu.dot_dimension_numbers<[1], [0], [0], [1], [0, 0, 1, 1], [], []>} : vector<14x32xbf16>, vector<32x112xbf16>, vector<14x112xf32> -> vector<14x112xf32>
    %111 = arith.addf %103, %110 : vector<14x112xf32>
    %112 = vector.extract_strided_slice %0 {offsets = [0, 0, 1, 0], sizes = [2, 1, 7, 32], strides = [1, 1, 1, 1]} : vector<2x4x8x32xf32> to vector<2x1x7x32xf32>
    %113 = vector.shape_cast %112 : vector<2x1x7x32xf32> to vector<2x7x32xf32>
    %c2_55 = arith.constant 2 : index
    %c0_56 = arith.constant 0 : index
    %c0_57 = arith.constant 0 : index
    %114 = vector.load %arg2[%c2_55, %c0_56, %c0_57] : memref<5x32x112xbf16, #tpu.memory_space<vmem>>, vector<1x32x112xbf16>
    %115 = vector.shape_cast %114 : vector<1x32x112xbf16> to vector<32x112xbf16>
    %116 = vector.shape_cast %113 : vector<2x7x32xf32> to vector<14x32xf32>
    %117 = arith.truncf %116 : vector<14x32xf32> to vector<14x32xbf16>
    %cst_58 = arith.constant dense<0.000000e+00> : vector<14x112xf32>
    %118 = tpu.matmul %117, %115, %cst_58 {dimension_numbers = #tpu.dot_dimension_numbers<[1], [0], [0], [1], [0, 0, 1, 1], [], []>} : vector<14x32xbf16>, vector<32x112xbf16>, vector<14x112xf32> -> vector<14x112xf32>
    %119 = arith.addf %111, %118 : vector<14x112xf32>
    %120 = vector.extract_strided_slice %0 {offsets = [0, 1, 1, 0], sizes = [2, 1, 7, 32], strides = [1, 1, 1, 1]} : vector<2x4x8x32xf32> to vector<2x1x7x32xf32>
    %121 = vector.shape_cast %120 : vector<2x1x7x32xf32> to vector<2x7x32xf32>
    %c3_59 = arith.constant 3 : index
    %c0_60 = arith.constant 0 : index
    %c0_61 = arith.constant 0 : index
    %122 = vector.load %arg2[%c3_59, %c0_60, %c0_61] : memref<5x32x112xbf16, #tpu.memory_space<vmem>>, vector<1x32x112xbf16>
    %123 = vector.shape_cast %122 : vector<1x32x112xbf16> to vector<32x112xbf16>
    %124 = vector.shape_cast %121 : vector<2x7x32xf32> to vector<14x32xf32>
    %125 = arith.truncf %124 : vector<14x32xf32> to vector<14x32xbf16>
    %cst_62 = arith.constant dense<0.000000e+00> : vector<14x112xf32>
    %126 = tpu.matmul %125, %123, %cst_62 {dimension_numbers = #tpu.dot_dimension_numbers<[1], [0], [0], [1], [0, 0, 1, 1], [], []>} : vector<14x32xbf16>, vector<32x112xbf16>, vector<14x112xf32> -> vector<14x112xf32>
    %127 = arith.addf %119, %126 : vector<14x112xf32>
    %128 = vector.extract_strided_slice %0 {offsets = [0, 2, 1, 0], sizes = [2, 1, 7, 32], strides = [1, 1, 1, 1]} : vector<2x4x8x32xf32> to vector<2x1x7x32xf32>
    %129 = vector.shape_cast %128 : vector<2x1x7x32xf32> to vector<2x7x32xf32>
    %c4_63 = arith.constant 4 : index
    %c0_64 = arith.constant 0 : index
    %c0_65 = arith.constant 0 : index
    %130 = vector.load %arg2[%c4_63, %c0_64, %c0_65] : memref<5x32x112xbf16, #tpu.memory_space<vmem>>, vector<1x32x112xbf16>
    %131 = vector.shape_cast %130 : vector<1x32x112xbf16> to vector<32x112xbf16>
    %132 = vector.shape_cast %129 : vector<2x7x32xf32> to vector<14x32xf32>
    %133 = arith.truncf %132 : vector<14x32xf32> to vector<14x32xbf16>
    %cst_66 = arith.constant dense<0.000000e+00> : vector<14x112xf32>
    %134 = tpu.matmul %133, %131, %cst_66 {dimension_numbers = #tpu.dot_dimension_numbers<[1], [0], [0], [1], [0, 0, 1, 1], [], []>} : vector<14x32xbf16>, vector<32x112xbf16>, vector<14x112xf32> -> vector<14x112xf32>
    %135 = arith.addf %127, %134 : vector<14x112xf32>
    %136 = vector.broadcast %1 : vector<1x112xf32> to vector<14x112xf32>
    %137 = arith.addf %135, %136 : vector<14x112xf32>
    %cst_67 = arith.constant 0.000000e+00 : f32
    %138 = vector.broadcast %cst_67 : f32 to vector<14x112xf32>
    %139 = arith.maximumf %137, %138 : vector<14x112xf32>
    %140 = vector.shape_cast %139 : vector<14x112xf32> to vector<2x7x112xf32>
    %cst_68 = arith.constant 0.000000e+00 : f32
    %141 = vector.broadcast %cst_68 : f32 to vector<14x112xf32>
    %142 = vector.extract_strided_slice %0 {offsets = [0, 3, 0, 0], sizes = [2, 1, 7, 32], strides = [1, 1, 1, 1]} : vector<2x4x8x32xf32> to vector<2x1x7x32xf32>
    %143 = vector.shape_cast %142 : vector<2x1x7x32xf32> to vector<2x7x32xf32>
    %c0_69 = arith.constant 0 : index
    %c0_70 = arith.constant 0 : index
    %c0_71 = arith.constant 0 : index
    %144 = vector.load %arg2[%c0_69, %c0_70, %c0_71] : memref<5x32x112xbf16, #tpu.memory_space<vmem>>, vector<1x32x112xbf16>
    %145 = vector.shape_cast %144 : vector<1x32x112xbf16> to vector<32x112xbf16>
    %146 = vector.shape_cast %143 : vector<2x7x32xf32> to vector<14x32xf32>
    %147 = arith.truncf %146 : vector<14x32xf32> to vector<14x32xbf16>
    %cst_72 = arith.constant dense<0.000000e+00> : vector<14x112xf32>
    %148 = tpu.matmul %147, %145, %cst_72 {dimension_numbers = #tpu.dot_dimension_numbers<[1], [0], [0], [1], [0, 0, 1, 1], [], []>} : vector<14x32xbf16>, vector<32x112xbf16>, vector<14x112xf32> -> vector<14x112xf32>
    %149 = arith.addf %141, %148 : vector<14x112xf32>
    %150 = vector.extract_strided_slice %0 {offsets = [0, 0, 1, 0], sizes = [2, 1, 7, 32], strides = [1, 1, 1, 1]} : vector<2x4x8x32xf32> to vector<2x1x7x32xf32>
    %151 = vector.shape_cast %150 : vector<2x1x7x32xf32> to vector<2x7x32xf32>
    %c1_73 = arith.constant 1 : index
    %c0_74 = arith.constant 0 : index
    %c0_75 = arith.constant 0 : index
    %152 = vector.load %arg2[%c1_73, %c0_74, %c0_75] : memref<5x32x112xbf16, #tpu.memory_space<vmem>>, vector<1x32x112xbf16>
    %153 = vector.shape_cast %152 : vector<1x32x112xbf16> to vector<32x112xbf16>
    %154 = vector.shape_cast %151 : vector<2x7x32xf32> to vector<14x32xf32>
    %155 = arith.truncf %154 : vector<14x32xf32> to vector<14x32xbf16>
    %cst_76 = arith.constant dense<0.000000e+00> : vector<14x112xf32>
    %156 = tpu.matmul %155, %153, %cst_76 {dimension_numbers = #tpu.dot_dimension_numbers<[1], [0], [0], [1], [0, 0, 1, 1], [], []>} : vector<14x32xbf16>, vector<32x112xbf16>, vector<14x112xf32> -> vector<14x112xf32>
    %157 = arith.addf %149, %156 : vector<14x112xf32>
    %158 = vector.extract_strided_slice %0 {offsets = [0, 1, 1, 0], sizes = [2, 1, 7, 32], strides = [1, 1, 1, 1]} : vector<2x4x8x32xf32> to vector<2x1x7x32xf32>
    %159 = vector.shape_cast %158 : vector<2x1x7x32xf32> to vector<2x7x32xf32>
    %c2_77 = arith.constant 2 : index
    %c0_78 = arith.constant 0 : index
    %c0_79 = arith.constant 0 : index
    %160 = vector.load %arg2[%c2_77, %c0_78, %c0_79] : memref<5x32x112xbf16, #tpu.memory_space<vmem>>, vector<1x32x112xbf16>
    %161 = vector.shape_cast %160 : vector<1x32x112xbf16> to vector<32x112xbf16>
    %162 = vector.shape_cast %159 : vector<2x7x32xf32> to vector<14x32xf32>
    %163 = arith.truncf %162 : vector<14x32xf32> to vector<14x32xbf16>
    %cst_80 = arith.constant dense<0.000000e+00> : vector<14x112xf32>
    %164 = tpu.matmul %163, %161, %cst_80 {dimension_numbers = #tpu.dot_dimension_numbers<[1], [0], [0], [1], [0, 0, 1, 1], [], []>} : vector<14x32xbf16>, vector<32x112xbf16>, vector<14x112xf32> -> vector<14x112xf32>
    %165 = arith.addf %157, %164 : vector<14x112xf32>
    %166 = vector.extract_strided_slice %0 {offsets = [0, 2, 1, 0], sizes = [2, 1, 7, 32], strides = [1, 1, 1, 1]} : vector<2x4x8x32xf32> to vector<2x1x7x32xf32>
    %167 = vector.shape_cast %166 : vector<2x1x7x32xf32> to vector<2x7x32xf32>
    %c3_81 = arith.constant 3 : index
    %c0_82 = arith.constant 0 : index
    %c0_83 = arith.constant 0 : index
    %168 = vector.load %arg2[%c3_81, %c0_82, %c0_83] : memref<5x32x112xbf16, #tpu.memory_space<vmem>>, vector<1x32x112xbf16>
    %169 = vector.shape_cast %168 : vector<1x32x112xbf16> to vector<32x112xbf16>
    %170 = vector.shape_cast %167 : vector<2x7x32xf32> to vector<14x32xf32>
    %171 = arith.truncf %170 : vector<14x32xf32> to vector<14x32xbf16>
    %cst_84 = arith.constant dense<0.000000e+00> : vector<14x112xf32>
    %172 = tpu.matmul %171, %169, %cst_84 {dimension_numbers = #tpu.dot_dimension_numbers<[1], [0], [0], [1], [0, 0, 1, 1], [], []>} : vector<14x32xbf16>, vector<32x112xbf16>, vector<14x112xf32> -> vector<14x112xf32>
    %173 = arith.addf %165, %172 : vector<14x112xf32>
    %174 = vector.extract_strided_slice %0 {offsets = [0, 3, 1, 0], sizes = [2, 1, 7, 32], strides = [1, 1, 1, 1]} : vector<2x4x8x32xf32> to vector<2x1x7x32xf32>
    %175 = vector.shape_cast %174 : vector<2x1x7x32xf32> to vector<2x7x32xf32>
    %c4_85 = arith.constant 4 : index
    %c0_86 = arith.constant 0 : index
    %c0_87 = arith.constant 0 : index
    %176 = vector.load %arg2[%c4_85, %c0_86, %c0_87] : memref<5x32x112xbf16, #tpu.memory_space<vmem>>, vector<1x32x112xbf16>
    %177 = vector.shape_cast %176 : vector<1x32x112xbf16> to vector<32x112xbf16>
    %178 = vector.shape_cast %175 : vector<2x7x32xf32> to vector<14x32xf32>
    %179 = arith.truncf %178 : vector<14x32xf32> to vector<14x32xbf16>
    %cst_88 = arith.constant dense<0.000000e+00> : vector<14x112xf32>
    %180 = tpu.matmul %179, %177, %cst_88 {dimension_numbers = #tpu.dot_dimension_numbers<[1], [0], [0], [1], [0, 0, 1, 1], [], []>} : vector<14x32xbf16>, vector<32x112xbf16>, vector<14x112xf32> -> vector<14x112xf32>
    %181 = arith.addf %173, %180 : vector<14x112xf32>
    %182 = vector.broadcast %1 : vector<1x112xf32> to vector<14x112xf32>
    %183 = arith.addf %181, %182 : vector<14x112xf32>
    %cst_89 = arith.constant 0.000000e+00 : f32
    %184 = vector.broadcast %cst_89 : f32 to vector<14x112xf32>
    %185 = arith.maximumf %183, %184 : vector<14x112xf32>
    %186 = vector.shape_cast %185 : vector<14x112xf32> to vector<2x7x112xf32>
    %187 = arith.addf %48, %94 : vector<2x7x112xf32>
    %188 = arith.addf %140, %186 : vector<2x7x112xf32>
    %cst_90 = arith.constant 0.000000e+00 : f32
    %189 = vector.broadcast %cst_90 : f32 to vector<10x160xf32>
    %cst_91 = arith.constant 0.000000e+00 : f32
    %190 = vector.broadcast %cst_91 : f32 to vector<10x160xf32>
    %191 = vector.extract_strided_slice %187 {offsets = [0, 0, 0], sizes = [2, 5, 112], strides = [1, 1, 1]} : vector<2x7x112xf32> to vector<2x5x112xf32>
    %c0_92 = arith.constant 0 : index
    %c0_93 = arith.constant 0 : index
    %c0_94 = arith.constant 0 : index
    %192 = vector.load %arg3[%c0_92, %c0_93, %c0_94] : memref<5x112x160xbf16, #tpu.memory_space<vmem>>, vector<1x112x160xbf16>
    %193 = vector.shape_cast %192 : vector<1x112x160xbf16> to vector<112x160xbf16>
    %194 = vector.shape_cast %191 : vector<2x5x112xf32> to vector<10x112xf32>
    %195 = arith.truncf %194 : vector<10x112xf32> to vector<10x112xbf16>
    %cst_95 = arith.constant dense<0.000000e+00> : vector<10x160xf32>
    %196 = tpu.matmul %195, %193, %cst_95 {dimension_numbers = #tpu.dot_dimension_numbers<[1], [0], [0], [1], [0, 0, 1, 1], [], []>} : vector<10x112xbf16>, vector<112x160xbf16>, vector<10x160xf32> -> vector<10x160xf32>
    %197 = arith.addf %190, %196 : vector<10x160xf32>
    %198 = vector.extract_strided_slice %188 {offsets = [0, 0, 0], sizes = [2, 5, 112], strides = [1, 1, 1]} : vector<2x7x112xf32> to vector<2x5x112xf32>
    %c1_96 = arith.constant 1 : index
    %c0_97 = arith.constant 0 : index
    %c0_98 = arith.constant 0 : index
    %199 = vector.load %arg3[%c1_96, %c0_97, %c0_98] : memref<5x112x160xbf16, #tpu.memory_space<vmem>>, vector<1x112x160xbf16>
    %200 = vector.shape_cast %199 : vector<1x112x160xbf16> to vector<112x160xbf16>
    %201 = vector.shape_cast %198 : vector<2x5x112xf32> to vector<10x112xf32>
    %202 = arith.truncf %201 : vector<10x112xf32> to vector<10x112xbf16>
    %cst_99 = arith.constant dense<0.000000e+00> : vector<10x160xf32>
    %203 = tpu.matmul %202, %200, %cst_99 {dimension_numbers = #tpu.dot_dimension_numbers<[1], [0], [0], [1], [0, 0, 1, 1], [], []>} : vector<10x112xbf16>, vector<112x160xbf16>, vector<10x160xf32> -> vector<10x160xf32>
    %204 = arith.addf %197, %203 : vector<10x160xf32>
    %205 = vector.extract_strided_slice %187 {offsets = [0, 1, 0], sizes = [2, 5, 112], strides = [1, 1, 1]} : vector<2x7x112xf32> to vector<2x5x112xf32>
    %c2_100 = arith.constant 2 : index
    %c0_101 = arith.constant 0 : index
    %c0_102 = arith.constant 0 : index
    %206 = vector.load %arg3[%c2_100, %c0_101, %c0_102] : memref<5x112x160xbf16, #tpu.memory_space<vmem>>, vector<1x112x160xbf16>
    %207 = vector.shape_cast %206 : vector<1x112x160xbf16> to vector<112x160xbf16>
    %208 = vector.shape_cast %205 : vector<2x5x112xf32> to vector<10x112xf32>
    %209 = arith.truncf %208 : vector<10x112xf32> to vector<10x112xbf16>
    %cst_103 = arith.constant dense<0.000000e+00> : vector<10x160xf32>
    %210 = tpu.matmul %209, %207, %cst_103 {dimension_numbers = #tpu.dot_dimension_numbers<[1], [0], [0], [1], [0, 0, 1, 1], [], []>} : vector<10x112xbf16>, vector<112x160xbf16>, vector<10x160xf32> -> vector<10x160xf32>
    %211 = arith.addf %204, %210 : vector<10x160xf32>
    %212 = vector.extract_strided_slice %188 {offsets = [0, 1, 0], sizes = [2, 5, 112], strides = [1, 1, 1]} : vector<2x7x112xf32> to vector<2x5x112xf32>
    %c3_104 = arith.constant 3 : index
    %c0_105 = arith.constant 0 : index
    %c0_106 = arith.constant 0 : index
    %213 = vector.load %arg3[%c3_104, %c0_105, %c0_106] : memref<5x112x160xbf16, #tpu.memory_space<vmem>>, vector<1x112x160xbf16>
    %214 = vector.shape_cast %213 : vector<1x112x160xbf16> to vector<112x160xbf16>
    %215 = vector.shape_cast %212 : vector<2x5x112xf32> to vector<10x112xf32>
    %216 = arith.truncf %215 : vector<10x112xf32> to vector<10x112xbf16>
    %cst_107 = arith.constant dense<0.000000e+00> : vector<10x160xf32>
    %217 = tpu.matmul %216, %214, %cst_107 {dimension_numbers = #tpu.dot_dimension_numbers<[1], [0], [0], [1], [0, 0, 1, 1], [], []>} : vector<10x112xbf16>, vector<112x160xbf16>, vector<10x160xf32> -> vector<10x160xf32>
    %218 = arith.addf %211, %217 : vector<10x160xf32>
    %219 = vector.extract_strided_slice %187 {offsets = [0, 2, 0], sizes = [2, 5, 112], strides = [1, 1, 1]} : vector<2x7x112xf32> to vector<2x5x112xf32>
    %c4_108 = arith.constant 4 : index
    %c0_109 = arith.constant 0 : index
    %c0_110 = arith.constant 0 : index
    %220 = vector.load %arg3[%c4_108, %c0_109, %c0_110] : memref<5x112x160xbf16, #tpu.memory_space<vmem>>, vector<1x112x160xbf16>
    %221 = vector.shape_cast %220 : vector<1x112x160xbf16> to vector<112x160xbf16>
    %222 = vector.shape_cast %219 : vector<2x5x112xf32> to vector<10x112xf32>
    %223 = arith.truncf %222 : vector<10x112xf32> to vector<10x112xbf16>
    %cst_111 = arith.constant dense<0.000000e+00> : vector<10x160xf32>
    %224 = tpu.matmul %223, %221, %cst_111 {dimension_numbers = #tpu.dot_dimension_numbers<[1], [0], [0], [1], [0, 0, 1, 1], [], []>} : vector<10x112xbf16>, vector<112x160xbf16>, vector<10x160xf32> -> vector<10x160xf32>
    %225 = arith.addf %218, %224 : vector<10x160xf32>
    %226 = vector.broadcast %2 : vector<1x160xf32> to vector<10x160xf32>
    %227 = arith.addf %225, %226 : vector<10x160xf32>
    %cst_112 = arith.constant 0.000000e+00 : f32
    %228 = vector.broadcast %cst_112 : f32 to vector<10x160xf32>
    %229 = arith.maximumf %227, %228 : vector<10x160xf32>
    %230 = arith.addf %189, %229 : vector<10x160xf32>
    %cst_113 = arith.constant 0.000000e+00 : f32
    %231 = vector.broadcast %cst_113 : f32 to vector<10x160xf32>
    %232 = vector.extract_strided_slice %188 {offsets = [0, 0, 0], sizes = [2, 5, 112], strides = [1, 1, 1]} : vector<2x7x112xf32> to vector<2x5x112xf32>
    %c0_114 = arith.constant 0 : index
    %c0_115 = arith.constant 0 : index
    %c0_116 = arith.constant 0 : index
    %233 = vector.load %arg3[%c0_114, %c0_115, %c0_116] : memref<5x112x160xbf16, #tpu.memory_space<vmem>>, vector<1x112x160xbf16>
    %234 = vector.shape_cast %233 : vector<1x112x160xbf16> to vector<112x160xbf16>
    %235 = vector.shape_cast %232 : vector<2x5x112xf32> to vector<10x112xf32>
    %236 = arith.truncf %235 : vector<10x112xf32> to vector<10x112xbf16>
    %cst_117 = arith.constant dense<0.000000e+00> : vector<10x160xf32>
    %237 = tpu.matmul %236, %234, %cst_117 {dimension_numbers = #tpu.dot_dimension_numbers<[1], [0], [0], [1], [0, 0, 1, 1], [], []>} : vector<10x112xbf16>, vector<112x160xbf16>, vector<10x160xf32> -> vector<10x160xf32>
    %238 = arith.addf %231, %237 : vector<10x160xf32>
    %239 = vector.extract_strided_slice %187 {offsets = [0, 1, 0], sizes = [2, 5, 112], strides = [1, 1, 1]} : vector<2x7x112xf32> to vector<2x5x112xf32>
    %c1_118 = arith.constant 1 : index
    %c0_119 = arith.constant 0 : index
    %c0_120 = arith.constant 0 : index
    %240 = vector.load %arg3[%c1_118, %c0_119, %c0_120] : memref<5x112x160xbf16, #tpu.memory_space<vmem>>, vector<1x112x160xbf16>
    %241 = vector.shape_cast %240 : vector<1x112x160xbf16> to vector<112x160xbf16>
    %242 = vector.shape_cast %239 : vector<2x5x112xf32> to vector<10x112xf32>
    %243 = arith.truncf %242 : vector<10x112xf32> to vector<10x112xbf16>
    %cst_121 = arith.constant dense<0.000000e+00> : vector<10x160xf32>
    %244 = tpu.matmul %243, %241, %cst_121 {dimension_numbers = #tpu.dot_dimension_numbers<[1], [0], [0], [1], [0, 0, 1, 1], [], []>} : vector<10x112xbf16>, vector<112x160xbf16>, vector<10x160xf32> -> vector<10x160xf32>
    %245 = arith.addf %238, %244 : vector<10x160xf32>
    %246 = vector.extract_strided_slice %188 {offsets = [0, 1, 0], sizes = [2, 5, 112], strides = [1, 1, 1]} : vector<2x7x112xf32> to vector<2x5x112xf32>
    %c2_122 = arith.constant 2 : index
    %c0_123 = arith.constant 0 : index
    %c0_124 = arith.constant 0 : index
    %247 = vector.load %arg3[%c2_122, %c0_123, %c0_124] : memref<5x112x160xbf16, #tpu.memory_space<vmem>>, vector<1x112x160xbf16>
    %248 = vector.shape_cast %247 : vector<1x112x160xbf16> to vector<112x160xbf16>
    %249 = vector.shape_cast %246 : vector<2x5x112xf32> to vector<10x112xf32>
    %250 = arith.truncf %249 : vector<10x112xf32> to vector<10x112xbf16>
    %cst_125 = arith.constant dense<0.000000e+00> : vector<10x160xf32>
    %251 = tpu.matmul %250, %248, %cst_125 {dimension_numbers = #tpu.dot_dimension_numbers<[1], [0], [0], [1], [0, 0, 1, 1], [], []>} : vector<10x112xbf16>, vector<112x160xbf16>, vector<10x160xf32> -> vector<10x160xf32>
    %252 = arith.addf %245, %251 : vector<10x160xf32>
    %253 = vector.extract_strided_slice %187 {offsets = [0, 2, 0], sizes = [2, 5, 112], strides = [1, 1, 1]} : vector<2x7x112xf32> to vector<2x5x112xf32>
    %c3_126 = arith.constant 3 : index
    %c0_127 = arith.constant 0 : index
    %c0_128 = arith.constant 0 : index
    %254 = vector.load %arg3[%c3_126, %c0_127, %c0_128] : memref<5x112x160xbf16, #tpu.memory_space<vmem>>, vector<1x112x160xbf16>
    %255 = vector.shape_cast %254 : vector<1x112x160xbf16> to vector<112x160xbf16>
    %256 = vector.shape_cast %253 : vector<2x5x112xf32> to vector<10x112xf32>
    %257 = arith.truncf %256 : vector<10x112xf32> to vector<10x112xbf16>
    %cst_129 = arith.constant dense<0.000000e+00> : vector<10x160xf32>
    %258 = tpu.matmul %257, %255, %cst_129 {dimension_numbers = #tpu.dot_dimension_numbers<[1], [0], [0], [1], [0, 0, 1, 1], [], []>} : vector<10x112xbf16>, vector<112x160xbf16>, vector<10x160xf32> -> vector<10x160xf32>
    %259 = arith.addf %252, %258 : vector<10x160xf32>
    %260 = vector.extract_strided_slice %188 {offsets = [0, 2, 0], sizes = [2, 5, 112], strides = [1, 1, 1]} : vector<2x7x112xf32> to vector<2x5x112xf32>
    %c4_130 = arith.constant 4 : index
    %c0_131 = arith.constant 0 : index
    %c0_132 = arith.constant 0 : index
    %261 = vector.load %arg3[%c4_130, %c0_131, %c0_132] : memref<5x112x160xbf16, #tpu.memory_space<vmem>>, vector<1x112x160xbf16>
    %262 = vector.shape_cast %261 : vector<1x112x160xbf16> to vector<112x160xbf16>
    %263 = vector.shape_cast %260 : vector<2x5x112xf32> to vector<10x112xf32>
    %264 = arith.truncf %263 : vector<10x112xf32> to vector<10x112xbf16>
    %cst_133 = arith.constant dense<0.000000e+00> : vector<10x160xf32>
    %265 = tpu.matmul %264, %262, %cst_133 {dimension_numbers = #tpu.dot_dimension_numbers<[1], [0], [0], [1], [0, 0, 1, 1], [], []>} : vector<10x112xbf16>, vector<112x160xbf16>, vector<10x160xf32> -> vector<10x160xf32>
    %266 = arith.addf %259, %265 : vector<10x160xf32>
    %267 = vector.broadcast %2 : vector<1x160xf32> to vector<10x160xf32>
    %268 = arith.addf %266, %267 : vector<10x160xf32>
    %cst_134 = arith.constant 0.000000e+00 : f32
    %269 = vector.broadcast %cst_134 : f32 to vector<10x160xf32>
    %270 = arith.maximumf %268, %269 : vector<10x160xf32>
    %271 = arith.addf %230, %270 : vector<10x160xf32>
    %272 = vector.shape_cast %271 : vector<10x160xf32> to vector<2x5x160xf32>
    %cst_135 = arith.constant 0.000000e+00 : f32
    %273 = vector.broadcast %cst_135 : f32 to vector<2x120xf32>
    %274 = vector.extract_strided_slice %272 {offsets = [0, 0, 0], sizes = [2, 1, 160], strides = [1, 1, 1]} : vector<2x5x160xf32> to vector<2x1x160xf32>
    %275 = vector.shape_cast %274 : vector<2x1x160xf32> to vector<2x160xf32>
    %276 = arith.truncf %275 : vector<2x160xf32> to vector<2x160xbf16>
    %c0_136 = arith.constant 0 : index
    %c0_137 = arith.constant 0 : index
    %c0_138 = arith.constant 0 : index
    %277 = vector.load %arg6[%c0_136, %c0_137, %c0_138] : memref<5x160x120xbf16, #tpu.memory_space<vmem>>, vector<1x160x120xbf16>
    %278 = vector.shape_cast %277 : vector<1x160x120xbf16> to vector<160x120xbf16>
    %cst_139 = arith.constant dense<0.000000e+00> : vector<2x120xf32>
    %279 = tpu.matmul %276, %278, %cst_139 {dimension_numbers = #tpu.dot_dimension_numbers<[1], [0], [0], [1], [0, 0, 1, 1], [], []>} : vector<2x160xbf16>, vector<160x120xbf16>, vector<2x120xf32> -> vector<2x120xf32>
    %280 = arith.addf %273, %279 : vector<2x120xf32>
    %281 = vector.extract_strided_slice %272 {offsets = [0, 1, 0], sizes = [2, 1, 160], strides = [1, 1, 1]} : vector<2x5x160xf32> to vector<2x1x160xf32>
    %282 = vector.shape_cast %281 : vector<2x1x160xf32> to vector<2x160xf32>
    %283 = arith.truncf %282 : vector<2x160xf32> to vector<2x160xbf16>
    %c1_140 = arith.constant 1 : index
    %c0_141 = arith.constant 0 : index
    %c0_142 = arith.constant 0 : index
    %284 = vector.load %arg6[%c1_140, %c0_141, %c0_142] : memref<5x160x120xbf16, #tpu.memory_space<vmem>>, vector<1x160x120xbf16>
    %285 = vector.shape_cast %284 : vector<1x160x120xbf16> to vector<160x120xbf16>
    %cst_143 = arith.constant dense<0.000000e+00> : vector<2x120xf32>
    %286 = tpu.matmul %283, %285, %cst_143 {dimension_numbers = #tpu.dot_dimension_numbers<[1], [0], [0], [1], [0, 0, 1, 1], [], []>} : vector<2x160xbf16>, vector<160x120xbf16>, vector<2x120xf32> -> vector<2x120xf32>
    %287 = arith.addf %280, %286 : vector<2x120xf32>
    %288 = vector.extract_strided_slice %272 {offsets = [0, 2, 0], sizes = [2, 1, 160], strides = [1, 1, 1]} : vector<2x5x160xf32> to vector<2x1x160xf32>
    %289 = vector.shape_cast %288 : vector<2x1x160xf32> to vector<2x160xf32>
    %290 = arith.truncf %289 : vector<2x160xf32> to vector<2x160xbf16>
    %c2_144 = arith.constant 2 : index
    %c0_145 = arith.constant 0 : index
    %c0_146 = arith.constant 0 : index
    %291 = vector.load %arg6[%c2_144, %c0_145, %c0_146] : memref<5x160x120xbf16, #tpu.memory_space<vmem>>, vector<1x160x120xbf16>
    %292 = vector.shape_cast %291 : vector<1x160x120xbf16> to vector<160x120xbf16>
    %cst_147 = arith.constant dense<0.000000e+00> : vector<2x120xf32>
    %293 = tpu.matmul %290, %292, %cst_147 {dimension_numbers = #tpu.dot_dimension_numbers<[1], [0], [0], [1], [0, 0, 1, 1], [], []>} : vector<2x160xbf16>, vector<160x120xbf16>, vector<2x120xf32> -> vector<2x120xf32>
    %294 = arith.addf %287, %293 : vector<2x120xf32>
    %295 = vector.extract_strided_slice %272 {offsets = [0, 3, 0], sizes = [2, 1, 160], strides = [1, 1, 1]} : vector<2x5x160xf32> to vector<2x1x160xf32>
    %296 = vector.shape_cast %295 : vector<2x1x160xf32> to vector<2x160xf32>
    %297 = arith.truncf %296 : vector<2x160xf32> to vector<2x160xbf16>
    %c3_148 = arith.constant 3 : index
    %c0_149 = arith.constant 0 : index
    %c0_150 = arith.constant 0 : index
    %298 = vector.load %arg6[%c3_148, %c0_149, %c0_150] : memref<5x160x120xbf16, #tpu.memory_space<vmem>>, vector<1x160x120xbf16>
    %299 = vector.shape_cast %298 : vector<1x160x120xbf16> to vector<160x120xbf16>
    %cst_151 = arith.constant dense<0.000000e+00> : vector<2x120xf32>
    %300 = tpu.matmul %297, %299, %cst_151 {dimension_numbers = #tpu.dot_dimension_numbers<[1], [0], [0], [1], [0, 0, 1, 1], [], []>} : vector<2x160xbf16>, vector<160x120xbf16>, vector<2x120xf32> -> vector<2x120xf32>
    %301 = arith.addf %294, %300 : vector<2x120xf32>
    %302 = vector.extract_strided_slice %272 {offsets = [0, 4, 0], sizes = [2, 1, 160], strides = [1, 1, 1]} : vector<2x5x160xf32> to vector<2x1x160xf32>
    %303 = vector.shape_cast %302 : vector<2x1x160xf32> to vector<2x160xf32>
    %304 = arith.truncf %303 : vector<2x160xf32> to vector<2x160xbf16>
    %c4_152 = arith.constant 4 : index
    %c0_153 = arith.constant 0 : index
    %c0_154 = arith.constant 0 : index
    %305 = vector.load %arg6[%c4_152, %c0_153, %c0_154] : memref<5x160x120xbf16, #tpu.memory_space<vmem>>, vector<1x160x120xbf16>
    %306 = vector.shape_cast %305 : vector<1x160x120xbf16> to vector<160x120xbf16>
    %cst_155 = arith.constant dense<0.000000e+00> : vector<2x120xf32>
    %307 = tpu.matmul %304, %306, %cst_155 {dimension_numbers = #tpu.dot_dimension_numbers<[1], [0], [0], [1], [0, 0, 1, 1], [], []>} : vector<2x160xbf16>, vector<160x120xbf16>, vector<2x120xf32> -> vector<2x120xf32>
    %308 = arith.addf %301, %307 : vector<2x120xf32>
    %c0_156 = arith.constant 0 : index
    %c0_157 = arith.constant 0 : index
    %309 = vector.load %arg7[%c0_156, %c0_157] : memref<1x120xf32, #tpu.memory_space<vmem>>, vector<1x120xf32>
    %310 = vector.broadcast %309 : vector<1x120xf32> to vector<2x120xf32>
    %311 = arith.addf %308, %310 : vector<2x120xf32>
    %cst_158 = arith.constant 0.000000e+00 : f32
    %312 = vector.broadcast %cst_158 : f32 to vector<2x120xf32>
    %313 = arith.maximumf %311, %312 : vector<2x120xf32>
    %314 = arith.truncf %313 : vector<2x120xf32> to vector<2x120xbf16>
    %c0_159 = arith.constant 0 : index
    %c0_160 = arith.constant 0 : index
    %315 = vector.load %arg8[%c0_159, %c0_160] : memref<120x27xbf16, #tpu.memory_space<vmem>>, vector<120x27xbf16>
    %cst_161 = arith.constant dense<0.000000e+00> : vector<2x27xf32>
    %316 = tpu.matmul %314, %315, %cst_161 {dimension_numbers = #tpu.dot_dimension_numbers<[1], [0], [0], [1], [0, 0, 1, 1], [], []>} : vector<2x120xbf16>, vector<120x27xbf16>, vector<2x27xf32> -> vector<2x27xf32>
    %c0_162 = arith.constant 0 : index
    %c0_163 = arith.constant 0 : index
    %317 = vector.load %arg9[%c0_162, %c0_163] : memref<1x27xf32, #tpu.memory_space<vmem>>, vector<1x27xf32>
    %318 = vector.broadcast %317 : vector<1x27xf32> to vector<2x27xf32>
    %319 = arith.addf %316, %318 : vector<2x27xf32>
    %c0_164 = arith.constant 0 : index
    %c0_165 = arith.constant 0 : index
    %320 = vector.load %arg10[%c0_164, %c0_165] : memref<2x27xf32, #tpu.memory_space<vmem>>, vector<2x27xf32>
    tpu.vector_store %arg10[%c0_164, %c0_165], %319 {strides = array<i32>} : memref<2x27xf32, #tpu.memory_space<vmem>>, vector<2x27xf32>,
    return
  }
  func.func @transform_0(%arg0: i32) -> (i32, i32, i32, i32) {
    %c0_i32 = arith.constant 0 : i32
    %c0_i32_0 = arith.constant 0 : i32
    %c0_i32_1 = arith.constant 0 : i32
    %c0_i32_2 = arith.constant 0 : i32
    return %arg0, %c0_i32, %c0_i32_0, %c0_i32_1 : i32, i32, i32, i32
  }
  func.func @transform_1(%arg0: i32) -> (i32, i32, i32) {
    %c0_i32 = arith.constant 0 : i32
    %c0_i32_0 = arith.constant 0 : i32
    %c0_i32_1 = arith.constant 0 : i32
    %c0_i32_2 = arith.constant 0 : i32
    return %c0_i32, %c0_i32_0, %c0_i32_1 : i32, i32, i32
  }
  func.func @transform_2(%arg0: i32) -> (i32, i32, i32) {
    %c0_i32 = arith.constant 0 : i32
    %c0_i32_0 = arith.constant 0 : i32
    %c0_i32_1 = arith.constant 0 : i32
    %c0_i32_2 = arith.constant 0 : i32
    return %c0_i32, %c0_i32_0, %c0_i32_1 : i32, i32, i32
  }
  func.func @transform_3(%arg0: i32) -> (i32, i32) {
    %c0_i32 = arith.constant 0 : i32
    %c0_i32_0 = arith.constant 0 : i32
    %c0_i32_1 = arith.constant 0 : i32
    return %c0_i32, %c0_i32_0 : i32, i32
  }
  func.func @transform_4(%arg0: i32) -> (i32, i32) {
    %c0_i32 = arith.constant 0 : i32
    %c0_i32_0 = arith.constant 0 : i32
    %c0_i32_1 = arith.constant 0 : i32
    return %c0_i32, %c0_i32_0 : i32, i32
  }
  func.func @transform_5(%arg0: i32) -> (i32, i32, i32) {
    %c0_i32 = arith.constant 0 : i32
    %c0_i32_0 = arith.constant 0 : i32
    %c0_i32_1 = arith.constant 0 : i32
    %c0_i32_2 = arith.constant 0 : i32
    return %c0_i32, %c0_i32_0, %c0_i32_1 : i32, i32, i32
  }
  func.func @transform_6(%arg0: i32) -> (i32, i32) {
    %c0_i32 = arith.constant 0 : i32
    %c0_i32_0 = arith.constant 0 : i32
    %c0_i32_1 = arith.constant 0 : i32
    return %c0_i32, %c0_i32_0 : i32, i32
  }
  func.func @transform_7(%arg0: i32) -> (i32, i32) {
    %c0_i32 = arith.constant 0 : i32
    %c0_i32_0 = arith.constant 0 : i32
    %c0_i32_1 = arith.constant 0 : i32
    return %c0_i32, %c0_i32_0 : i32, i32
  }
  func.func @transform_8(%arg0: i32) -> (i32, i32) {
    %c0_i32 = arith.constant 0 : i32
    %c0_i32_0 = arith.constant 0 : i32
    %c0_i32_1 = arith.constant 0 : i32
    return %c0_i32, %c0_i32_0 : i32, i32
  }
  func.func @transform_9(%arg0: i32) -> (i32, i32) {
    %c0_i32 = arith.constant 0 : i32
    %c0_i32_0 = arith.constant 0 : i32
    return %arg0, %c0_i32 : i32, i32
  }
}

</mosaic_0001>

<llo_original>
// kernel: lenet4_forward.1
$region0: #{lenet4_forward.1}
  #allocation0 [shape = 'u32[]', space=smem, size = 0x4, offset = 0x4, fixed_abs, tag = 'smem constant byte address 0x4 - core index']
  #allocation1 [shape = 'u32[144,128]{1,0:T(1,128)}', space=vmem, size = 0x12000, scoped, tag = 'internal scratch']
  %s0 = inlined_call_operand.vmem [shape: f32[2,4,8,32], index: 0, kind: input, shape index: {}]
  %s1 = inlined_call_operand.vmem [shape: bf16[5,32,112], index: 1, kind: input, shape index: {}]
  %s2 = inlined_call_operand.vmem [shape: bf16[5,112,160], index: 2, kind: input, shape index: {}]
  %s3 = inlined_call_operand.vmem [shape: f32[1,112], index: 3, kind: input, shape index: {}]
  %s4 = inlined_call_operand.vmem [shape: f32[1,160], index: 4, kind: input, shape index: {}]
  %s5 = inlined_call_operand.vmem [shape: bf16[5,160,120], index: 5, kind: input, shape index: {}]
  %s6 = inlined_call_operand.vmem [shape: f32[1,120], index: 6, kind: input, shape index: {}]
  %s7 = inlined_call_operand.vmem [shape: bf16[120,27], index: 7, kind: input, shape index: {}]
  %s8 = inlined_call_operand.vmem [shape: f32[1,27], index: 8, kind: input, shape index: {}]
  %s9 = inlined_call_operand.hbm [shape: f32[2,27], index: 9, kind: output, shape index: {}]
  %s10 = sld [smem:[#allocation0]]
  $region46: #{lenet4_forward.1} parent=0
    _
  %s12 = ssub.s32 1, %s10
  %s13 = scalar_select 0, %s12, %s10
  $region1: #{lenet4_forward.1} parent=0
    #allocation2 [shape = 'u8[1024]{0}', space=vmem, size = 0x400, scoped, tag = 'output window, operand 0, single buffered']
    #allocation3 [shape = 's32[1]{0}', space=sflag, size = 0x4, scoped, tag = 'scoped memory for lenet4_forward.1']
    %14 = vsyncpa [#allocation3], 0
    // Predicated region
    $region2: #{lenet4_forward.1} parent=1 // pred_check
      _
    $region3: #{lenet4_forward.1} parent=1 // pred_check_branch
      %16 = sbr.rel (0) target = $region5
    $region4: #{lenet4_forward.1} parent=1 // pred_region
      _
    $region5: #{lenet4_forward.1} parent=1 // pred_fallthru
      _
    // Predicated region
    $region6: #{lenet4_forward.1} parent=1 // pred_check
      _
    $region7: #{lenet4_forward.1} parent=1 // pred_check_branch
      %18 = sbr.rel (0) target = $region9
    $region8: #{lenet4_forward.1} parent=1 // pred_region
      _
    $region9: #{lenet4_forward.1} parent=1 // pred_fallthru
      _
    // Predicated region
    $region10: #{lenet4_forward.1} parent=1 // pred_check
      _
    $region11: #{lenet4_forward.1} parent=1 // pred_check_branch
      %20 = sbr.rel (0) target = $region13
    $region12: #{lenet4_forward.1} parent=1 // pred_region
      _
    $region13: #{lenet4_forward.1} parent=1 // pred_fallthru
      _
    // Predicated region
    $region14: #{lenet4_forward.1} parent=1 // pred_check
      _
    $region15: #{lenet4_forward.1} parent=1 // pred_check_branch
      %22 = sbr.rel (0) target = $region17
    $region16: #{lenet4_forward.1} parent=1 // pred_region
      _
    $region17: #{lenet4_forward.1} parent=1 // pred_fallthru
      _
    // Predicated region
    $region18: #{lenet4_forward.1} parent=1 // pred_check
      _
    $region19: #{lenet4_forward.1} parent=1 // pred_check_branch
      %24 = sbr.rel (0) target = $region21
    $region20: #{lenet4_forward.1} parent=1 // pred_region
      _
    $region21: #{lenet4_forward.1} parent=1 // pred_fallthru
      _
    // Predicated region
    $region22: #{lenet4_forward.1} parent=1 // pred_check
      _
    $region23: #{lenet4_forward.1} parent=1 // pred_check_branch
      %26 = sbr.rel (0) target = $region25
    $region24: #{lenet4_forward.1} parent=1 // pred_region
      _
    $region25: #{lenet4_forward.1} parent=1 // pred_fallthru
      _
    // Predicated region
    $region26: #{lenet4_forward.1} parent=1 // pred_check
      _
    $region27: #{lenet4_forward.1} parent=1 // pred_check_branch
      %28 = sbr.rel (0) target = $region29
    $region28: #{lenet4_forward.1} parent=1 // pred_region
      _
    $region29: #{lenet4_forward.1} parent=1 // pred_fallthru
      _
    // Predicated region
    $region30: #{lenet4_forward.1} parent=1 // pred_check
      _
    $region31: #{lenet4_forward.1} parent=1 // pred_check_branch
      %30 = sbr.rel (0) target = $region33
    $region32: #{lenet4_forward.1} parent=1 // pred_region
      _
    $region33: #{lenet4_forward.1} parent=1 // pred_fallthru
      _
    // Predicated region
    $region34: #{lenet4_forward.1} parent=1 // pred_check
      _
    $region35: #{lenet4_forward.1} parent=1 // pred_check_branch
      %32 = sbr.rel (0) target = $region37
    $region36: #{lenet4_forward.1} parent=1 // pred_region
      _
    $region37: #{lenet4_forward.1} parent=1 // pred_fallthru
      _
    %v34 = vld [vmem:[%s0] sm:$0xff]
    %v35 = vld [vmem:[%s0 + $0x8] sm:$0xff]
    %v36 = vld [vmem:[%s0 + $0x10] sm:$0xff]
    %v37 = vld [vmem:[%s0 + $0x18] sm:$0xff]
    %v38 = vld [vmem:[%s0 + $0x20] sm:$0xff]
    %v39 = vld [vmem:[%s0 + $0x28] sm:$0xff]
    %v40 = vld [vmem:[%s0 + $0x30] sm:$0xff]
    %v41 = vld [vmem:[%s0 + $0x38] sm:$0xff]
    %v42 = vld [vmem:[%s3] sm:$0x1]
    %v43 = vld [vmem:[%s4] sm:$0x3]
    %v44 = vld [vmem:[%s1] sm:$0xf]
    %v45 = vld [vmem:[%s1 + $0x4] sm:$0xf]
    %v46 = vld [vmem:[%s1 + $0x8] sm:$0xf]
    %v47 = vld [vmem:[%s1 + $0xc] sm:$0xf]
    %v50 = vcombine.high %v34, %v34
    %v52 = vunpack.c.l.s4 1966171168
    %v53 = vunpack.c.0.s8 %v52
    %v54 = vlaneseq
    %v55 = vshrl.u32 %v54, 7
    %v56 = vsub.s32 %v53, %v55
    %v57 = vrot.slane %v34, %v56
    %v59 = vunpack.c.l.s4 1966171168
    %v60 = vunpack.c.0.s8 %v59
    %v61 = vlaneseq
    %v62 = vshrl.u32 %v61, 7
    %v63 = vsub.s32 %v60, %v62
    %v64 = vrot.slane %v50, %v63
    %v65 = vcombine.high %v57, %v57
    %v66 = vcombine.high %v64, %v64
    %v68 = vunpack.c.l.s4 1966171168
    %v69 = vunpack.c.0.s8 %v68
    %v70 = vlaneseq
    %v71 = vshrl.u32 %v70, 7
    %v72 = vsub.s32 %v69, %v71
    %v73 = vrot.slane %v57, %v72
    %v75 = vunpack.c.l.s4 1966171168
    %v76 = vunpack.c.0.s8 %v75
    %v77 = vlaneseq
    %v78 = vshrl.u32 %v77, 7
    %v79 = vsub.s32 %v76, %v78
    %v80 = vrot.slane %v64, %v79
    %v82 = vunpack.c.l.s4 1966171168
    %v83 = vunpack.c.0.s8 %v82
    %v84 = vlaneseq
    %v85 = vshrl.u32 %v84, 7
    %v86 = vsub.s32 %v83, %v85
    %v87 = vrot.slane %v65, %v86
    %v89 = vunpack.c.l.s4 1966171168
    %v90 = vunpack.c.0.s8 %v89
    %v91 = vlaneseq
    %v92 = vshrl.u32 %v91, 7
    %v93 = vsub.s32 %v90, %v92
    %v94 = vrot.slane %v66, %v93
    %v95 = vcombine.high %v73, %v73
    %v96 = vcombine.high %v80, %v80
    %v97 = vcombine.high %v87, %v87
    %v98 = vcombine.high %v38, %v38
    %v100 = vunpack.c.l.s4 1966171168
    %v101 = vunpack.c.0.s8 %v100
    %v102 = vlaneseq
    %v103 = vshrl.u32 %v102, 7
    %v104 = vsub.s32 %v101, %v103
    %v105 = vrot.slane %v38, %v104
    %v107 = vunpack.c.l.s4 1966171168
    %v108 = vunpack.c.0.s8 %v107
    %v109 = vlaneseq
    %v110 = vshrl.u32 %v109, 7
    %v111 = vsub.s32 %v108, %v110
    %v112 = vrot.slane %v98, %v111
    %v113 = vcombine.high %v105, %v105
    %v114 = vcombine.high %v112, %v112
    %v116 = vunpack.c.l.s4 1966171168
    %v117 = vunpack.c.0.s8 %v116
    %v118 = vlaneseq
    %v119 = vshrl.u32 %v118, 7
    %v120 = vsub.s32 %v117, %v119
    %v121 = vrot.slane %v105, %v120
    %v123 = vunpack.c.l.s4 1966171168
    %v124 = vunpack.c.0.s8 %v123
    %v125 = vlaneseq
    %v126 = vshrl.u32 %v125, 7
    %v127 = vsub.s32 %v124, %v126
    %v128 = vrot.slane %v112, %v127
    %v130 = vunpack.c.l.s4 1966171168
    %v131 = vunpack.c.0.s8 %v130
    %v132 = vlaneseq
    %v133 = vshrl.u32 %v132, 7
    %v134 = vsub.s32 %v131, %v133
    %v135 = vrot.slane %v113, %v134
    %v137 = vunpack.c.l.s4 1966171168
    %v138 = vunpack.c.0.s8 %v137
    %v139 = vlaneseq
    %v140 = vshrl.u32 %v139, 7
    %v141 = vsub.s32 %v138, %v140
    %v142 = vrot.slane %v114, %v141
    %v143 = vcombine.high %v121, %v121
    %v144 = vcombine.high %v128, %v128
    %v145 = vcombine.high %v135, %v135
    %v146 = vcombine.low %v73, %v87
    %v147 = vcombine.low %v95, %v97
    %v148 = vcombine.low %v80, %v94
    %v149 = vcombine.low %v96, %v121
    %v151 = vunpack.c.l.s4 1966171168
    %v152 = vunpack.c.0.s8 %v151
    %v153 = vlaneseq
    %v154 = vshrl.u32 %v153, 7
    %v155 = vsub.s32 %v152, %v154
    %v156 = vrot.slane %v146, %v155
    %v158 = vunpack.c.l.s4 1966171168
    %v159 = vunpack.c.0.s8 %v158
    %v160 = vlaneseq
    %v161 = vshrl.u32 %v160, 7
    %v162 = vsub.s32 %v159, %v161
    %v163 = vrot.slane %v147, %v162
    %v165 = vunpack.c.l.s4 1966171168
    %v166 = vunpack.c.0.s8 %v165
    %v167 = vlaneseq
    %v168 = vshrl.u32 %v167, 7
    %v169 = vsub.s32 %v166, %v168
    %v170 = vrot.slane %v148, %v169
    %v172 = vunpack.c.l.s4 1966171168
    %v173 = vunpack.c.0.s8 %v172
    %v174 = vlaneseq
    %v175 = vshrl.u32 %v174, 7
    %v176 = vsub.s32 %v173, %v175
    %v177 = vrot.slane %v149, %v176
    %v178 = vcombine.low %v156, %v163
    %v179 = vcombine.low %v170, %v177
    %v181 = vunpack.c.l.s4 1966171168
    %v182 = vunpack.c.0.s8 %v181
    %v183 = vlaneseq
    %v184 = vshrl.u32 %v183, 7
    %v185 = vsub.s32 %v182, %v184
    %v186 = vrot.slane %v178, %v185
    %v188 = vunpack.c.l.s4 1966171168
    %v189 = vunpack.c.0.s8 %v188
    %v190 = vlaneseq
    %v191 = vshrl.u32 %v190, 7
    %v192 = vsub.s32 %v189, %v191
    %v193 = vrot.slane %v179, %v192
    %v194 = vcombine.low %v186, %v193
    %v195 = vcombine.low %v135, %v143
    %v196 = vcombine.low %v145, %v128
    %v197 = vcombine.low %v142, %v144
    %v199 = vunpack.c.l.s4 1966171168
    %v200 = vunpack.c.0.s8 %v199
    %v201 = vlaneseq
    %v202 = vshrl.u32 %v201, 7
    %v203 = vsub.s32 %v200, %v202
    %v204 = vrot.slane %v195, %v203
    %v206 = vunpack.c.l.s4 1966171168
    %v207 = vunpack.c.0.s8 %v206
    %v208 = vlaneseq
    %v209 = vshrl.u32 %v208, 7
    %v210 = vsub.s32 %v207, %v209
    %v211 = vrot.slane %v196, %v210
    %v213 = vunpack.c.l.s4 1966171168
    %v214 = vunpack.c.0.s8 %v213
    %v215 = vlaneseq
    %v216 = vshrl.u32 %v215, 7
    %v217 = vsub.s32 %v214, %v216
    %v218 = vrot.slane %v197, %v217
    %v219 = vcombine.low %v204, %v211
    %v221 = vunpack.c.l.s4 1966171168
    %v222 = vunpack.c.0.s8 %v221
    %v223 = vlaneseq
    %v224 = vshrl.u32 %v223, 7
    %v225 = vsub.s32 %v222, %v224
    %v226 = vrot.slane %v219, %v225
    %v228 = vunpack.c.l.s4 1966171168
    %v229 = vunpack.c.0.s8 %v228
    %v230 = vlaneseq
    %v231 = vshrl.u32 %v230, 7
    %v232 = vsub.s32 %v229, %v231
    %v233 = vrot.slane %v218, %v232
    %v234 = vcombine.low %v226, %v233
    %v237 = vpack.c.bf16 %v234, %v194
    %s238 = scalar_lea.vmem %s1, 16
    %v239 = vld [vmem:[%s238] sm:$0xf]
    %v240 = vld [vmem:[%s238 + $0x4] sm:$0xf]
    %v241 = vld [vmem:[%s238 + $0x8] sm:$0xf]
    %v242 = vld [vmem:[%s238 + $0xc] sm:$0xf]
    %v245 = vcombine.high %v35, %v35
    %v247 = vunpack.c.l.s4 1966171168
    %v248 = vunpack.c.0.s8 %v247
    %v249 = vlaneseq
    %v250 = vshrl.u32 %v249, 7
    %v251 = vsub.s32 %v248, %v250
    %v252 = vrot.slane %v35, %v251
    %v254 = vunpack.c.l.s4 1966171168
    %v255 = vunpack.c.0.s8 %v254
    %v256 = vlaneseq
    %v257 = vshrl.u32 %v256, 7
    %v258 = vsub.s32 %v255, %v257
    %v259 = vrot.slane %v245, %v258
    %v260 = vcombine.high %v252, %v252
    %v261 = vcombine.high %v259, %v259
    %v263 = vunpack.c.l.s4 1966171168
    %v264 = vunpack.c.0.s8 %v263
    %v265 = vlaneseq
    %v266 = vshrl.u32 %v265, 7
    %v267 = vsub.s32 %v264, %v266
    %v268 = vrot.slane %v252, %v267
    %v270 = vunpack.c.l.s4 1966171168
    %v271 = vunpack.c.0.s8 %v270
    %v272 = vlaneseq
    %v273 = vshrl.u32 %v272, 7
    %v274 = vsub.s32 %v271, %v273
    %v275 = vrot.slane %v259, %v274
    %v277 = vunpack.c.l.s4 1966171168
    %v278 = vunpack.c.0.s8 %v277
    %v279 = vlaneseq
    %v280 = vshrl.u32 %v279, 7
    %v281 = vsub.s32 %v278, %v280
    %v282 = vrot.slane %v260, %v281
    %v284 = vunpack.c.l.s4 1966171168
    %v285 = vunpack.c.0.s8 %v284
    %v286 = vlaneseq
    %v287 = vshrl.u32 %v286, 7
    %v288 = vsub.s32 %v285, %v287
    %v289 = vrot.slane %v261, %v288
    %v290 = vcombine.high %v268, %v268
    %v291 = vcombine.high %v275, %v275
    %v292 = vcombine.high %v282, %v282
    %v293 = vcombine.high %v39, %v39
    %v295 = vunpack.c.l.s4 1966171168
    %v296 = vunpack.c.0.s8 %v295
    %v297 = vlaneseq
    %v298 = vshrl.u32 %v297, 7
    %v299 = vsub.s32 %v296, %v298
    %v300 = vrot.slane %v39, %v299
    %v302 = vunpack.c.l.s4 1966171168
    %v303 = vunpack.c.0.s8 %v302
    %v304 = vlaneseq
    %v305 = vshrl.u32 %v304, 7
    %v306 = vsub.s32 %v303, %v305
    %v307 = vrot.slane %v293, %v306
    %v308 = vcombine.high %v300, %v300
    %v309 = vcombine.high %v307, %v307
    %v311 = vunpack.c.l.s4 1966171168
    %v312 = vunpack.c.0.s8 %v311
    %v313 = vlaneseq
    %v314 = vshrl.u32 %v313, 7
    %v315 = vsub.s32 %v312, %v314
    %v316 = vrot.slane %v300, %v315
    %v318 = vunpack.c.l.s4 1966171168
    %v319 = vunpack.c.0.s8 %v318
    %v320 = vlaneseq
    %v321 = vshrl.u32 %v320, 7
    %v322 = vsub.s32 %v319, %v321
    %v323 = vrot.slane %v307, %v322
    %v325 = vunpack.c.l.s4 1966171168
    %v326 = vunpack.c.0.s8 %v325
    %v327 = vlaneseq
    %v328 = vshrl.u32 %v327, 7
    %v329 = vsub.s32 %v326, %v328
    %v330 = vrot.slane %v308, %v329
    %v332 = vunpack.c.l.s4 1966171168
    %v333 = vunpack.c.0.s8 %v332
    %v334 = vlaneseq
    %v335 = vshrl.u32 %v334, 7
    %v336 = vsub.s32 %v333, %v335
    %v337 = vrot.slane %v309, %v336
    %v338 = vcombine.high %v316, %v316
    %v339 = vcombine.high %v323, %v323
    %v340 = vcombine.high %v330, %v330
    %v341 = vcombine.low %v268, %v282
    %v342 = vcombine.low %v290, %v292
    %v343 = vcombine.low %v275, %v289
    %v344 = vcombine.low %v291, %v316
    %v346 = vunpack.c.l.s4 1966171168
    %v347 = vunpack.c.0.s8 %v346
    %v348 = vlaneseq
    %v349 = vshrl.u32 %v348, 7
    %v350 = vsub.s32 %v347, %v349
    %v351 = vrot.slane %v341, %v350
    %v353 = vunpack.c.l.s4 1966171168
    %v354 = vunpack.c.0.s8 %v353
    %v355 = vlaneseq
    %v356 = vshrl.u32 %v355, 7
    %v357 = vsub.s32 %v354, %v356
    %v358 = vrot.slane %v342, %v357
    %v360 = vunpack.c.l.s4 1966171168
    %v361 = vunpack.c.0.s8 %v360
    %v362 = vlaneseq
    %v363 = vshrl.u32 %v362, 7
    %v364 = vsub.s32 %v361, %v363
    %v365 = vrot.slane %v343, %v364
    %v367 = vunpack.c.l.s4 1966171168
    %v368 = vunpack.c.0.s8 %v367
    %v369 = vlaneseq
    %v370 = vshrl.u32 %v369, 7
    %v371 = vsub.s32 %v368, %v370
    %v372 = vrot.slane %v344, %v371
    %v373 = vcombine.low %v351, %v358
    %v374 = vcombine.low %v365, %v372
    %v376 = vunpack.c.l.s4 1966171168
    %v377 = vunpack.c.0.s8 %v376
    %v378 = vlaneseq
    %v379 = vshrl.u32 %v378, 7
    %v380 = vsub.s32 %v377, %v379
    %v381 = vrot.slane %v373, %v380
    %v383 = vunpack.c.l.s4 1966171168
    %v384 = vunpack.c.0.s8 %v383
    %v385 = vlaneseq
    %v386 = vshrl.u32 %v385, 7
    %v387 = vsub.s32 %v384, %v386
    %v388 = vrot.slane %v374, %v387
    %v389 = vcombine.low %v381, %v388
    %v390 = vcombine.low %v330, %v338
    %v391 = vcombine.low %v340, %v323
    %v392 = vcombine.low %v337, %v339
    %v394 = vunpack.c.l.s4 1966171168
    %v395 = vunpack.c.0.s8 %v394
    %v396 = vlaneseq
    %v397 = vshrl.u32 %v396, 7
    %v398 = vsub.s32 %v395, %v397
    %v399 = vrot.slane %v390, %v398
    %v401 = vunpack.c.l.s4 1966171168
    %v402 = vunpack.c.0.s8 %v401
    %v403 = vlaneseq
    %v404 = vshrl.u32 %v403, 7
    %v405 = vsub.s32 %v402, %v404
    %v406 = vrot.slane %v391, %v405
    %v408 = vunpack.c.l.s4 1966171168
    %v409 = vunpack.c.0.s8 %v408
    %v410 = vlaneseq
    %v411 = vshrl.u32 %v410, 7
    %v412 = vsub.s32 %v409, %v411
    %v413 = vrot.slane %v392, %v412
    %v414 = vcombine.low %v399, %v406
    %v416 = vunpack.c.l.s4 1966171168
    %v417 = vunpack.c.0.s8 %v416
    %v418 = vlaneseq
    %v419 = vshrl.u32 %v418, 7
    %v420 = vsub.s32 %v417, %v419
    %v421 = vrot.slane %v414, %v420
    %v423 = vunpack.c.l.s4 1966171168
    %v424 = vunpack.c.0.s8 %v423
    %v425 = vlaneseq
    %v426 = vshrl.u32 %v425, 7
    %v427 = vsub.s32 %v424, %v426
    %v428 = vrot.slane %v413, %v427
    %v429 = vcombine.low %v421, %v428
    %v432 = vpack.c.bf16 %v429, %v389
    %v437 = vunpack.c.l.b16 %v239
    %v438 = vunpack.c.l.b16 %v240
    %v439 = vunpack.c.l.b16 %v241
    %v440 = vunpack.c.l.b16 %v242
    %v441 = vpack.c.b16 %v438, %v437
    %v442 = vpack.c.b16 %v440, %v439
    %vm445 = vcmask 261120
    %v447 = vsel %vm445, %v432, 0
    %449 = vmatprep.subr.bf16.mxu0 0
    %450 = vmatpush1.bf16.msra.mxu0 %v441
    %451 = vmatprep.subr.bf16.mxu0 0
    %452 = vmatpush1.bf16.msra.mxu0 %v442
    %453 = vmatprep.subr.bf16.mxu0 0
    %454 = vmatpush1.bf16.msra.mxu0 0
    %455 = vmatprep.subr.bf16.mxu0 0
    %456 = vmatpush1.bf16.msra.mxu0 0
    %457 = vmatprep.subr.bf16.mxu0 0
    %458 = vmatpush1.bf16.msra.mxu0 0
    %459 = vmatprep.subr.bf16.mxu0 0
    %460 = vmatpush1.bf16.msra.mxu0 0
    %461 = vmatprep.subr.bf16.mxu0 0
    %462 = vmatpush1.bf16.msra.mxu0 0
    %463 = vmatprep.subr.bf16.mxu0 0
    %464 = vmatpush1.bf16.msra.mxu0 0
    %465 = vmatprep.subr.bf16.mxu0 0
    %466 = vmatpush1.bf16.msra.mxu0 0
    %467 = vmatprep.subr.bf16.mxu0 0
    %468 = vmatpush1.bf16.msra.mxu0 0
    %469 = vmatprep.subr.bf16.mxu0 0
    %470 = vmatpush1.bf16.msra.mxu0 0
    %471 = vmatprep.subr.bf16.mxu0 0
    %472 = vmatpush1.bf16.msra.mxu0 0
    %473 = vmatprep.subr.bf16.mxu0 0
    %474 = vmatpush1.bf16.msra.mxu0 0
    %475 = vmatprep.subr.bf16.mxu0 0
    %476 = vmatpush1.bf16.msra.mxu0 0
    %477 = vmatprep.subr.bf16.mxu0 0
    %478 = vmatpush1.bf16.msra.mxu0 0
    %479 = vmatprep.subr.bf16.mxu0 0
    %480 = vmatpush1.bf16.msra.mxu0 0
    %481 = vmatprep.mubr.bf16.mxu0 0
    %482 = vmatmul.mubr.bf16.gmra.mrb[0].mxu0 %v447
    %v483 = vpop.f32.mrb[0].mxu0
    %v484 = vadd.f32 0.0, %v483
    %v485 = vpop.f32.mrb[0].mxu0
    %v486 = vpop.f32.mrb[0].mxu0
    %v487 = vadd.f32 0.0, %v486
    %v488 = vpop.f32.mrb[0].mxu0
    %489 = vdwg.mxu0
    %v494 = vunpack.c.l.b16 %v44
    %v495 = vunpack.c.l.b16 %v45
    %v496 = vunpack.c.l.b16 %v46
    %v497 = vunpack.c.l.b16 %v47
    %v498 = vpack.c.b16 %v495, %v494
    %v499 = vpack.c.b16 %v497, %v496
    %v503 = vsel %vm445, %v237, 0
    %505 = vmatprep.subr.bf16.mxu0 0
    %506 = vmatpush1.bf16.msra.mxu0 %v498
    %507 = vmatprep.subr.bf16.mxu0 0
    %508 = vmatpush1.bf16.msra.mxu0 %v499
    %509 = vmatprep.subr.bf16.mxu0 0
    %510 = vmatpush1.bf16.msra.mxu0 0
    %511 = vmatprep.subr.bf16.mxu0 0
    %512 = vmatpush1.bf16.msra.mxu0 0
    %513 = vmatprep.subr.bf16.mxu0 0
    %514 = vmatpush1.bf16.msra.mxu0 0
    %515 = vmatprep.subr.bf16.mxu0 0
    %516 = vmatpush1.bf16.msra.mxu0 0
    %517 = vmatprep.subr.bf16.mxu0 0
    %518 = vmatpush1.bf16.msra.mxu0 0
    %519 = vmatprep.subr.bf16.mxu0 0
    %520 = vmatpush1.bf16.msra.mxu0 0
    %521 = vmatprep.subr.bf16.mxu0 0
    %522 = vmatpush1.bf16.msra.mxu0 0
    %523 = vmatprep.subr.bf16.mxu0 0
    %524 = vmatpush1.bf16.msra.mxu0 0
    %525 = vmatprep.subr.bf16.mxu0 0
    %526 = vmatpush1.bf16.msra.mxu0 0
    %527 = vmatprep.subr.bf16.mxu0 0
    %528 = vmatpush1.bf16.msra.mxu0 0
    %529 = vmatprep.subr.bf16.mxu0 0
    %530 = vmatpush1.bf16.msra.mxu0 0
    %531 = vmatprep.subr.bf16.mxu0 0
    %532 = vmatpush1.bf16.msra.mxu0 0
    %533 = vmatprep.subr.bf16.mxu0 0
    %534 = vmatpush1.bf16.msra.mxu0 0
    %535 = vmatprep.subr.bf16.mxu0 0
    %536 = vmatpush1.bf16.msra.mxu0 0
    %537 = vmatprep.mubr.bf16.mxu0 0
    %538 = vmatmul.mubr.bf16.gmra.mrb[0].mxu0 %v503
    %v539 = vpop.f32.mrb[0].mxu0
    %v540 = vadd.f32 %v484, %v539
    %v541 = vpop.f32.mrb[0].mxu0
    %v542 = vpop.f32.mrb[0].mxu0
    %v543 = vadd.f32 %v487, %v542
    %v544 = vpop.f32.mrb[0].mxu0
    %545 = vdwg.mxu0
    %s546 = scalar_lea.vmem %s1, 32
    %v547 = vld [vmem:[%s546] sm:$0xf]
    %v548 = vld [vmem:[%s546 + $0x4] sm:$0xf]
    %v549 = vld [vmem:[%s546 + $0x8] sm:$0xf]
    %v550 = vld [vmem:[%s546 + $0xc] sm:$0xf]
    %v553 = vcombine.high %v36, %v36
    %v555 = vunpack.c.l.s4 1966171168
    %v556 = vunpack.c.0.s8 %v555
    %v557 = vlaneseq
    %v558 = vshrl.u32 %v557, 7
    %v559 = vsub.s32 %v556, %v558
    %v560 = vrot.slane %v36, %v559
    %v562 = vunpack.c.l.s4 1966171168
    %v563 = vunpack.c.0.s8 %v562
    %v564 = vlaneseq
    %v565 = vshrl.u32 %v564, 7
    %v566 = vsub.s32 %v563, %v565
    %v567 = vrot.slane %v553, %v566
    %v568 = vcombine.high %v560, %v560
    %v569 = vcombine.high %v567, %v567
    %v571 = vunpack.c.l.s4 1966171168
    %v572 = vunpack.c.0.s8 %v571
    %v573 = vlaneseq
    %v574 = vshrl.u32 %v573, 7
    %v575 = vsub.s32 %v572, %v574
    %v576 = vrot.slane %v560, %v575
    %v578 = vunpack.c.l.s4 1966171168
    %v579 = vunpack.c.0.s8 %v578
    %v580 = vlaneseq
    %v581 = vshrl.u32 %v580, 7
    %v582 = vsub.s32 %v579, %v581
    %v583 = vrot.slane %v567, %v582
    %v585 = vunpack.c.l.s4 1966171168
    %v586 = vunpack.c.0.s8 %v585
    %v587 = vlaneseq
    %v588 = vshrl.u32 %v587, 7
    %v589 = vsub.s32 %v586, %v588
    %v590 = vrot.slane %v568, %v589
    %v592 = vunpack.c.l.s4 1966171168
    %v593 = vunpack.c.0.s8 %v592
    %v594 = vlaneseq
    %v595 = vshrl.u32 %v594, 7
    %v596 = vsub.s32 %v593, %v595
    %v597 = vrot.slane %v569, %v596
    %v598 = vcombine.high %v576, %v576
    %v599 = vcombine.high %v583, %v583
    %v600 = vcombine.high %v590, %v590
    %v601 = vcombine.high %v40, %v40
    %v603 = vunpack.c.l.s4 1966171168
    %v604 = vunpack.c.0.s8 %v603
    %v605 = vlaneseq
    %v606 = vshrl.u32 %v605, 7
    %v607 = vsub.s32 %v604, %v606
    %v608 = vrot.slane %v40, %v607
    %v610 = vunpack.c.l.s4 1966171168
    %v611 = vunpack.c.0.s8 %v610
    %v612 = vlaneseq
    %v613 = vshrl.u32 %v612, 7
    %v614 = vsub.s32 %v611, %v613
    %v615 = vrot.slane %v601, %v614
    %v616 = vcombine.high %v608, %v608
    %v617 = vcombine.high %v615, %v615
    %v619 = vunpack.c.l.s4 1966171168
    %v620 = vunpack.c.0.s8 %v619
    %v621 = vlaneseq
    %v622 = vshrl.u32 %v621, 7
    %v623 = vsub.s32 %v620, %v622
    %v624 = vrot.slane %v608, %v623
    %v626 = vunpack.c.l.s4 1966171168
    %v627 = vunpack.c.0.s8 %v626
    %v628 = vlaneseq
    %v629 = vshrl.u32 %v628, 7
    %v630 = vsub.s32 %v627, %v629
    %v631 = vrot.slane %v615, %v630
    %v633 = vunpack.c.l.s4 1966171168
    %v634 = vunpack.c.0.s8 %v633
    %v635 = vlaneseq
    %v636 = vshrl.u32 %v635, 7
    %v637 = vsub.s32 %v634, %v636
    %v638 = vrot.slane %v616, %v637
    %v640 = vunpack.c.l.s4 1966171168
    %v641 = vunpack.c.0.s8 %v640
    %v642 = vlaneseq
    %v643 = vshrl.u32 %v642, 7
    %v644 = vsub.s32 %v641, %v643
    %v645 = vrot.slane %v617, %v644
    %v646 = vcombine.high %v624, %v624
    %v647 = vcombine.high %v631, %v631
    %v648 = vcombine.high %v638, %v638
    %v649 = vcombine.low %v576, %v590
    %v650 = vcombine.low %v598, %v600
    %v651 = vcombine.low %v583, %v597
    %v652 = vcombine.low %v599, %v624
    %v654 = vunpack.c.l.s4 1966171168
    %v655 = vunpack.c.0.s8 %v654
    %v656 = vlaneseq
    %v657 = vshrl.u32 %v656, 7
    %v658 = vsub.s32 %v655, %v657
    %v659 = vrot.slane %v649, %v658
    %v661 = vunpack.c.l.s4 1966171168
    %v662 = vunpack.c.0.s8 %v661
    %v663 = vlaneseq
    %v664 = vshrl.u32 %v663, 7
    %v665 = vsub.s32 %v662, %v664
    %v666 = vrot.slane %v650, %v665
    %v668 = vunpack.c.l.s4 1966171168
    %v669 = vunpack.c.0.s8 %v668
    %v670 = vlaneseq
    %v671 = vshrl.u32 %v670, 7
    %v672 = vsub.s32 %v669, %v671
    %v673 = vrot.slane %v651, %v672
    %v675 = vunpack.c.l.s4 1966171168
    %v676 = vunpack.c.0.s8 %v675
    %v677 = vlaneseq
    %v678 = vshrl.u32 %v677, 7
    %v679 = vsub.s32 %v676, %v678
    %v680 = vrot.slane %v652, %v679
    %v681 = vcombine.low %v659, %v666
    %v682 = vcombine.low %v673, %v680
    %v684 = vunpack.c.l.s4 1966171168
    %v685 = vunpack.c.0.s8 %v684
    %v686 = vlaneseq
    %v687 = vshrl.u32 %v686, 7
    %v688 = vsub.s32 %v685, %v687
    %v689 = vrot.slane %v681, %v688
    %v691 = vunpack.c.l.s4 1966171168
    %v692 = vunpack.c.0.s8 %v691
    %v693 = vlaneseq
    %v694 = vshrl.u32 %v693, 7
    %v695 = vsub.s32 %v692, %v694
    %v696 = vrot.slane %v682, %v695
    %v697 = vcombine.low %v689, %v696
    %v698 = vcombine.low %v638, %v646
    %v699 = vcombine.low %v648, %v631
    %v700 = vcombine.low %v645, %v647
    %v702 = vunpack.c.l.s4 1966171168
    %v703 = vunpack.c.0.s8 %v702
    %v704 = vlaneseq
    %v705 = vshrl.u32 %v704, 7
    %v706 = vsub.s32 %v703, %v705
    %v707 = vrot.slane %v698, %v706
    %v709 = vunpack.c.l.s4 1966171168
    %v710 = vunpack.c.0.s8 %v709
    %v711 = vlaneseq
    %v712 = vshrl.u32 %v711, 7
    %v713 = vsub.s32 %v710, %v712
    %v714 = vrot.slane %v699, %v713
    %v716 = vunpack.c.l.s4 1966171168
    %v717 = vunpack.c.0.s8 %v716
    %v718 = vlaneseq
    %v719 = vshrl.u32 %v718, 7
    %v720 = vsub.s32 %v717, %v719
    %v721 = vrot.slane %v700, %v720
    %v722 = vcombine.low %v707, %v714
    %v724 = vunpack.c.l.s4 1966171168
    %v725 = vunpack.c.0.s8 %v724
    %v726 = vlaneseq
    %v727 = vshrl.u32 %v726, 7
    %v728 = vsub.s32 %v725, %v727
    %v729 = vrot.slane %v722, %v728
    %v731 = vunpack.c.l.s4 1966171168
    %v732 = vunpack.c.0.s8 %v731
    %v733 = vlaneseq
    %v734 = vshrl.u32 %v733, 7
    %v735 = vsub.s32 %v732, %v734
    %v736 = vrot.slane %v721, %v735
    %v737 = vcombine.low %v729, %v736
    %v740 = vpack.c.bf16 %v737, %v697
    %v745 = vunpack.c.l.b16 %v547
    %v746 = vunpack.c.l.b16 %v548
    %v747 = vunpack.c.l.b16 %v549
    %v748 = vunpack.c.l.b16 %v550
    %v749 = vpack.c.b16 %v746, %v745
    %v750 = vpack.c.b16 %v748, %v747
    %v754 = vsel %vm445, %v740, 0
    %756 = vmatprep.subr.bf16.mxu0 0
    %757 = vmatpush1.bf16.msra.mxu0 %v749
    %758 = vmatprep.subr.bf16.mxu0 0
    %759 = vmatpush1.bf16.msra.mxu0 %v750
    %760 = vmatprep.subr.bf16.mxu0 0
    %761 = vmatpush1.bf16.msra.mxu0 0
    %762 = vmatprep.subr.bf16.mxu0 0
    %763 = vmatpush1.bf16.msra.mxu0 0
    %764 = vmatprep.subr.bf16.mxu0 0
    %765 = vmatpush1.bf16.msra.mxu0 0
    %766 = vmatprep.subr.bf16.mxu0 0
    %767 = vmatpush1.bf16.msra.mxu0 0
    %768 = vmatprep.subr.bf16.mxu0 0
    %769 = vmatpush1.bf16.msra.mxu0 0
    %770 = vmatprep.subr.bf16.mxu0 0
    %771 = vmatpush1.bf16.msra.mxu0 0
    %772 = vmatprep.subr.bf16.mxu0 0
    %773 = vmatpush1.bf16.msra.mxu0 0
    %774 = vmatprep.subr.bf16.mxu0 0
    %775 = vmatpush1.bf16.msra.mxu0 0
    %776 = vmatprep.subr.bf16.mxu0 0
    %777 = vmatpush1.bf16.msra.mxu0 0
    %778 = vmatprep.subr.bf16.mxu0 0
    %779 = vmatpush1.bf16.msra.mxu0 0
    %780 = vmatprep.subr.bf16.mxu0 0
    %781 = vmatpush1.bf16.msra.mxu0 0
    %782 = vmatprep.subr.bf16.mxu0 0
    %783 = vmatpush1.bf16.msra.mxu0 0
    %784 = vmatprep.subr.bf16.mxu0 0
    %785 = vmatpush1.bf16.msra.mxu0 0
    %786 = vmatprep.subr.bf16.mxu0 0
    %787 = vmatpush1.bf16.msra.mxu0 0
    %788 = vmatprep.mubr.bf16.mxu0 0
    %789 = vmatmul.mubr.bf16.gmra.mrb[0].mxu0 %v754
    %v790 = vpop.f32.mrb[0].mxu0
    %v791 = vadd.f32 0.0, %v790
    %v792 = vpop.f32.mrb[0].mxu0
    %v793 = vpop.f32.mrb[0].mxu0
    %v794 = vadd.f32 0.0, %v793
    %v795 = vpop.f32.mrb[0].mxu0
    %796 = vdwg.mxu0
    %v797 = vadd.f32 %v540, %v791
    %v798 = vadd.f32 %v543, %v794
    %s799 = scalar_lea.vmem %s1, 48
    %v800 = vld [vmem:[%s799] sm:$0xf]
    %v801 = vld [vmem:[%s799 + $0x4] sm:$0xf]
    %v802 = vld [vmem:[%s799 + $0x8] sm:$0xf]
    %v803 = vld [vmem:[%s799 + $0xc] sm:$0xf]
    %v806 = vcombine.high %v37, %v37
    %v808 = vunpack.c.l.s4 1966171168
    %v809 = vunpack.c.0.s8 %v808
    %v810 = vlaneseq
    %v811 = vshrl.u32 %v810, 7
    %v812 = vsub.s32 %v809, %v811
    %v813 = vrot.slane %v37, %v812
    %v815 = vunpack.c.l.s4 1966171168
    %v816 = vunpack.c.0.s8 %v815
    %v817 = vlaneseq
    %v818 = vshrl.u32 %v817, 7
    %v819 = vsub.s32 %v816, %v818
    %v820 = vrot.slane %v806, %v819
    %v821 = vcombine.high %v813, %v813
    %v822 = vcombine.high %v820, %v820
    %v824 = vunpack.c.l.s4 1966171168
    %v825 = vunpack.c.0.s8 %v824
    %v826 = vlaneseq
    %v827 = vshrl.u32 %v826, 7
    %v828 = vsub.s32 %v825, %v827
    %v829 = vrot.slane %v813, %v828
    %v831 = vunpack.c.l.s4 1966171168
    %v832 = vunpack.c.0.s8 %v831
    %v833 = vlaneseq
    %v834 = vshrl.u32 %v833, 7
    %v835 = vsub.s32 %v832, %v834
    %v836 = vrot.slane %v820, %v835
    %v838 = vunpack.c.l.s4 1966171168
    %v839 = vunpack.c.0.s8 %v838
    %v840 = vlaneseq
    %v841 = vshrl.u32 %v840, 7
    %v842 = vsub.s32 %v839, %v841
    %v843 = vrot.slane %v821, %v842
    %v845 = vunpack.c.l.s4 1966171168
    %v846 = vunpack.c.0.s8 %v845
    %v847 = vlaneseq
    %v848 = vshrl.u32 %v847, 7
    %v849 = vsub.s32 %v846, %v848
    %v850 = vrot.slane %v822, %v849
    %v851 = vcombine.high %v829, %v829
    %v852 = vcombine.high %v836, %v836
    %v853 = vcombine.high %v843, %v843
    %v854 = vcombine.high %v41, %v41
    %v856 = vunpack.c.l.s4 1966171168
    %v857 = vunpack.c.0.s8 %v856
    %v858 = vlaneseq
    %v859 = vshrl.u32 %v858, 7
    %v860 = vsub.s32 %v857, %v859
    %v861 = vrot.slane %v41, %v860
    %v863 = vunpack.c.l.s4 1966171168
    %v864 = vunpack.c.0.s8 %v863
    %v865 = vlaneseq
    %v866 = vshrl.u32 %v865, 7
    %v867 = vsub.s32 %v864, %v866
    %v868 = vrot.slane %v854, %v867
    %v869 = vcombine.high %v861, %v861
    %v870 = vcombine.high %v868, %v868
    %v872 = vunpack.c.l.s4 1966171168
    %v873 = vunpack.c.0.s8 %v872
    %v874 = vlaneseq
    %v875 = vshrl.u32 %v874, 7
    %v876 = vsub.s32 %v873, %v875
    %v877 = vrot.slane %v861, %v876
    %v879 = vunpack.c.l.s4 1966171168
    %v880 = vunpack.c.0.s8 %v879
    %v881 = vlaneseq
    %v882 = vshrl.u32 %v881, 7
    %v883 = vsub.s32 %v880, %v882
    %v884 = vrot.slane %v868, %v883
    %v886 = vunpack.c.l.s4 1966171168
    %v887 = vunpack.c.0.s8 %v886
    %v888 = vlaneseq
    %v889 = vshrl.u32 %v888, 7
    %v890 = vsub.s32 %v887, %v889
    %v891 = vrot.slane %v869, %v890
    %v893 = vunpack.c.l.s4 1966171168
    %v894 = vunpack.c.0.s8 %v893
    %v895 = vlaneseq
    %v896 = vshrl.u32 %v895, 7
    %v897 = vsub.s32 %v894, %v896
    %v898 = vrot.slane %v870, %v897
    %v899 = vcombine.high %v877, %v877
    %v900 = vcombine.high %v884, %v884
    %v901 = vcombine.high %v891, %v891
    %v902 = vcombine.low %v829, %v843
    %v903 = vcombine.low %v851, %v853
    %v904 = vcombine.low %v836, %v850
    %v905 = vcombine.low %v852, %v877
    %v907 = vunpack.c.l.s4 1966171168
    %v908 = vunpack.c.0.s8 %v907
    %v909 = vlaneseq
    %v910 = vshrl.u32 %v909, 7
    %v911 = vsub.s32 %v908, %v910
    %v912 = vrot.slane %v902, %v911
    %v914 = vunpack.c.l.s4 1966171168
    %v915 = vunpack.c.0.s8 %v914
    %v916 = vlaneseq
    %v917 = vshrl.u32 %v916, 7
    %v918 = vsub.s32 %v915, %v917
    %v919 = vrot.slane %v903, %v918
    %v921 = vunpack.c.l.s4 1966171168
    %v922 = vunpack.c.0.s8 %v921
    %v923 = vlaneseq
    %v924 = vshrl.u32 %v923, 7
    %v925 = vsub.s32 %v922, %v924
    %v926 = vrot.slane %v904, %v925
    %v928 = vunpack.c.l.s4 1966171168
    %v929 = vunpack.c.0.s8 %v928
    %v930 = vlaneseq
    %v931 = vshrl.u32 %v930, 7
    %v932 = vsub.s32 %v929, %v931
    %v933 = vrot.slane %v905, %v932
    %v934 = vcombine.low %v912, %v919
    %v935 = vcombine.low %v926, %v933
    %v937 = vunpack.c.l.s4 1966171168
    %v938 = vunpack.c.0.s8 %v937
    %v939 = vlaneseq
    %v940 = vshrl.u32 %v939, 7
    %v941 = vsub.s32 %v938, %v940
    %v942 = vrot.slane %v934, %v941
    %v944 = vunpack.c.l.s4 1966171168
    %v945 = vunpack.c.0.s8 %v944
    %v946 = vlaneseq
    %v947 = vshrl.u32 %v946, 7
    %v948 = vsub.s32 %v945, %v947
    %v949 = vrot.slane %v935, %v948
    %v950 = vcombine.low %v942, %v949
    %v951 = vcombine.low %v891, %v899
    %v952 = vcombine.low %v901, %v884
    %v953 = vcombine.low %v898, %v900
    %v955 = vunpack.c.l.s4 1966171168
    %v956 = vunpack.c.0.s8 %v955
    %v957 = vlaneseq
    %v958 = vshrl.u32 %v957, 7
    %v959 = vsub.s32 %v956, %v958
    %v960 = vrot.slane %v951, %v959
    %v962 = vunpack.c.l.s4 1966171168
    %v963 = vunpack.c.0.s8 %v962
    %v964 = vlaneseq
    %v965 = vshrl.u32 %v964, 7
    %v966 = vsub.s32 %v963, %v965
    %v967 = vrot.slane %v952, %v966
    %v969 = vunpack.c.l.s4 1966171168
    %v970 = vunpack.c.0.s8 %v969
    %v971 = vlaneseq
    %v972 = vshrl.u32 %v971, 7
    %v973 = vsub.s32 %v970, %v972
    %v974 = vrot.slane %v953, %v973
    %v975 = vcombine.low %v960, %v967
    %v977 = vunpack.c.l.s4 1966171168
    %v978 = vunpack.c.0.s8 %v977
    %v979 = vlaneseq
    %v980 = vshrl.u32 %v979, 7
    %v981 = vsub.s32 %v978, %v980
    %v982 = vrot.slane %v975, %v981
    %v984 = vunpack.c.l.s4 1966171168
    %v985 = vunpack.c.0.s8 %v984
    %v986 = vlaneseq
    %v987 = vshrl.u32 %v986, 7
    %v988 = vsub.s32 %v985, %v987
    %v989 = vrot.slane %v974, %v988
    %v990 = vcombine.low %v982, %v989
    %v993 = vpack.c.bf16 %v990, %v950
    %v998 = vunpack.c.l.b16 %v800
    %v999 = vunpack.c.l.b16 %v801
    %v1000 = vunpack.c.l.b16 %v802
    %v1001 = vunpack.c.l.b16 %v803
    %v1002 = vpack.c.b16 %v999, %v998
    %v1003 = vpack.c.b16 %v1001, %v1000
    %v1007 = vsel %vm445, %v993, 0
    %1009 = vmatprep.subr.bf16.mxu0 0
    %1010 = vmatpush1.bf16.msra.mxu0 %v1002
    %1011 = vmatprep.subr.bf16.mxu0 0
    %1012 = vmatpush1.bf16.msra.mxu0 %v1003
    %1013 = vmatprep.subr.bf16.mxu0 0
    %1014 = vmatpush1.bf16.msra.mxu0 0
    %1015 = vmatprep.subr.bf16.mxu0 0
    %1016 = vmatpush1.bf16.msra.mxu0 0
    %1017 = vmatprep.subr.bf16.mxu0 0
    %1018 = vmatpush1.bf16.msra.mxu0 0
    %1019 = vmatprep.subr.bf16.mxu0 0
    %1020 = vmatpush1.bf16.msra.mxu0 0
    %1021 = vmatprep.subr.bf16.mxu0 0
    %1022 = vmatpush1.bf16.msra.mxu0 0
    %1023 = vmatprep.subr.bf16.mxu0 0
    %1024 = vmatpush1.bf16.msra.mxu0 0
    %1025 = vmatprep.subr.bf16.mxu0 0
    %1026 = vmatpush1.bf16.msra.mxu0 0
    %1027 = vmatprep.subr.bf16.mxu0 0
    %1028 = vmatpush1.bf16.msra.mxu0 0
    %1029 = vmatprep.subr.bf16.mxu0 0
    %1030 = vmatpush1.bf16.msra.mxu0 0
    %1031 = vmatprep.subr.bf16.mxu0 0
    %1032 = vmatpush1.bf16.msra.mxu0 0
    %1033 = vmatprep.subr.bf16.mxu0 0
    %1034 = vmatpush1.bf16.msra.mxu0 0
    %1035 = vmatprep.subr.bf16.mxu0 0
    %1036 = vmatpush1.bf16.msra.mxu0 0
    %1037 = vmatprep.subr.bf16.mxu0 0
    %1038 = vmatpush1.bf16.msra.mxu0 0
    %1039 = vmatprep.subr.bf16.mxu0 0
    %1040 = vmatpush1.bf16.msra.mxu0 0
    %1041 = vmatprep.mubr.bf16.mxu0 0
    %1042 = vmatmul.mubr.bf16.gmra.mrb[0].mxu0 %v1007
    %v1043 = vpop.f32.mrb[0].mxu0
    %v1044 = vadd.f32 0.0, %v1043
    %v1045 = vpop.f32.mrb[0].mxu0
    %v1046 = vpop.f32.mrb[0].mxu0
    %v1047 = vadd.f32 0.0, %v1046
    %v1048 = vpop.f32.mrb[0].mxu0
    %1049 = vdwg.mxu0
    %v1050 = vadd.f32 %v797, %v1044
    %v1051 = vadd.f32 %v798, %v1047
    %s1052 = scalar_lea.vmem %s1, 64
    %v1053 = vld [vmem:[%s1052] sm:$0xf]
    %v1054 = vld [vmem:[%s1052 + $0x4] sm:$0xf]
    %v1055 = vld [vmem:[%s1052 + $0x8] sm:$0xf]
    %v1056 = vld [vmem:[%s1052 + $0xc] sm:$0xf]
    %v1057 = vcombine.high %v94, %v94
    %v1058 = vcombine.high %v142, %v142
    %v1059 = vcombine.low %v87, %v95
    %v1060 = vcombine.low %v97, %v80
    %v1061 = vcombine.low %v94, %v96
    %v1062 = vcombine.low %v1057, %v135
    %v1064 = vunpack.c.l.s4 1966171168
    %v1065 = vunpack.c.0.s8 %v1064
    %v1066 = vlaneseq
    %v1067 = vshrl.u32 %v1066, 7
    %v1068 = vsub.s32 %v1065, %v1067
    %v1069 = vrot.slane %v1059, %v1068
    %v1071 = vunpack.c.l.s4 1966171168
    %v1072 = vunpack.c.0.s8 %v1071
    %v1073 = vlaneseq
    %v1074 = vshrl.u32 %v1073, 7
    %v1075 = vsub.s32 %v1072, %v1074
    %v1076 = vrot.slane %v1060, %v1075
    %v1078 = vunpack.c.l.s4 1966171168
    %v1079 = vunpack.c.0.s8 %v1078
    %v1080 = vlaneseq
    %v1081 = vshrl.u32 %v1080, 7
    %v1082 = vsub.s32 %v1079, %v1081
    %v1083 = vrot.slane %v1061, %v1082
    %v1085 = vunpack.c.l.s4 1966171168
    %v1086 = vunpack.c.0.s8 %v1085
    %v1087 = vlaneseq
    %v1088 = vshrl.u32 %v1087, 7
    %v1089 = vsub.s32 %v1086, %v1088
    %v1090 = vrot.slane %v1062, %v1089
    %v1091 = vcombine.low %v1069, %v1076
    %v1092 = vcombine.low %v1083, %v1090
    %v1094 = vunpack.c.l.s4 1966171168
    %v1095 = vunpack.c.0.s8 %v1094
    %v1096 = vlaneseq
    %v1097 = vshrl.u32 %v1096, 7
    %v1098 = vsub.s32 %v1095, %v1097
    %v1099 = vrot.slane %v1091, %v1098
    %v1101 = vunpack.c.l.s4 1966171168
    %v1102 = vunpack.c.0.s8 %v1101
    %v1103 = vlaneseq
    %v1104 = vshrl.u32 %v1103, 7
    %v1105 = vsub.s32 %v1102, %v1104
    %v1106 = vrot.slane %v1092, %v1105
    %v1107 = vcombine.low %v1099, %v1106
    %v1108 = vcombine.low %v143, %v145
    %v1109 = vcombine.low %v128, %v142
    %v1110 = vcombine.low %v144, %v1058
    %v1112 = vunpack.c.l.s4 1966171168
    %v1113 = vunpack.c.0.s8 %v1112
    %v1114 = vlaneseq
    %v1115 = vshrl.u32 %v1114, 7
    %v1116 = vsub.s32 %v1113, %v1115
    %v1117 = vrot.slane %v1108, %v1116
    %v1119 = vunpack.c.l.s4 1966171168
    %v1120 = vunpack.c.0.s8 %v1119
    %v1121 = vlaneseq
    %v1122 = vshrl.u32 %v1121, 7
    %v1123 = vsub.s32 %v1120, %v1122
    %v1124 = vrot.slane %v1109, %v1123
    %v1126 = vunpack.c.l.s4 1966171168
    %v1127 = vunpack.c.0.s8 %v1126
    %v1128 = vlaneseq
    %v1129 = vshrl.u32 %v1128, 7
    %v1130 = vsub.s32 %v1127, %v1129
    %v1131 = vrot.slane %v1110, %v1130
    %v1132 = vcombine.low %v1117, %v1124
    %v1134 = vunpack.c.l.s4 1966171168
    %v1135 = vunpack.c.0.s8 %v1134
    %v1136 = vlaneseq
    %v1137 = vshrl.u32 %v1136, 7
    %v1138 = vsub.s32 %v1135, %v1137
    %v1139 = vrot.slane %v1132, %v1138
    %v1141 = vunpack.c.l.s4 1966171168
    %v1142 = vunpack.c.0.s8 %v1141
    %v1143 = vlaneseq
    %v1144 = vshrl.u32 %v1143, 7
    %v1145 = vsub.s32 %v1142, %v1144
    %v1146 = vrot.slane %v1131, %v1145
    %v1147 = vcombine.low %v1139, %v1146
    %v1150 = vpack.c.bf16 %v1147, %v1107
    %v1155 = vunpack.c.l.b16 %v1053
    %v1156 = vunpack.c.l.b16 %v1054
    %v1157 = vunpack.c.l.b16 %v1055
    %v1158 = vunpack.c.l.b16 %v1056
    %v1159 = vpack.c.b16 %v1156, %v1155
    %v1160 = vpack.c.b16 %v1158, %v1157
    %v1164 = vsel %vm445, %v1150, 0
    %1166 = vmatprep.subr.bf16.mxu0 0
    %1167 = vmatpush1.bf16.msra.mxu0 %v1159
    %1168 = vmatprep.subr.bf16.mxu0 0
    %1169 = vmatpush1.bf16.msra.mxu0 %v1160
    %1170 = vmatprep.subr.bf16.mxu0 0
    %1171 = vmatpush1.bf16.msra.mxu0 0
    %1172 = vmatprep.subr.bf16.mxu0 0
    %1173 = vmatpush1.bf16.msra.mxu0 0
    %1174 = vmatprep.subr.bf16.mxu0 0
    %1175 = vmatpush1.bf16.msra.mxu0 0
    %1176 = vmatprep.subr.bf16.mxu0 0
    %1177 = vmatpush1.bf16.msra.mxu0 0
    %1178 = vmatprep.subr.bf16.mxu0 0
    %1179 = vmatpush1.bf16.msra.mxu0 0
    %1180 = vmatprep.subr.bf16.mxu0 0
    %1181 = vmatpush1.bf16.msra.mxu0 0
    %1182 = vmatprep.subr.bf16.mxu0 0
    %1183 = vmatpush1.bf16.msra.mxu0 0
    %1184 = vmatprep.subr.bf16.mxu0 0
    %1185 = vmatpush1.bf16.msra.mxu0 0
    %1186 = vmatprep.subr.bf16.mxu0 0
    %1187 = vmatpush1.bf16.msra.mxu0 0
    %1188 = vmatprep.subr.bf16.mxu0 0
    %1189 = vmatpush1.bf16.msra.mxu0 0
    %1190 = vmatprep.subr.bf16.mxu0 0
    %1191 = vmatpush1.bf16.msra.mxu0 0
    %1192 = vmatprep.subr.bf16.mxu0 0
    %1193 = vmatpush1.bf16.msra.mxu0 0
    %1194 = vmatprep.subr.bf16.mxu0 0
    %1195 = vmatpush1.bf16.msra.mxu0 0
    %1196 = vmatprep.subr.bf16.mxu0 0
    %1197 = vmatpush1.bf16.msra.mxu0 0
    %1198 = vmatprep.mubr.bf16.mxu0 0
    %1199 = vmatmul.mubr.bf16.gmra.mrb[0].mxu0 %v1164
    %v1200 = vpop.f32.mrb[0].mxu0
    %v1201 = vadd.f32 0.0, %v1200
    %v1202 = vpop.f32.mrb[0].mxu0
    %v1203 = vpop.f32.mrb[0].mxu0
    %v1204 = vadd.f32 0.0, %v1203
    %v1205 = vpop.f32.mrb[0].mxu0
    %1206 = vdwg.mxu0
    %v1207 = vadd.f32 %v1050, %v1201
    %v1208 = vadd.f32 %v1051, %v1204
    %v1210 = vlaneseq
    %v1211 = vshrl.u32 %v1210, 7
    %v1212 = vsub.s32 0, %v1211
    %v1213 = vrot.slane %v42, %v1212
    %v1215 = vadd.f32 %v1207, %v1213
    %v1216 = vadd.f32 %v1208, %v1213
    %v1217 = vmax.f32 %v1215, 0.0
    %v1218 = vmax.f32 %v1216, 0.0
    %v1221 = vcombine.high %v1217, %v1217
    %v1223 = vunpack.c.l.s4 1966171168
    %v1224 = vunpack.c.0.s8 %v1223
    %v1225 = vlaneseq
    %v1226 = vshrl.u32 %v1225, 7
    %v1227 = vsub.s32 %v1224, %v1226
    %v1228 = vrot.slane %v1217, %v1227
    %v1230 = vunpack.c.l.s4 1966171168
    %v1231 = vunpack.c.0.s8 %v1230
    %v1232 = vlaneseq
    %v1233 = vshrl.u32 %v1232, 7
    %v1234 = vsub.s32 %v1231, %v1233
    %v1235 = vrot.slane %v1221, %v1234
    %v1236 = vcombine.high %v1228, %v1228
    %v1237 = vcombine.high %v1235, %v1235
    %v1239 = vunpack.c.l.s4 1966171168
    %v1240 = vunpack.c.0.s8 %v1239
    %v1241 = vlaneseq
    %v1242 = vshrl.u32 %v1241, 7
    %v1243 = vsub.s32 %v1240, %v1242
    %v1244 = vrot.slane %v1228, %v1243
    %v1246 = vunpack.c.l.s4 1966171168
    %v1247 = vunpack.c.0.s8 %v1246
    %v1248 = vlaneseq
    %v1249 = vshrl.u32 %v1248, 7
    %v1250 = vsub.s32 %v1247, %v1249
    %v1251 = vrot.slane %v1235, %v1250
    %v1253 = vunpack.c.l.s4 1966171168
    %v1254 = vunpack.c.0.s8 %v1253
    %v1255 = vlaneseq
    %v1256 = vshrl.u32 %v1255, 7
    %v1257 = vsub.s32 %v1254, %v1256
    %v1258 = vrot.slane %v1236, %v1257
    %v1260 = vunpack.c.l.s4 1966171168
    %v1261 = vunpack.c.0.s8 %v1260
    %v1262 = vlaneseq
    %v1263 = vshrl.u32 %v1262, 7
    %v1264 = vsub.s32 %v1261, %v1263
    %v1265 = vrot.slane %v1237, %v1264
    %v1266 = vcombine.high %v1244, %v1244
    %v1267 = vcombine.high %v1251, %v1251
    %v1268 = vcombine.high %v1258, %v1258
    %v1269 = vcombine.high %v1265, %v1265
    %v1270 = vcombine.high %v1218, %v1218
    %v1272 = vunpack.c.l.s4 1966171168
    %v1273 = vunpack.c.0.s8 %v1272
    %v1274 = vlaneseq
    %v1275 = vshrl.u32 %v1274, 7
    %v1276 = vsub.s32 %v1273, %v1275
    %v1277 = vrot.slane %v1218, %v1276
    %v1279 = vunpack.c.l.s4 1966171168
    %v1280 = vunpack.c.0.s8 %v1279
    %v1281 = vlaneseq
    %v1282 = vshrl.u32 %v1281, 7
    %v1283 = vsub.s32 %v1280, %v1282
    %v1284 = vrot.slane %v1270, %v1283
    %v1285 = vcombine.high %v1277, %v1277
    %v1286 = vcombine.high %v1284, %v1284
    %v1288 = vunpack.c.l.s4 1966171168
    %v1289 = vunpack.c.0.s8 %v1288
    %v1290 = vlaneseq
    %v1291 = vshrl.u32 %v1290, 7
    %v1292 = vsub.s32 %v1289, %v1291
    %v1293 = vrot.slane %v1277, %v1292
    %v1295 = vunpack.c.l.s4 1966171168
    %v1296 = vunpack.c.0.s8 %v1295
    %v1297 = vlaneseq
    %v1298 = vshrl.u32 %v1297, 7
    %v1299 = vsub.s32 %v1296, %v1298
    %v1300 = vrot.slane %v1284, %v1299
    %v1302 = vunpack.c.l.s4 1966171168
    %v1303 = vunpack.c.0.s8 %v1302
    %v1304 = vlaneseq
    %v1305 = vshrl.u32 %v1304, 7
    %v1306 = vsub.s32 %v1303, %v1305
    %v1307 = vrot.slane %v1285, %v1306
    %v1309 = vunpack.c.l.s4 1966171168
    %v1310 = vunpack.c.0.s8 %v1309
    %v1311 = vlaneseq
    %v1312 = vshrl.u32 %v1311, 7
    %v1313 = vsub.s32 %v1310, %v1312
    %v1314 = vrot.slane %v1286, %v1313
    %v1315 = vcombine.high %v1293, %v1293
    %v1316 = vcombine.high %v1307, %v1307
    %1331 = vmatprep.subr.bf16.mxu0 0
    %1332 = vmatpush1.bf16.msra.mxu0 %v441
    %1333 = vmatprep.subr.bf16.mxu0 0
    %1334 = vmatpush1.bf16.msra.mxu0 %v442
    %1335 = vmatprep.subr.bf16.mxu0 0
    %1336 = vmatpush1.bf16.msra.mxu0 0
    %1337 = vmatprep.subr.bf16.mxu0 0
    %1338 = vmatpush1.bf16.msra.mxu0 0
    %1339 = vmatprep.subr.bf16.mxu0 0
    %1340 = vmatpush1.bf16.msra.mxu0 0
    %1341 = vmatprep.subr.bf16.mxu0 0
    %1342 = vmatpush1.bf16.msra.mxu0 0
    %1343 = vmatprep.subr.bf16.mxu0 0
    %1344 = vmatpush1.bf16.msra.mxu0 0
    %1345 = vmatprep.subr.bf16.mxu0 0
    %1346 = vmatpush1.bf16.msra.mxu0 0
    %1347 = vmatprep.subr.bf16.mxu0 0
    %1348 = vmatpush1.bf16.msra.mxu0 0
    %1349 = vmatprep.subr.bf16.mxu0 0
    %1350 = vmatpush1.bf16.msra.mxu0 0
    %1351 = vmatprep.subr.bf16.mxu0 0
    %1352 = vmatpush1.bf16.msra.mxu0 0
    %1353 = vmatprep.subr.bf16.mxu0 0
    %1354 = vmatpush1.bf16.msra.mxu0 0
    %1355 = vmatprep.subr.bf16.mxu0 0
    %1356 = vmatpush1.bf16.msra.mxu0 0
    %1357 = vmatprep.subr.bf16.mxu0 0
    %1358 = vmatpush1.bf16.msra.mxu0 0
    %1359 = vmatprep.subr.bf16.mxu0 0
    %1360 = vmatpush1.bf16.msra.mxu0 0
    %1361 = vmatprep.subr.bf16.mxu0 0
    %1362 = vmatpush1.bf16.msra.mxu0 0
    %1363 = vmatprep.mubr.bf16.mxu0 0
    %1364 = vmatmul.mubr.bf16.gmra.mrb[0].mxu0 %v754
    %v1365 = vpop.f32.mrb[0].mxu0
    %v1366 = vadd.f32 0.0, %v1365
    %v1367 = vpop.f32.mrb[0].mxu0
    %v1368 = vpop.f32.mrb[0].mxu0
    %v1369 = vadd.f32 0.0, %v1368
    %v1370 = vpop.f32.mrb[0].mxu0
    %1371 = vdwg.mxu0
    %1372 = vmatprep.subr.bf16.mxu0 0
    %1373 = vmatpush1.bf16.msra.mxu0 %v498
    %1374 = vmatprep.subr.bf16.mxu0 0
    %1375 = vmatpush1.bf16.msra.mxu0 %v499
    %1376 = vmatprep.subr.bf16.mxu0 0
    %1377 = vmatpush1.bf16.msra.mxu0 0
    %1378 = vmatprep.subr.bf16.mxu0 0
    %1379 = vmatpush1.bf16.msra.mxu0 0
    %1380 = vmatprep.subr.bf16.mxu0 0
    %1381 = vmatpush1.bf16.msra.mxu0 0
    %1382 = vmatprep.subr.bf16.mxu0 0
    %1383 = vmatpush1.bf16.msra.mxu0 0
    %1384 = vmatprep.subr.bf16.mxu0 0
    %1385 = vmatpush1.bf16.msra.mxu0 0
    %1386 = vmatprep.subr.bf16.mxu0 0
    %1387 = vmatpush1.bf16.msra.mxu0 0
    %1388 = vmatprep.subr.bf16.mxu0 0
    %1389 = vmatpush1.bf16.msra.mxu0 0
    %1390 = vmatprep.subr.bf16.mxu0 0
    %1391 = vmatpush1.bf16.msra.mxu0 0
    %1392 = vmatprep.subr.bf16.mxu0 0
    %1393 = vmatpush1.bf16.msra.mxu0 0
    %1394 = vmatprep.subr.bf16.mxu0 0
    %1395 = vmatpush1.bf16.msra.mxu0 0
    %1396 = vmatprep.subr.bf16.mxu0 0
    %1397 = vmatpush1.bf16.msra.mxu0 0
    %1398 = vmatprep.subr.bf16.mxu0 0
    %1399 = vmatpush1.bf16.msra.mxu0 0
    %1400 = vmatprep.subr.bf16.mxu0 0
    %1401 = vmatpush1.bf16.msra.mxu0 0
    %1402 = vmatprep.subr.bf16.mxu0 0
    %1403 = vmatpush1.bf16.msra.mxu0 0
    %1404 = vmatprep.mubr.bf16.mxu0 0
    %1405 = vmatmul.mubr.bf16.gmra.mrb[0].mxu0 %v447
    %v1406 = vpop.f32.mrb[0].mxu0
    %v1407 = vadd.f32 %v1366, %v1406
    %v1408 = vpop.f32.mrb[0].mxu0
    %v1409 = vpop.f32.mrb[0].mxu0
    %v1410 = vadd.f32 %v1369, %v1409
    %v1411 = vpop.f32.mrb[0].mxu0
    %1412 = vdwg.mxu0
    %1413 = vmatprep.subr.bf16.mxu0 0
    %1414 = vmatpush1.bf16.msra.mxu0 %v749
    %1415 = vmatprep.subr.bf16.mxu0 0
    %1416 = vmatpush1.bf16.msra.mxu0 %v750
    %1417 = vmatprep.subr.bf16.mxu0 0
    %1418 = vmatpush1.bf16.msra.mxu0 0
    %1419 = vmatprep.subr.bf16.mxu0 0
    %1420 = vmatpush1.bf16.msra.mxu0 0
    %1421 = vmatprep.subr.bf16.mxu0 0
    %1422 = vmatpush1.bf16.msra.mxu0 0
    %1423 = vmatprep.subr.bf16.mxu0 0
    %1424 = vmatpush1.bf16.msra.mxu0 0
    %1425 = vmatprep.subr.bf16.mxu0 0
    %1426 = vmatpush1.bf16.msra.mxu0 0
    %1427 = vmatprep.subr.bf16.mxu0 0
    %1428 = vmatpush1.bf16.msra.mxu0 0
    %1429 = vmatprep.subr.bf16.mxu0 0
    %1430 = vmatpush1.bf16.msra.mxu0 0
    %1431 = vmatprep.subr.bf16.mxu0 0
    %1432 = vmatpush1.bf16.msra.mxu0 0
    %1433 = vmatprep.subr.bf16.mxu0 0
    %1434 = vmatpush1.bf16.msra.mxu0 0
    %1435 = vmatprep.subr.bf16.mxu0 0
    %1436 = vmatpush1.bf16.msra.mxu0 0
    %1437 = vmatprep.subr.bf16.mxu0 0
    %1438 = vmatpush1.bf16.msra.mxu0 0
    %1439 = vmatprep.subr.bf16.mxu0 0
    %1440 = vmatpush1.bf16.msra.mxu0 0
    %1441 = vmatprep.subr.bf16.mxu0 0
    %1442 = vmatpush1.bf16.msra.mxu0 0
    %1443 = vmatprep.subr.bf16.mxu0 0
    %1444 = vmatpush1.bf16.msra.mxu0 0
    %1445 = vmatprep.mubr.bf16.mxu0 0
    %1446 = vmatmul.mubr.bf16.gmra.mrb[0].mxu0 %v1007
    %v1447 = vpop.f32.mrb[0].mxu0
    %v1448 = vadd.f32 0.0, %v1447
    %v1449 = vpop.f32.mrb[0].mxu0
    %v1450 = vpop.f32.mrb[0].mxu0
    %v1451 = vadd.f32 0.0, %v1450
    %v1452 = vpop.f32.mrb[0].mxu0
    %1453 = vdwg.mxu0
    %v1454 = vadd.f32 %v1407, %v1448
    %v1455 = vadd.f32 %v1410, %v1451
    %1456 = vmatprep.subr.bf16.mxu0 0
    %1457 = vmatpush1.bf16.msra.mxu0 %v1002
    %1458 = vmatprep.subr.bf16.mxu0 0
    %1459 = vmatpush1.bf16.msra.mxu0 %v1003
    %1460 = vmatprep.subr.bf16.mxu0 0
    %1461 = vmatpush1.bf16.msra.mxu0 0
    %1462 = vmatprep.subr.bf16.mxu0 0
    %1463 = vmatpush1.bf16.msra.mxu0 0
    %1464 = vmatprep.subr.bf16.mxu0 0
    %1465 = vmatpush1.bf16.msra.mxu0 0
    %1466 = vmatprep.subr.bf16.mxu0 0
    %1467 = vmatpush1.bf16.msra.mxu0 0
    %1468 = vmatprep.subr.bf16.mxu0 0
    %1469 = vmatpush1.bf16.msra.mxu0 0
    %1470 = vmatprep.subr.bf16.mxu0 0
    %1471 = vmatpush1.bf16.msra.mxu0 0
    %1472 = vmatprep.subr.bf16.mxu0 0
    %1473 = vmatpush1.bf16.msra.mxu0 0
    %1474 = vmatprep.subr.bf16.mxu0 0
    %1475 = vmatpush1.bf16.msra.mxu0 0
    %1476 = vmatprep.subr.bf16.mxu0 0
    %1477 = vmatpush1.bf16.msra.mxu0 0
    %1478 = vmatprep.subr.bf16.mxu0 0
    %1479 = vmatpush1.bf16.msra.mxu0 0
    %1480 = vmatprep.subr.bf16.mxu0 0
    %1481 = vmatpush1.bf16.msra.mxu0 0
    %1482 = vmatprep.subr.bf16.mxu0 0
    %1483 = vmatpush1.bf16.msra.mxu0 0
    %1484 = vmatprep.subr.bf16.mxu0 0
    %1485 = vmatpush1.bf16.msra.mxu0 0
    %1486 = vmatprep.subr.bf16.mxu0 0
    %1487 = vmatpush1.bf16.msra.mxu0 0
    %1488 = vmatprep.mubr.bf16.mxu0 0
    %1489 = vmatmul.mubr.bf16.gmra.mrb[0].mxu0 %v1164
    %v1490 = vpop.f32.mrb[0].mxu0
    %v1491 = vadd.f32 0.0, %v1490
    %v1492 = vpop.f32.mrb[0].mxu0
    %v1493 = vpop.f32.mrb[0].mxu0
    %v1494 = vadd.f32 0.0, %v1493
    %v1495 = vpop.f32.mrb[0].mxu0
    %1496 = vdwg.mxu0
    %v1497 = vadd.f32 %v1454, %v1491
    %v1498 = vadd.f32 %v1455, %v1494
    %v1499 = vcombine.high %v289, %v289
    %v1500 = vcombine.high %v337, %v337
    %v1501 = vcombine.low %v282, %v290
    %v1502 = vcombine.low %v292, %v275
    %v1503 = vcombine.low %v289, %v291
    %v1504 = vcombine.low %v1499, %v330
    %v1506 = vunpack.c.l.s4 1966171168
    %v1507 = vunpack.c.0.s8 %v1506
    %v1508 = vlaneseq
    %v1509 = vshrl.u32 %v1508, 7
    %v1510 = vsub.s32 %v1507, %v1509
    %v1511 = vrot.slane %v1501, %v1510
    %v1513 = vunpack.c.l.s4 1966171168
    %v1514 = vunpack.c.0.s8 %v1513
    %v1515 = vlaneseq
    %v1516 = vshrl.u32 %v1515, 7
    %v1517 = vsub.s32 %v1514, %v1516
    %v1518 = vrot.slane %v1502, %v1517
    %v1520 = vunpack.c.l.s4 1966171168
    %v1521 = vunpack.c.0.s8 %v1520
    %v1522 = vlaneseq
    %v1523 = vshrl.u32 %v1522, 7
    %v1524 = vsub.s32 %v1521, %v1523
    %v1525 = vrot.slane %v1503, %v1524
    %v1527 = vunpack.c.l.s4 1966171168
    %v1528 = vunpack.c.0.s8 %v1527
    %v1529 = vlaneseq
    %v1530 = vshrl.u32 %v1529, 7
    %v1531 = vsub.s32 %v1528, %v1530
    %v1532 = vrot.slane %v1504, %v1531
    %v1533 = vcombine.low %v1511, %v1518
    %v1534 = vcombine.low %v1525, %v1532
    %v1536 = vunpack.c.l.s4 1966171168
    %v1537 = vunpack.c.0.s8 %v1536
    %v1538 = vlaneseq
    %v1539 = vshrl.u32 %v1538, 7
    %v1540 = vsub.s32 %v1537, %v1539
    %v1541 = vrot.slane %v1533, %v1540
    %v1543 = vunpack.c.l.s4 1966171168
    %v1544 = vunpack.c.0.s8 %v1543
    %v1545 = vlaneseq
    %v1546 = vshrl.u32 %v1545, 7
    %v1547 = vsub.s32 %v1544, %v1546
    %v1548 = vrot.slane %v1534, %v1547
    %v1549 = vcombine.low %v1541, %v1548
    %v1550 = vcombine.low %v338, %v340
    %v1551 = vcombine.low %v323, %v337
    %v1552 = vcombine.low %v339, %v1500
    %v1554 = vunpack.c.l.s4 1966171168
    %v1555 = vunpack.c.0.s8 %v1554
    %v1556 = vlaneseq
    %v1557 = vshrl.u32 %v1556, 7
    %v1558 = vsub.s32 %v1555, %v1557
    %v1559 = vrot.slane %v1550, %v1558
    %v1561 = vunpack.c.l.s4 1966171168
    %v1562 = vunpack.c.0.s8 %v1561
    %v1563 = vlaneseq
    %v1564 = vshrl.u32 %v1563, 7
    %v1565 = vsub.s32 %v1562, %v1564
    %v1566 = vrot.slane %v1551, %v1565
    %v1568 = vunpack.c.l.s4 1966171168
    %v1569 = vunpack.c.0.s8 %v1568
    %v1570 = vlaneseq
    %v1571 = vshrl.u32 %v1570, 7
    %v1572 = vsub.s32 %v1569, %v1571
    %v1573 = vrot.slane %v1552, %v1572
    %v1574 = vcombine.low %v1559, %v1566
    %v1576 = vunpack.c.l.s4 1966171168
    %v1577 = vunpack.c.0.s8 %v1576
    %v1578 = vlaneseq
    %v1579 = vshrl.u32 %v1578, 7
    %v1580 = vsub.s32 %v1577, %v1579
    %v1581 = vrot.slane %v1574, %v1580
    %v1583 = vunpack.c.l.s4 1966171168
    %v1584 = vunpack.c.0.s8 %v1583
    %v1585 = vlaneseq
    %v1586 = vshrl.u32 %v1585, 7
    %v1587 = vsub.s32 %v1584, %v1586
    %v1588 = vrot.slane %v1573, %v1587
    %v1589 = vcombine.low %v1581, %v1588
    %v1592 = vpack.c.bf16 %v1589, %v1549
    %v1594 = vsel %vm445, %v1592, 0
    %1596 = vmatprep.subr.bf16.mxu0 0
    %1597 = vmatpush1.bf16.msra.mxu0 %v1159
    %1598 = vmatprep.subr.bf16.mxu0 0
    %1599 = vmatpush1.bf16.msra.mxu0 %v1160
    %1600 = vmatprep.subr.bf16.mxu0 0
    %1601 = vmatpush1.bf16.msra.mxu0 0
    %1602 = vmatprep.subr.bf16.mxu0 0
    %1603 = vmatpush1.bf16.msra.mxu0 0
    %1604 = vmatprep.subr.bf16.mxu0 0
    %1605 = vmatpush1.bf16.msra.mxu0 0
    %1606 = vmatprep.subr.bf16.mxu0 0
    %1607 = vmatpush1.bf16.msra.mxu0 0
    %1608 = vmatprep.subr.bf16.mxu0 0
    %1609 = vmatpush1.bf16.msra.mxu0 0
    %1610 = vmatprep.subr.bf16.mxu0 0
    %1611 = vmatpush1.bf16.msra.mxu0 0
    %1612 = vmatprep.subr.bf16.mxu0 0
    %1613 = vmatpush1.bf16.msra.mxu0 0
    %1614 = vmatprep.subr.bf16.mxu0 0
    %1615 = vmatpush1.bf16.msra.mxu0 0
    %1616 = vmatprep.subr.bf16.mxu0 0
    %1617 = vmatpush1.bf16.msra.mxu0 0
    %1618 = vmatprep.subr.bf16.mxu0 0
    %1619 = vmatpush1.bf16.msra.mxu0 0
    %1620 = vmatprep.subr.bf16.mxu0 0
    %1621 = vmatpush1.bf16.msra.mxu0 0
    %1622 = vmatprep.subr.bf16.mxu0 0
    %1623 = vmatpush1.bf16.msra.mxu0 0
    %1624 = vmatprep.subr.bf16.mxu0 0
    %1625 = vmatpush1.bf16.msra.mxu0 0
    %1626 = vmatprep.subr.bf16.mxu0 0
    %1627 = vmatpush1.bf16.msra.mxu0 0
    %1628 = vmatprep.mubr.bf16.mxu0 0
    %1629 = vmatmul.mubr.bf16.gmra.mrb[0].mxu0 %v1594
    %v1630 = vpop.f32.mrb[0].mxu0
    %v1631 = vadd.f32 0.0, %v1630
    %v1632 = vpop.f32.mrb[0].mxu0
    %v1633 = vpop.f32.mrb[0].mxu0
    %v1634 = vadd.f32 0.0, %v1633
    %v1635 = vpop.f32.mrb[0].mxu0
    %1636 = vdwg.mxu0
    %v1637 = vadd.f32 %v1497, %v1631
    %v1638 = vadd.f32 %v1498, %v1634
    %v1639 = vadd.f32 %v1637, %v1213
    %v1640 = vadd.f32 %v1638, %v1213
    %v1641 = vmax.f32 %v1639, 0.0
    %v1642 = vmax.f32 %v1640, 0.0
    %v1645 = vcombine.high %v1641, %v1641
    %v1647 = vunpack.c.l.s4 1966171168
    %v1648 = vunpack.c.0.s8 %v1647
    %v1649 = vlaneseq
    %v1650 = vshrl.u32 %v1649, 7
    %v1651 = vsub.s32 %v1648, %v1650
    %v1652 = vrot.slane %v1641, %v1651
    %v1654 = vunpack.c.l.s4 1966171168
    %v1655 = vunpack.c.0.s8 %v1654
    %v1656 = vlaneseq
    %v1657 = vshrl.u32 %v1656, 7
    %v1658 = vsub.s32 %v1655, %v1657
    %v1659 = vrot.slane %v1645, %v1658
    %v1660 = vcombine.high %v1652, %v1652
    %v1661 = vcombine.high %v1659, %v1659
    %v1663 = vunpack.c.l.s4 1966171168
    %v1664 = vunpack.c.0.s8 %v1663
    %v1665 = vlaneseq
    %v1666 = vshrl.u32 %v1665, 7
    %v1667 = vsub.s32 %v1664, %v1666
    %v1668 = vrot.slane %v1652, %v1667
    %v1670 = vunpack.c.l.s4 1966171168
    %v1671 = vunpack.c.0.s8 %v1670
    %v1672 = vlaneseq
    %v1673 = vshrl.u32 %v1672, 7
    %v1674 = vsub.s32 %v1671, %v1673
    %v1675 = vrot.slane %v1659, %v1674
    %v1677 = vunpack.c.l.s4 1966171168
    %v1678 = vunpack.c.0.s8 %v1677
    %v1679 = vlaneseq
    %v1680 = vshrl.u32 %v1679, 7
    %v1681 = vsub.s32 %v1678, %v1680
    %v1682 = vrot.slane %v1660, %v1681
    %v1684 = vunpack.c.l.s4 1966171168
    %v1685 = vunpack.c.0.s8 %v1684
    %v1686 = vlaneseq
    %v1687 = vshrl.u32 %v1686, 7
    %v1688 = vsub.s32 %v1685, %v1687
    %v1689 = vrot.slane %v1661, %v1688
    %v1690 = vcombine.high %v1668, %v1668
    %v1691 = vcombine.high %v1675, %v1675
    %v1692 = vcombine.high %v1682, %v1682
    %v1693 = vcombine.high %v1689, %v1689
    %v1694 = vcombine.high %v1642, %v1642
    %v1696 = vunpack.c.l.s4 1966171168
    %v1697 = vunpack.c.0.s8 %v1696
    %v1698 = vlaneseq
    %v1699 = vshrl.u32 %v1698, 7
    %v1700 = vsub.s32 %v1697, %v1699
    %v1701 = vrot.slane %v1642, %v1700
    %v1703 = vunpack.c.l.s4 1966171168
    %v1704 = vunpack.c.0.s8 %v1703
    %v1705 = vlaneseq
    %v1706 = vshrl.u32 %v1705, 7
    %v1707 = vsub.s32 %v1704, %v1706
    %v1708 = vrot.slane %v1694, %v1707
    %v1709 = vcombine.high %v1701, %v1701
    %v1710 = vcombine.high %v1708, %v1708
    %v1712 = vunpack.c.l.s4 1966171168
    %v1713 = vunpack.c.0.s8 %v1712
    %v1714 = vlaneseq
    %v1715 = vshrl.u32 %v1714, 7
    %v1716 = vsub.s32 %v1713, %v1715
    %v1717 = vrot.slane %v1701, %v1716
    %v1719 = vunpack.c.l.s4 1966171168
    %v1720 = vunpack.c.0.s8 %v1719
    %v1721 = vlaneseq
    %v1722 = vshrl.u32 %v1721, 7
    %v1723 = vsub.s32 %v1720, %v1722
    %v1724 = vrot.slane %v1708, %v1723
    %v1726 = vunpack.c.l.s4 1966171168
    %v1727 = vunpack.c.0.s8 %v1726
    %v1728 = vlaneseq
    %v1729 = vshrl.u32 %v1728, 7
    %v1730 = vsub.s32 %v1727, %v1729
    %v1731 = vrot.slane %v1709, %v1730
    %v1733 = vunpack.c.l.s4 1966171168
    %v1734 = vunpack.c.0.s8 %v1733
    %v1735 = vlaneseq
    %v1736 = vshrl.u32 %v1735, 7
    %v1737 = vsub.s32 %v1734, %v1736
    %v1738 = vrot.slane %v1710, %v1737
    %v1739 = vcombine.high %v1717, %v1717
    %v1740 = vcombine.high %v1731, %v1731
    %1755 = vmatprep.subr.bf16.mxu0 0
    %1756 = vmatpush1.bf16.msra.mxu0 %v441
    %1757 = vmatprep.subr.bf16.mxu0 0
    %1758 = vmatpush1.bf16.msra.mxu0 %v442
    %1759 = vmatprep.subr.bf16.mxu0 0
    %1760 = vmatpush1.bf16.msra.mxu0 0
    %1761 = vmatprep.subr.bf16.mxu0 0
    %1762 = vmatpush1.bf16.msra.mxu0 0
    %1763 = vmatprep.subr.bf16.mxu0 0
    %1764 = vmatpush1.bf16.msra.mxu0 0
    %1765 = vmatprep.subr.bf16.mxu0 0
    %1766 = vmatpush1.bf16.msra.mxu0 0
    %1767 = vmatprep.subr.bf16.mxu0 0
    %1768 = vmatpush1.bf16.msra.mxu0 0
    %1769 = vmatprep.subr.bf16.mxu0 0
    %1770 = vmatpush1.bf16.msra.mxu0 0
    %1771 = vmatprep.subr.bf16.mxu0 0
    %1772 = vmatpush1.bf16.msra.mxu0 0
    %1773 = vmatprep.subr.bf16.mxu0 0
    %1774 = vmatpush1.bf16.msra.mxu0 0
    %1775 = vmatprep.subr.bf16.mxu0 0
    %1776 = vmatpush1.bf16.msra.mxu0 0
    %1777 = vmatprep.subr.bf16.mxu0 0
    %1778 = vmatpush1.bf16.msra.mxu0 0
    %1779 = vmatprep.subr.bf16.mxu0 0
    %1780 = vmatpush1.bf16.msra.mxu0 0
    %1781 = vmatprep.subr.bf16.mxu0 0
    %1782 = vmatpush1.bf16.msra.mxu0 0
    %1783 = vmatprep.subr.bf16.mxu0 0
    %1784 = vmatpush1.bf16.msra.mxu0 0
    %1785 = vmatprep.subr.bf16.mxu0 0
    %1786 = vmatpush1.bf16.msra.mxu0 0
    %1787 = vmatprep.mubr.bf16.mxu0 0
    %1788 = vmatmul.mubr.bf16.gmra.mrb[0].mxu0 %v1007
    %v1789 = vpop.f32.mrb[0].mxu0
    %v1790 = vadd.f32 0.0, %v1789
    %v1791 = vpop.f32.mrb[0].mxu0
    %v1792 = vpop.f32.mrb[0].mxu0
    %v1793 = vadd.f32 0.0, %v1792
    %v1794 = vpop.f32.mrb[0].mxu0
    %1795 = vdwg.mxu0
    %1796 = vmatprep.subr.bf16.mxu0 0
    %1797 = vmatpush1.bf16.msra.mxu0 %v498
    %1798 = vmatprep.subr.bf16.mxu0 0
    %1799 = vmatpush1.bf16.msra.mxu0 %v499
    %1800 = vmatprep.subr.bf16.mxu0 0
    %1801 = vmatpush1.bf16.msra.mxu0 0
    %1802 = vmatprep.subr.bf16.mxu0 0
    %1803 = vmatpush1.bf16.msra.mxu0 0
    %1804 = vmatprep.subr.bf16.mxu0 0
    %1805 = vmatpush1.bf16.msra.mxu0 0
    %1806 = vmatprep.subr.bf16.mxu0 0
    %1807 = vmatpush1.bf16.msra.mxu0 0
    %1808 = vmatprep.subr.bf16.mxu0 0
    %1809 = vmatpush1.bf16.msra.mxu0 0
    %1810 = vmatprep.subr.bf16.mxu0 0
    %1811 = vmatpush1.bf16.msra.mxu0 0
    %1812 = vmatprep.subr.bf16.mxu0 0
    %1813 = vmatpush1.bf16.msra.mxu0 0
    %1814 = vmatprep.subr.bf16.mxu0 0
    %1815 = vmatpush1.bf16.msra.mxu0 0
    %1816 = vmatprep.subr.bf16.mxu0 0
    %1817 = vmatpush1.bf16.msra.mxu0 0
    %1818 = vmatprep.subr.bf16.mxu0 0
    %1819 = vmatpush1.bf16.msra.mxu0 0
    %1820 = vmatprep.subr.bf16.mxu0 0
    %1821 = vmatpush1.bf16.msra.mxu0 0
    %1822 = vmatprep.subr.bf16.mxu0 0
    %1823 = vmatpush1.bf16.msra.mxu0 0
    %1824 = vmatprep.subr.bf16.mxu0 0
    %1825 = vmatpush1.bf16.msra.mxu0 0
    %1826 = vmatprep.subr.bf16.mxu0 0
    %1827 = vmatpush1.bf16.msra.mxu0 0
    %1828 = vmatprep.mubr.bf16.mxu0 0
    %1829 = vmatmul.mubr.bf16.gmra.mrb[0].mxu0 %v754
    %v1830 = vpop.f32.mrb[0].mxu0
    %v1831 = vadd.f32 %v1790, %v1830
    %v1832 = vpop.f32.mrb[0].mxu0
    %v1833 = vpop.f32.mrb[0].mxu0
    %v1834 = vadd.f32 %v1793, %v1833
    %v1835 = vpop.f32.mrb[0].mxu0
    %1836 = vdwg.mxu0
    %1837 = vmatprep.subr.bf16.mxu0 0
    %1838 = vmatpush1.bf16.msra.mxu0 %v749
    %1839 = vmatprep.subr.bf16.mxu0 0
    %1840 = vmatpush1.bf16.msra.mxu0 %v750
    %1841 = vmatprep.subr.bf16.mxu0 0
    %1842 = vmatpush1.bf16.msra.mxu0 0
    %1843 = vmatprep.subr.bf16.mxu0 0
    %1844 = vmatpush1.bf16.msra.mxu0 0
    %1845 = vmatprep.subr.bf16.mxu0 0
    %1846 = vmatpush1.bf16.msra.mxu0 0
    %1847 = vmatprep.subr.bf16.mxu0 0
    %1848 = vmatpush1.bf16.msra.mxu0 0
    %1849 = vmatprep.subr.bf16.mxu0 0
    %1850 = vmatpush1.bf16.msra.mxu0 0
    %1851 = vmatprep.subr.bf16.mxu0 0
    %1852 = vmatpush1.bf16.msra.mxu0 0
    %1853 = vmatprep.subr.bf16.mxu0 0
    %1854 = vmatpush1.bf16.msra.mxu0 0
    %1855 = vmatprep.subr.bf16.mxu0 0
    %1856 = vmatpush1.bf16.msra.mxu0 0
    %1857 = vmatprep.subr.bf16.mxu0 0
    %1858 = vmatpush1.bf16.msra.mxu0 0
    %1859 = vmatprep.subr.bf16.mxu0 0
    %1860 = vmatpush1.bf16.msra.mxu0 0
    %1861 = vmatprep.subr.bf16.mxu0 0
    %1862 = vmatpush1.bf16.msra.mxu0 0
    %1863 = vmatprep.subr.bf16.mxu0 0
    %1864 = vmatpush1.bf16.msra.mxu0 0
    %1865 = vmatprep.subr.bf16.mxu0 0
    %1866 = vmatpush1.bf16.msra.mxu0 0
    %1867 = vmatprep.subr.bf16.mxu0 0
    %1868 = vmatpush1.bf16.msra.mxu0 0
    %1869 = vmatprep.mubr.bf16.mxu0 0
    %1870 = vmatmul.mubr.bf16.gmra.mrb[0].mxu0 %v1164
    %v1871 = vpop.f32.mrb[0].mxu0
    %v1872 = vadd.f32 0.0, %v1871
    %v1873 = vpop.f32.mrb[0].mxu0
    %v1874 = vpop.f32.mrb[0].mxu0
    %v1875 = vadd.f32 0.0, %v1874
    %v1876 = vpop.f32.mrb[0].mxu0
    %1877 = vdwg.mxu0
    %v1878 = vadd.f32 %v1831, %v1872
    %v1879 = vadd.f32 %v1834, %v1875
    %1880 = vmatprep.subr.bf16.mxu0 0
    %1881 = vmatpush1.bf16.msra.mxu0 %v1002
    %1882 = vmatprep.subr.bf16.mxu0 0
    %1883 = vmatpush1.bf16.msra.mxu0 %v1003
    %1884 = vmatprep.subr.bf16.mxu0 0
    %1885 = vmatpush1.bf16.msra.mxu0 0
    %1886 = vmatprep.subr.bf16.mxu0 0
    %1887 = vmatpush1.bf16.msra.mxu0 0
    %1888 = vmatprep.subr.bf16.mxu0 0
    %1889 = vmatpush1.bf16.msra.mxu0 0
    %1890 = vmatprep.subr.bf16.mxu0 0
    %1891 = vmatpush1.bf16.msra.mxu0 0
    %1892 = vmatprep.subr.bf16.mxu0 0
    %1893 = vmatpush1.bf16.msra.mxu0 0
    %1894 = vmatprep.subr.bf16.mxu0 0
    %1895 = vmatpush1.bf16.msra.mxu0 0
    %1896 = vmatprep.subr.bf16.mxu0 0
    %1897 = vmatpush1.bf16.msra.mxu0 0
    %1898 = vmatprep.subr.bf16.mxu0 0
    %1899 = vmatpush1.bf16.msra.mxu0 0
    %1900 = vmatprep.subr.bf16.mxu0 0
    %1901 = vmatpush1.bf16.msra.mxu0 0
    %1902 = vmatprep.subr.bf16.mxu0 0
    %1903 = vmatpush1.bf16.msra.mxu0 0
    %1904 = vmatprep.subr.bf16.mxu0 0
    %1905 = vmatpush1.bf16.msra.mxu0 0
    %1906 = vmatprep.subr.bf16.mxu0 0
    %1907 = vmatpush1.bf16.msra.mxu0 0
    %1908 = vmatprep.subr.bf16.mxu0 0
    %1909 = vmatpush1.bf16.msra.mxu0 0
    %1910 = vmatprep.subr.bf16.mxu0 0
    %1911 = vmatpush1.bf16.msra.mxu0 0
    %1912 = vmatprep.mubr.bf16.mxu0 0
    %1913 = vmatmul.mubr.bf16.gmra.mrb[0].mxu0 %v1594
    %v1914 = vpop.f32.mrb[0].mxu0
    %v1915 = vadd.f32 0.0, %v1914
    %v1916 = vpop.f32.mrb[0].mxu0
    %v1917 = vpop.f32.mrb[0].mxu0
    %v1918 = vadd.f32 0.0, %v1917
    %v1919 = vpop.f32.mrb[0].mxu0
    %1920 = vdwg.mxu0
    %v1921 = vadd.f32 %v1878, %v1915
    %v1922 = vadd.f32 %v1879, %v1918
    %v1923 = vcombine.high %v597, %v597
    %v1924 = vcombine.high %v645, %v645
    %v1925 = vcombine.low %v590, %v598
    %v1926 = vcombine.low %v600, %v583
    %v1927 = vcombine.low %v597, %v599
    %v1928 = vcombine.low %v1923, %v638
    %v1930 = vunpack.c.l.s4 1966171168
    %v1931 = vunpack.c.0.s8 %v1930
    %v1932 = vlaneseq
    %v1933 = vshrl.u32 %v1932, 7
    %v1934 = vsub.s32 %v1931, %v1933
    %v1935 = vrot.slane %v1925, %v1934
    %v1937 = vunpack.c.l.s4 1966171168
    %v1938 = vunpack.c.0.s8 %v1937
    %v1939 = vlaneseq
    %v1940 = vshrl.u32 %v1939, 7
    %v1941 = vsub.s32 %v1938, %v1940
    %v1942 = vrot.slane %v1926, %v1941
    %v1944 = vunpack.c.l.s4 1966171168
    %v1945 = vunpack.c.0.s8 %v1944
    %v1946 = vlaneseq
    %v1947 = vshrl.u32 %v1946, 7
    %v1948 = vsub.s32 %v1945, %v1947
    %v1949 = vrot.slane %v1927, %v1948
    %v1951 = vunpack.c.l.s4 1966171168
    %v1952 = vunpack.c.0.s8 %v1951
    %v1953 = vlaneseq
    %v1954 = vshrl.u32 %v1953, 7
    %v1955 = vsub.s32 %v1952, %v1954
    %v1956 = vrot.slane %v1928, %v1955
    %v1957 = vcombine.low %v1935, %v1942
    %v1958 = vcombine.low %v1949, %v1956
    %v1960 = vunpack.c.l.s4 1966171168
    %v1961 = vunpack.c.0.s8 %v1960
    %v1962 = vlaneseq
    %v1963 = vshrl.u32 %v1962, 7
    %v1964 = vsub.s32 %v1961, %v1963
    %v1965 = vrot.slane %v1957, %v1964
    %v1967 = vunpack.c.l.s4 1966171168
    %v1968 = vunpack.c.0.s8 %v1967
    %v1969 = vlaneseq
    %v1970 = vshrl.u32 %v1969, 7
    %v1971 = vsub.s32 %v1968, %v1970
    %v1972 = vrot.slane %v1958, %v1971
    %v1973 = vcombine.low %v1965, %v1972
    %v1974 = vcombine.low %v646, %v648
    %v1975 = vcombine.low %v631, %v645
    %v1976 = vcombine.low %v647, %v1924
    %v1978 = vunpack.c.l.s4 1966171168
    %v1979 = vunpack.c.0.s8 %v1978
    %v1980 = vlaneseq
    %v1981 = vshrl.u32 %v1980, 7
    %v1982 = vsub.s32 %v1979, %v1981
    %v1983 = vrot.slane %v1974, %v1982
    %v1985 = vunpack.c.l.s4 1966171168
    %v1986 = vunpack.c.0.s8 %v1985
    %v1987 = vlaneseq
    %v1988 = vshrl.u32 %v1987, 7
    %v1989 = vsub.s32 %v1986, %v1988
    %v1990 = vrot.slane %v1975, %v1989
    %v1992 = vunpack.c.l.s4 1966171168
    %v1993 = vunpack.c.0.s8 %v1992
    %v1994 = vlaneseq
    %v1995 = vshrl.u32 %v1994, 7
    %v1996 = vsub.s32 %v1993, %v1995
    %v1997 = vrot.slane %v1976, %v1996
    %v1998 = vcombine.low %v1983, %v1990
    %v2000 = vunpack.c.l.s4 1966171168
    %v2001 = vunpack.c.0.s8 %v2000
    %v2002 = vlaneseq
    %v2003 = vshrl.u32 %v2002, 7
    %v2004 = vsub.s32 %v2001, %v2003
    %v2005 = vrot.slane %v1998, %v2004
    %v2007 = vunpack.c.l.s4 1966171168
    %v2008 = vunpack.c.0.s8 %v2007
    %v2009 = vlaneseq
    %v2010 = vshrl.u32 %v2009, 7
    %v2011 = vsub.s32 %v2008, %v2010
    %v2012 = vrot.slane %v1997, %v2011
    %v2013 = vcombine.low %v2005, %v2012
    %v2016 = vpack.c.bf16 %v2013, %v1973
    %v2018 = vsel %vm445, %v2016, 0
    %2020 = vmatprep.subr.bf16.mxu0 0
    %2021 = vmatpush1.bf16.msra.mxu0 %v1159
    %2022 = vmatprep.subr.bf16.mxu0 0
    %2023 = vmatpush1.bf16.msra.mxu0 %v1160
    %2024 = vmatprep.subr.bf16.mxu0 0
    %2025 = vmatpush1.bf16.msra.mxu0 0
    %2026 = vmatprep.subr.bf16.mxu0 0
    %2027 = vmatpush1.bf16.msra.mxu0 0
    %2028 = vmatprep.subr.bf16.mxu0 0
    %2029 = vmatpush1.bf16.msra.mxu0 0
    %2030 = vmatprep.subr.bf16.mxu0 0
    %2031 = vmatpush1.bf16.msra.mxu0 0
    %2032 = vmatprep.subr.bf16.mxu0 0
    %2033 = vmatpush1.bf16.msra.mxu0 0
    %2034 = vmatprep.subr.bf16.mxu0 0
    %2035 = vmatpush1.bf16.msra.mxu0 0
    %2036 = vmatprep.subr.bf16.mxu0 0
    %2037 = vmatpush1.bf16.msra.mxu0 0
    %2038 = vmatprep.subr.bf16.mxu0 0
    %2039 = vmatpush1.bf16.msra.mxu0 0
    %2040 = vmatprep.subr.bf16.mxu0 0
    %2041 = vmatpush1.bf16.msra.mxu0 0
    %2042 = vmatprep.subr.bf16.mxu0 0
    %2043 = vmatpush1.bf16.msra.mxu0 0
    %2044 = vmatprep.subr.bf16.mxu0 0
    %2045 = vmatpush1.bf16.msra.mxu0 0
    %2046 = vmatprep.subr.bf16.mxu0 0
    %2047 = vmatpush1.bf16.msra.mxu0 0
    %2048 = vmatprep.subr.bf16.mxu0 0
    %2049 = vmatpush1.bf16.msra.mxu0 0
    %2050 = vmatprep.subr.bf16.mxu0 0
    %2051 = vmatpush1.bf16.msra.mxu0 0
    %2052 = vmatprep.mubr.bf16.mxu0 0
    %2053 = vmatmul.mubr.bf16.gmra.mrb[0].mxu0 %v2018
    %v2054 = vpop.f32.mrb[0].mxu0
    %v2055 = vadd.f32 0.0, %v2054
    %v2056 = vpop.f32.mrb[0].mxu0
    %v2057 = vpop.f32.mrb[0].mxu0
    %v2058 = vadd.f32 0.0, %v2057
    %v2059 = vpop.f32.mrb[0].mxu0
    %2060 = vdwg.mxu0
    %v2061 = vadd.f32 %v1921, %v2055
    %v2062 = vadd.f32 %v1922, %v2058
    %v2063 = vadd.f32 %v2061, %v1213
    %v2064 = vadd.f32 %v2062, %v1213
    %v2065 = vmax.f32 %v2063, 0.0
    %v2066 = vmax.f32 %v2064, 0.0
    %v2069 = vcombine.high %v2065, %v2065
    %v2071 = vunpack.c.l.s4 1966171168
    %v2072 = vunpack.c.0.s8 %v2071
    %v2073 = vlaneseq
    %v2074 = vshrl.u32 %v2073, 7
    %v2075 = vsub.s32 %v2072, %v2074
    %v2076 = vrot.slane %v2065, %v2075
    %v2078 = vunpack.c.l.s4 1966171168
    %v2079 = vunpack.c.0.s8 %v2078
    %v2080 = vlaneseq
    %v2081 = vshrl.u32 %v2080, 7
    %v2082 = vsub.s32 %v2079, %v2081
    %v2083 = vrot.slane %v2069, %v2082
    %v2084 = vcombine.high %v2076, %v2076
    %v2085 = vcombine.high %v2083, %v2083
    %v2087 = vunpack.c.l.s4 1966171168
    %v2088 = vunpack.c.0.s8 %v2087
    %v2089 = vlaneseq
    %v2090 = vshrl.u32 %v2089, 7
    %v2091 = vsub.s32 %v2088, %v2090
    %v2092 = vrot.slane %v2076, %v2091
    %v2094 = vunpack.c.l.s4 1966171168
    %v2095 = vunpack.c.0.s8 %v2094
    %v2096 = vlaneseq
    %v2097 = vshrl.u32 %v2096, 7
    %v2098 = vsub.s32 %v2095, %v2097
    %v2099 = vrot.slane %v2083, %v2098
    %v2101 = vunpack.c.l.s4 1966171168
    %v2102 = vunpack.c.0.s8 %v2101
    %v2103 = vlaneseq
    %v2104 = vshrl.u32 %v2103, 7
    %v2105 = vsub.s32 %v2102, %v2104
    %v2106 = vrot.slane %v2084, %v2105
    %v2108 = vunpack.c.l.s4 1966171168
    %v2109 = vunpack.c.0.s8 %v2108
    %v2110 = vlaneseq
    %v2111 = vshrl.u32 %v2110, 7
    %v2112 = vsub.s32 %v2109, %v2111
    %v2113 = vrot.slane %v2085, %v2112
    %v2114 = vcombine.high %v2092, %v2092
    %v2115 = vcombine.high %v2099, %v2099
    %v2116 = vcombine.high %v2106, %v2106
    %v2117 = vcombine.high %v2113, %v2113
    %v2118 = vcombine.high %v2066, %v2066
    %v2120 = vunpack.c.l.s4 1966171168
    %v2121 = vunpack.c.0.s8 %v2120
    %v2122 = vlaneseq
    %v2123 = vshrl.u32 %v2122, 7
    %v2124 = vsub.s32 %v2121, %v2123
    %v2125 = vrot.slane %v2066, %v2124
    %v2127 = vunpack.c.l.s4 1966171168
    %v2128 = vunpack.c.0.s8 %v2127
    %v2129 = vlaneseq
    %v2130 = vshrl.u32 %v2129, 7
    %v2131 = vsub.s32 %v2128, %v2130
    %v2132 = vrot.slane %v2118, %v2131
    %v2133 = vcombine.high %v2125, %v2125
    %v2134 = vcombine.high %v2132, %v2132
    %v2136 = vunpack.c.l.s4 1966171168
    %v2137 = vunpack.c.0.s8 %v2136
    %v2138 = vlaneseq
    %v2139 = vshrl.u32 %v2138, 7
    %v2140 = vsub.s32 %v2137, %v2139
    %v2141 = vrot.slane %v2125, %v2140
    %v2143 = vunpack.c.l.s4 1966171168
    %v2144 = vunpack.c.0.s8 %v2143
    %v2145 = vlaneseq
    %v2146 = vshrl.u32 %v2145, 7
    %v2147 = vsub.s32 %v2144, %v2146
    %v2148 = vrot.slane %v2132, %v2147
    %v2150 = vunpack.c.l.s4 1966171168
    %v2151 = vunpack.c.0.s8 %v2150
    %v2152 = vlaneseq
    %v2153 = vshrl.u32 %v2152, 7
    %v2154 = vsub.s32 %v2151, %v2153
    %v2155 = vrot.slane %v2133, %v2154
    %v2157 = vunpack.c.l.s4 1966171168
    %v2158 = vunpack.c.0.s8 %v2157
    %v2159 = vlaneseq
    %v2160 = vshrl.u32 %v2159, 7
    %v2161 = vsub.s32 %v2158, %v2160
    %v2162 = vrot.slane %v2134, %v2161
    %v2163 = vcombine.high %v2141, %v2141
    %v2164 = vcombine.high %v2155, %v2155
    %2179 = vmatprep.subr.bf16.mxu0 0
    %2180 = vmatpush1.bf16.msra.mxu0 %v441
    %2181 = vmatprep.subr.bf16.mxu0 0
    %2182 = vmatpush1.bf16.msra.mxu0 %v442
    %2183 = vmatprep.subr.bf16.mxu0 0
    %2184 = vmatpush1.bf16.msra.mxu0 0
    %2185 = vmatprep.subr.bf16.mxu0 0
    %2186 = vmatpush1.bf16.msra.mxu0 0
    %2187 = vmatprep.subr.bf16.mxu0 0
    %2188 = vmatpush1.bf16.msra.mxu0 0
    %2189 = vmatprep.subr.bf16.mxu0 0
    %2190 = vmatpush1.bf16.msra.mxu0 0
    %2191 = vmatprep.subr.bf16.mxu0 0
    %2192 = vmatpush1.bf16.msra.mxu0 0
    %2193 = vmatprep.subr.bf16.mxu0 0
    %2194 = vmatpush1.bf16.msra.mxu0 0
    %2195 = vmatprep.subr.bf16.mxu0 0
    %2196 = vmatpush1.bf16.msra.mxu0 0
    %2197 = vmatprep.subr.bf16.mxu0 0
    %2198 = vmatpush1.bf16.msra.mxu0 0
    %2199 = vmatprep.subr.bf16.mxu0 0
    %2200 = vmatpush1.bf16.msra.mxu0 0
    %2201 = vmatprep.subr.bf16.mxu0 0
    %2202 = vmatpush1.bf16.msra.mxu0 0
    %2203 = vmatprep.subr.bf16.mxu0 0
    %2204 = vmatpush1.bf16.msra.mxu0 0
    %2205 = vmatprep.subr.bf16.mxu0 0
    %2206 = vmatpush1.bf16.msra.mxu0 0
    %2207 = vmatprep.subr.bf16.mxu0 0
    %2208 = vmatpush1.bf16.msra.mxu0 0
    %2209 = vmatprep.subr.bf16.mxu0 0
    %2210 = vmatpush1.bf16.msra.mxu0 0
    %2211 = vmatprep.mubr.bf16.mxu0 0
    %2212 = vmatmul.mubr.bf16.gmra.mrb[0].mxu0 %v1164
    %v2213 = vpop.f32.mrb[0].mxu0
    %v2214 = vadd.f32 0.0, %v2213
    %v2215 = vpop.f32.mrb[0].mxu0
    %v2216 = vpop.f32.mrb[0].mxu0
    %v2217 = vadd.f32 0.0, %v2216
    %v2218 = vpop.f32.mrb[0].mxu0
    %2219 = vdwg.mxu0
    %2220 = vmatprep.subr.bf16.mxu0 0
    %2221 = vmatpush1.bf16.msra.mxu0 %v498
    %2222 = vmatprep.subr.bf16.mxu0 0
    %2223 = vmatpush1.bf16.msra.mxu0 %v499
    %2224 = vmatprep.subr.bf16.mxu0 0
    %2225 = vmatpush1.bf16.msra.mxu0 0
    %2226 = vmatprep.subr.bf16.mxu0 0
    %2227 = vmatpush1.bf16.msra.mxu0 0
    %2228 = vmatprep.subr.bf16.mxu0 0
    %2229 = vmatpush1.bf16.msra.mxu0 0
    %2230 = vmatprep.subr.bf16.mxu0 0
    %2231 = vmatpush1.bf16.msra.mxu0 0
    %2232 = vmatprep.subr.bf16.mxu0 0
    %2233 = vmatpush1.bf16.msra.mxu0 0
    %2234 = vmatprep.subr.bf16.mxu0 0
    %2235 = vmatpush1.bf16.msra.mxu0 0
    %2236 = vmatprep.subr.bf16.mxu0 0
    %2237 = vmatpush1.bf16.msra.mxu0 0
    %2238 = vmatprep.subr.bf16.mxu0 0
    %2239 = vmatpush1.bf16.msra.mxu0 0
    %2240 = vmatprep.subr.bf16.mxu0 0
    %2241 = vmatpush1.bf16.msra.mxu0 0
    %2242 = vmatprep.subr.bf16.mxu0 0
    %2243 = vmatpush1.bf16.msra.mxu0 0
    %2244 = vmatprep.subr.bf16.mxu0 0
    %2245 = vmatpush1.bf16.msra.mxu0 0
    %2246 = vmatprep.subr.bf16.mxu0 0
    %2247 = vmatpush1.bf16.msra.mxu0 0
    %2248 = vmatprep.subr.bf16.mxu0 0
    %2249 = vmatpush1.bf16.msra.mxu0 0
    %2250 = vmatprep.subr.bf16.mxu0 0
    %2251 = vmatpush1.bf16.msra.mxu0 0
    %2252 = vmatprep.mubr.bf16.mxu0 0
    %2253 = vmatmul.mubr.bf16.gmra.mrb[0].mxu0 %v1007
    %v2254 = vpop.f32.mrb[0].mxu0
    %v2255 = vadd.f32 %v2214, %v2254
    %v2256 = vpop.f32.mrb[0].mxu0
    %v2257 = vpop.f32.mrb[0].mxu0
    %v2258 = vadd.f32 %v2217, %v2257
    %v2259 = vpop.f32.mrb[0].mxu0
    %2260 = vdwg.mxu0
    %2261 = vmatprep.subr.bf16.mxu0 0
    %2262 = vmatpush1.bf16.msra.mxu0 %v749
    %2263 = vmatprep.subr.bf16.mxu0 0
    %2264 = vmatpush1.bf16.msra.mxu0 %v750
    %2265 = vmatprep.subr.bf16.mxu0 0
    %2266 = vmatpush1.bf16.msra.mxu0 0
    %2267 = vmatprep.subr.bf16.mxu0 0
    %2268 = vmatpush1.bf16.msra.mxu0 0
    %2269 = vmatprep.subr.bf16.mxu0 0
    %2270 = vmatpush1.bf16.msra.mxu0 0
    %2271 = vmatprep.subr.bf16.mxu0 0
    %2272 = vmatpush1.bf16.msra.mxu0 0
    %2273 = vmatprep.subr.bf16.mxu0 0
    %2274 = vmatpush1.bf16.msra.mxu0 0
    %2275 = vmatprep.subr.bf16.mxu0 0
    %2276 = vmatpush1.bf16.msra.mxu0 0
    %2277 = vmatprep.subr.bf16.mxu0 0
    %2278 = vmatpush1.bf16.msra.mxu0 0
    %2279 = vmatprep.subr.bf16.mxu0 0
    %2280 = vmatpush1.bf16.msra.mxu0 0
    %2281 = vmatprep.subr.bf16.mxu0 0
    %2282 = vmatpush1.bf16.msra.mxu0 0
    %2283 = vmatprep.subr.bf16.mxu0 0
    %2284 = vmatpush1.bf16.msra.mxu0 0
    %2285 = vmatprep.subr.bf16.mxu0 0
    %2286 = vmatpush1.bf16.msra.mxu0 0
    %2287 = vmatprep.subr.bf16.mxu0 0
    %2288 = vmatpush1.bf16.msra.mxu0 0
    %2289 = vmatprep.subr.bf16.mxu0 0
    %2290 = vmatpush1.bf16.msra.mxu0 0
    %2291 = vmatprep.subr.bf16.mxu0 0
    %2292 = vmatpush1.bf16.msra.mxu0 0
    %2293 = vmatprep.mubr.bf16.mxu0 0
    %2294 = vmatmul.mubr.bf16.gmra.mrb[0].mxu0 %v1594
    %v2295 = vpop.f32.mrb[0].mxu0
    %v2296 = vadd.f32 0.0, %v2295
    %v2297 = vpop.f32.mrb[0].mxu0
    %v2298 = vpop.f32.mrb[0].mxu0
    %v2299 = vadd.f32 0.0, %v2298
    %v2300 = vpop.f32.mrb[0].mxu0
    %2301 = vdwg.mxu0
    %v2302 = vadd.f32 %v2255, %v2296
    %v2303 = vadd.f32 %v2258, %v2299
    %2304 = vmatprep.subr.bf16.mxu0 0
    %2305 = vmatpush1.bf16.msra.mxu0 %v1002
    %2306 = vmatprep.subr.bf16.mxu0 0
    %2307 = vmatpush1.bf16.msra.mxu0 %v1003
    %2308 = vmatprep.subr.bf16.mxu0 0
    %2309 = vmatpush1.bf16.msra.mxu0 0
    %2310 = vmatprep.subr.bf16.mxu0 0
    %2311 = vmatpush1.bf16.msra.mxu0 0
    %2312 = vmatprep.subr.bf16.mxu0 0
    %2313 = vmatpush1.bf16.msra.mxu0 0
    %2314 = vmatprep.subr.bf16.mxu0 0
    %2315 = vmatpush1.bf16.msra.mxu0 0
    %2316 = vmatprep.subr.bf16.mxu0 0
    %2317 = vmatpush1.bf16.msra.mxu0 0
    %2318 = vmatprep.subr.bf16.mxu0 0
    %2319 = vmatpush1.bf16.msra.mxu0 0
    %2320 = vmatprep.subr.bf16.mxu0 0
    %2321 = vmatpush1.bf16.msra.mxu0 0
    %2322 = vmatprep.subr.bf16.mxu0 0
    %2323 = vmatpush1.bf16.msra.mxu0 0
    %2324 = vmatprep.subr.bf16.mxu0 0
    %2325 = vmatpush1.bf16.msra.mxu0 0
    %2326 = vmatprep.subr.bf16.mxu0 0
    %2327 = vmatpush1.bf16.msra.mxu0 0
    %2328 = vmatprep.subr.bf16.mxu0 0
    %2329 = vmatpush1.bf16.msra.mxu0 0
    %2330 = vmatprep.subr.bf16.mxu0 0
    %2331 = vmatpush1.bf16.msra.mxu0 0
    %2332 = vmatprep.subr.bf16.mxu0 0
    %2333 = vmatpush1.bf16.msra.mxu0 0
    %2334 = vmatprep.subr.bf16.mxu0 0
    %2335 = vmatpush1.bf16.msra.mxu0 0
    %2336 = vmatprep.mubr.bf16.mxu0 0
    %2337 = vmatmul.mubr.bf16.gmra.mrb[0].mxu0 %v2018
    %v2338 = vpop.f32.mrb[0].mxu0
    %v2339 = vadd.f32 0.0, %v2338
    %v2340 = vpop.f32.mrb[0].mxu0
    %v2341 = vpop.f32.mrb[0].mxu0
    %v2342 = vadd.f32 0.0, %v2341
    %v2343 = vpop.f32.mrb[0].mxu0
    %2344 = vdwg.mxu0
    %v2345 = vadd.f32 %v2302, %v2339
    %v2346 = vadd.f32 %v2303, %v2342
    %v2347 = vcombine.high %v850, %v850
    %v2348 = vcombine.high %v898, %v898
    %v2349 = vcombine.low %v843, %v851
    %v2350 = vcombine.low %v853, %v836
    %v2351 = vcombine.low %v850, %v852
    %v2352 = vcombine.low %v2347, %v891
    %v2354 = vunpack.c.l.s4 1966171168
    %v2355 = vunpack.c.0.s8 %v2354
    %v2356 = vlaneseq
    %v2357 = vshrl.u32 %v2356, 7
    %v2358 = vsub.s32 %v2355, %v2357
    %v2359 = vrot.slane %v2349, %v2358
    %v2361 = vunpack.c.l.s4 1966171168
    %v2362 = vunpack.c.0.s8 %v2361
    %v2363 = vlaneseq
    %v2364 = vshrl.u32 %v2363, 7
    %v2365 = vsub.s32 %v2362, %v2364
    %v2366 = vrot.slane %v2350, %v2365
    %v2368 = vunpack.c.l.s4 1966171168
    %v2369 = vunpack.c.0.s8 %v2368
    %v2370 = vlaneseq
    %v2371 = vshrl.u32 %v2370, 7
    %v2372 = vsub.s32 %v2369, %v2371
    %v2373 = vrot.slane %v2351, %v2372
    %v2375 = vunpack.c.l.s4 1966171168
    %v2376 = vunpack.c.0.s8 %v2375
    %v2377 = vlaneseq
    %v2378 = vshrl.u32 %v2377, 7
    %v2379 = vsub.s32 %v2376, %v2378
    %v2380 = vrot.slane %v2352, %v2379
    %v2381 = vcombine.low %v2359, %v2366
    %v2382 = vcombine.low %v2373, %v2380
    %v2384 = vunpack.c.l.s4 1966171168
    %v2385 = vunpack.c.0.s8 %v2384
    %v2386 = vlaneseq
    %v2387 = vshrl.u32 %v2386, 7
    %v2388 = vsub.s32 %v2385, %v2387
    %v2389 = vrot.slane %v2381, %v2388
    %v2391 = vunpack.c.l.s4 1966171168
    %v2392 = vunpack.c.0.s8 %v2391
    %v2393 = vlaneseq
    %v2394 = vshrl.u32 %v2393, 7
    %v2395 = vsub.s32 %v2392, %v2394
    %v2396 = vrot.slane %v2382, %v2395
    %v2397 = vcombine.low %v2389, %v2396
    %v2398 = vcombine.low %v899, %v901
    %v2399 = vcombine.low %v884, %v898
    %v2400 = vcombine.low %v900, %v2348
    %v2402 = vunpack.c.l.s4 1966171168
    %v2403 = vunpack.c.0.s8 %v2402
    %v2404 = vlaneseq
    %v2405 = vshrl.u32 %v2404, 7
    %v2406 = vsub.s32 %v2403, %v2405
    %v2407 = vrot.slane %v2398, %v2406
    %v2409 = vunpack.c.l.s4 1966171168
    %v2410 = vunpack.c.0.s8 %v2409
    %v2411 = vlaneseq
    %v2412 = vshrl.u32 %v2411, 7
    %v2413 = vsub.s32 %v2410, %v2412
    %v2414 = vrot.slane %v2399, %v2413
    %v2416 = vunpack.c.l.s4 1966171168
    %v2417 = vunpack.c.0.s8 %v2416
    %v2418 = vlaneseq
    %v2419 = vshrl.u32 %v2418, 7
    %v2420 = vsub.s32 %v2417, %v2419
    %v2421 = vrot.slane %v2400, %v2420
    %v2422 = vcombine.low %v2407, %v2414
    %v2424 = vunpack.c.l.s4 1966171168
    %v2425 = vunpack.c.0.s8 %v2424
    %v2426 = vlaneseq
    %v2427 = vshrl.u32 %v2426, 7
    %v2428 = vsub.s32 %v2425, %v2427
    %v2429 = vrot.slane %v2422, %v2428
    %v2431 = vunpack.c.l.s4 1966171168
    %v2432 = vunpack.c.0.s8 %v2431
    %v2433 = vlaneseq
    %v2434 = vshrl.u32 %v2433, 7
    %v2435 = vsub.s32 %v2432, %v2434
    %v2436 = vrot.slane %v2421, %v2435
    %v2437 = vcombine.low %v2429, %v2436
    %v2440 = vpack.c.bf16 %v2437, %v2397
    %v2442 = vsel %vm445, %v2440, 0
    %2444 = vmatprep.subr.bf16.mxu0 0
    %2445 = vmatpush1.bf16.msra.mxu0 %v1159
    %2446 = vmatprep.subr.bf16.mxu0 0
    %2447 = vmatpush1.bf16.msra.mxu0 %v1160
    %2448 = vmatprep.subr.bf16.mxu0 0
    %2449 = vmatpush1.bf16.msra.mxu0 0
    %2450 = vmatprep.subr.bf16.mxu0 0
    %2451 = vmatpush1.bf16.msra.mxu0 0
    %2452 = vmatprep.subr.bf16.mxu0 0
    %2453 = vmatpush1.bf16.msra.mxu0 0
    %2454 = vmatprep.subr.bf16.mxu0 0
    %2455 = vmatpush1.bf16.msra.mxu0 0
    %2456 = vmatprep.subr.bf16.mxu0 0
    %2457 = vmatpush1.bf16.msra.mxu0 0
    %2458 = vmatprep.subr.bf16.mxu0 0
    %2459 = vmatpush1.bf16.msra.mxu0 0
    %2460 = vmatprep.subr.bf16.mxu0 0
    %2461 = vmatpush1.bf16.msra.mxu0 0
    %2462 = vmatprep.subr.bf16.mxu0 0
    %2463 = vmatpush1.bf16.msra.mxu0 0
    %2464 = vmatprep.subr.bf16.mxu0 0
    %2465 = vmatpush1.bf16.msra.mxu0 0
    %2466 = vmatprep.subr.bf16.mxu0 0
    %2467 = vmatpush1.bf16.msra.mxu0 0
    %2468 = vmatprep.subr.bf16.mxu0 0
    %2469 = vmatpush1.bf16.msra.mxu0 0
    %2470 = vmatprep.subr.bf16.mxu0 0
    %2471 = vmatpush1.bf16.msra.mxu0 0
    %2472 = vmatprep.subr.bf16.mxu0 0
    %2473 = vmatpush1.bf16.msra.mxu0 0
    %2474 = vmatprep.subr.bf16.mxu0 0
    %2475 = vmatpush1.bf16.msra.mxu0 0
    %2476 = vmatprep.mubr.bf16.mxu0 0
    %2477 = vmatmul.mubr.bf16.gmra.mrb[0].mxu0 %v2442
    %v2478 = vpop.f32.mrb[0].mxu0
    %v2479 = vadd.f32 0.0, %v2478
    %v2480 = vpop.f32.mrb[0].mxu0
    %v2481 = vpop.f32.mrb[0].mxu0
    %v2482 = vadd.f32 0.0, %v2481
    %v2483 = vpop.f32.mrb[0].mxu0
    %2484 = vdwg.mxu0
    %v2485 = vadd.f32 %v2345, %v2479
    %v2486 = vadd.f32 %v2346, %v2482
    %v2487 = vadd.f32 %v2485, %v1213
    %v2488 = vadd.f32 %v2486, %v1213
    %v2489 = vmax.f32 %v2487, 0.0
    %v2490 = vmax.f32 %v2488, 0.0
    %v2493 = vcombine.high %v2489, %v2489
    %v2495 = vunpack.c.l.s4 1966171168
    %v2496 = vunpack.c.0.s8 %v2495
    %v2497 = vlaneseq
    %v2498 = vshrl.u32 %v2497, 7
    %v2499 = vsub.s32 %v2496, %v2498
    %v2500 = vrot.slane %v2489, %v2499
    %v2502 = vunpack.c.l.s4 1966171168
    %v2503 = vunpack.c.0.s8 %v2502
    %v2504 = vlaneseq
    %v2505 = vshrl.u32 %v2504, 7
    %v2506 = vsub.s32 %v2503, %v2505
    %v2507 = vrot.slane %v2493, %v2506
    %v2508 = vcombine.high %v2500, %v2500
    %v2509 = vcombine.high %v2507, %v2507
    %v2511 = vunpack.c.l.s4 1966171168
    %v2512 = vunpack.c.0.s8 %v2511
    %v2513 = vlaneseq
    %v2514 = vshrl.u32 %v2513, 7
    %v2515 = vsub.s32 %v2512, %v2514
    %v2516 = vrot.slane %v2500, %v2515
    %v2518 = vunpack.c.l.s4 1966171168
    %v2519 = vunpack.c.0.s8 %v2518
    %v2520 = vlaneseq
    %v2521 = vshrl.u32 %v2520, 7
    %v2522 = vsub.s32 %v2519, %v2521
    %v2523 = vrot.slane %v2507, %v2522
    %v2525 = vunpack.c.l.s4 1966171168
    %v2526 = vunpack.c.0.s8 %v2525
    %v2527 = vlaneseq
    %v2528 = vshrl.u32 %v2527, 7
    %v2529 = vsub.s32 %v2526, %v2528
    %v2530 = vrot.slane %v2508, %v2529
    %v2532 = vunpack.c.l.s4 1966171168
    %v2533 = vunpack.c.0.s8 %v2532
    %v2534 = vlaneseq
    %v2535 = vshrl.u32 %v2534, 7
    %v2536 = vsub.s32 %v2533, %v2535
    %v2537 = vrot.slane %v2509, %v2536
    %v2538 = vcombine.high %v2516, %v2516
    %v2539 = vcombine.high %v2523, %v2523
    %v2540 = vcombine.high %v2530, %v2530
    %v2541 = vcombine.high %v2537, %v2537
    %v2542 = vcombine.high %v2490, %v2490
    %v2544 = vunpack.c.l.s4 1966171168
    %v2545 = vunpack.c.0.s8 %v2544
    %v2546 = vlaneseq
    %v2547 = vshrl.u32 %v2546, 7
    %v2548 = vsub.s32 %v2545, %v2547
    %v2549 = vrot.slane %v2490, %v2548
    %v2551 = vunpack.c.l.s4 1966171168
    %v2552 = vunpack.c.0.s8 %v2551
    %v2553 = vlaneseq
    %v2554 = vshrl.u32 %v2553, 7
    %v2555 = vsub.s32 %v2552, %v2554
    %v2556 = vrot.slane %v2542, %v2555
    %v2557 = vcombine.high %v2549, %v2549
    %v2558 = vcombine.high %v2556, %v2556
    %v2560 = vunpack.c.l.s4 1966171168
    %v2561 = vunpack.c.0.s8 %v2560
    %v2562 = vlaneseq
    %v2563 = vshrl.u32 %v2562, 7
    %v2564 = vsub.s32 %v2561, %v2563
    %v2565 = vrot.slane %v2549, %v2564
    %v2567 = vunpack.c.l.s4 1966171168
    %v2568 = vunpack.c.0.s8 %v2567
    %v2569 = vlaneseq
    %v2570 = vshrl.u32 %v2569, 7
    %v2571 = vsub.s32 %v2568, %v2570
    %v2572 = vrot.slane %v2556, %v2571
    %v2574 = vunpack.c.l.s4 1966171168
    %v2575 = vunpack.c.0.s8 %v2574
    %v2576 = vlaneseq
    %v2577 = vshrl.u32 %v2576, 7
    %v2578 = vsub.s32 %v2575, %v2577
    %v2579 = vrot.slane %v2557, %v2578
    %v2581 = vunpack.c.l.s4 1966171168
    %v2582 = vunpack.c.0.s8 %v2581
    %v2583 = vlaneseq
    %v2584 = vshrl.u32 %v2583, 7
    %v2585 = vsub.s32 %v2582, %v2584
    %v2586 = vrot.slane %v2558, %v2585
    %v2587 = vcombine.high %v2565, %v2565
    %v2588 = vcombine.high %v2579, %v2579
    %v2603 = vadd.f32 %v1244, %v1668
    %v2604 = vadd.f32 %v1258, %v1682
    %v2605 = vadd.f32 %v1266, %v1690
    %v2606 = vadd.f32 %v1268, %v1692
    %v2607 = vadd.f32 %v1251, %v1675
    %v2608 = vadd.f32 %v1265, %v1689
    %v2609 = vadd.f32 %v1267, %v1691
    %v2610 = vadd.f32 %v1269, %v1693
    %v2611 = vadd.f32 %v1293, %v1717
    %v2612 = vadd.f32 %v1307, %v1731
    %v2613 = vadd.f32 %v1315, %v1739
    %v2614 = vadd.f32 %v1316, %v1740
    %v2615 = vadd.f32 %v1300, %v1724
    %v2616 = vadd.f32 %v1314, %v1738
    %v2617 = vadd.f32 %v2092, %v2516
    %v2618 = vadd.f32 %v2106, %v2530
    %v2619 = vadd.f32 %v2114, %v2538
    %v2620 = vadd.f32 %v2116, %v2540
    %v2621 = vadd.f32 %v2099, %v2523
    %v2622 = vadd.f32 %v2113, %v2537
    %v2623 = vadd.f32 %v2115, %v2539
    %v2624 = vadd.f32 %v2117, %v2541
    %v2625 = vadd.f32 %v2141, %v2565
    %v2626 = vadd.f32 %v2155, %v2579
    %v2627 = vadd.f32 %v2163, %v2587
    %v2628 = vadd.f32 %v2164, %v2588
    %v2629 = vadd.f32 %v2148, %v2572
    %v2630 = vadd.f32 %v2162, %v2586
    %v2631 = vld [vmem:[%s2] sm:$0xff]
    %v2632 = vld [vmem:[%s2 + $0x8] sm:$0xff]
    %v2633 = vld [vmem:[%s2 + $0x10] sm:$0xff]
    %v2634 = vld [vmem:[%s2 + $0x18] sm:$0xff]
    %v2635 = vld [vmem:[%s2 + $0x20] sm:$0xff]
    %v2636 = vld [vmem:[%s2 + $0x28] sm:$0xff]
    %v2637 = vld [vmem:[%s2 + $0x30] sm:$0xff]
    %v2638 = vld [vmem:[%s2 + $0x38] sm:$0xff]
    %v2639 = vld [vmem:[%s2 + $0x40] sm:$0xff]
    %v2640 = vld [vmem:[%s2 + $0x48] sm:$0xff]
    %v2641 = vld [vmem:[%s2 + $0x50] sm:$0xff]
    %v2642 = vld [vmem:[%s2 + $0x58] sm:$0xff]
    %v2643 = vld [vmem:[%s2 + $0x60] sm:$0xff]
    %v2644 = vld [vmem:[%s2 + $0x68] sm:$0xff]
    %v2655 = vcombine.low %v2603, %v2604
    %v2656 = vcombine.low %v2605, %v2606
    %v2657 = vcombine.low %v2607, %v2610
    %v2658 = vcombine.low %v2611, %v2612
    %v2660 = vunpack.c.l.s4 1966171168
    %v2661 = vunpack.c.0.s8 %v2660
    %v2662 = vlaneseq
    %v2663 = vshrl.u32 %v2662, 7
    %v2664 = vsub.s32 %v2661, %v2663
    %v2665 = vrot.slane %v2655, %v2664
    %v2667 = vunpack.c.l.s4 1966171168
    %v2668 = vunpack.c.0.s8 %v2667
    %v2669 = vlaneseq
    %v2670 = vshrl.u32 %v2669, 7
    %v2671 = vsub.s32 %v2668, %v2670
    %v2672 = vrot.slane %v2656, %v2671
    %v2674 = vunpack.c.l.s4 1966171168
    %v2675 = vunpack.c.0.s8 %v2674
    %v2676 = vlaneseq
    %v2677 = vshrl.u32 %v2676, 7
    %v2678 = vsub.s32 %v2675, %v2677
    %v2679 = vrot.slane %v2657, %v2678
    %v2681 = vunpack.c.l.s4 1966171168
    %v2682 = vunpack.c.0.s8 %v2681
    %v2683 = vlaneseq
    %v2684 = vshrl.u32 %v2683, 7
    %v2685 = vsub.s32 %v2682, %v2684
    %v2686 = vrot.slane %v2658, %v2685
    %v2687 = vcombine.low %v2665, %v2672
    %v2688 = vcombine.low %v2679, %v2686
    %v2690 = vunpack.c.l.s4 1966171168
    %v2691 = vunpack.c.0.s8 %v2690
    %v2692 = vlaneseq
    %v2693 = vshrl.u32 %v2692, 7
    %v2694 = vsub.s32 %v2691, %v2693
    %v2695 = vrot.slane %v2687, %v2694
    %v2697 = vunpack.c.l.s4 1966171168
    %v2698 = vunpack.c.0.s8 %v2697
    %v2699 = vlaneseq
    %v2700 = vshrl.u32 %v2699, 7
    %v2701 = vsub.s32 %v2698, %v2700
    %v2702 = vrot.slane %v2688, %v2701
    %v2703 = vcombine.low %v2695, %v2702
    %v2704 = vcombine.low %v2613, %v2614
    %v2706 = vunpack.c.l.s4 1966171168
    %v2707 = vunpack.c.0.s8 %v2706
    %v2708 = vlaneseq
    %v2709 = vshrl.u32 %v2708, 7
    %v2710 = vsub.s32 %v2707, %v2709
    %v2711 = vrot.slane %v2704, %v2710
    %v2713 = vunpack.c.l.s4 1966171168
    %v2714 = vunpack.c.0.s8 %v2713
    %v2715 = vlaneseq
    %v2716 = vshrl.u32 %v2715, 7
    %v2717 = vsub.s32 %v2714, %v2716
    %v2718 = vrot.slane %v2711, %v2717
    %v2721 = vpack.c.bf16 %v2718, %v2703
    %s2722 = scalar_lea.vmem %s2, 112
    %v2723 = vld [vmem:[%s2722] sm:$0xff]
    %v2724 = vld [vmem:[%s2722 + $0x8] sm:$0xff]
    %v2725 = vld [vmem:[%s2722 + $0x10] sm:$0xff]
    %v2726 = vld [vmem:[%s2722 + $0x18] sm:$0xff]
    %v2727 = vld [vmem:[%s2722 + $0x20] sm:$0xff]
    %v2728 = vld [vmem:[%s2722 + $0x28] sm:$0xff]
    %v2729 = vld [vmem:[%s2722 + $0x30] sm:$0xff]
    %v2730 = vld [vmem:[%s2722 + $0x38] sm:$0xff]
    %v2731 = vld [vmem:[%s2722 + $0x40] sm:$0xff]
    %v2732 = vld [vmem:[%s2722 + $0x48] sm:$0xff]
    %v2733 = vld [vmem:[%s2722 + $0x50] sm:$0xff]
    %v2734 = vld [vmem:[%s2722 + $0x58] sm:$0xff]
    %v2735 = vld [vmem:[%s2722 + $0x60] sm:$0xff]
    %v2736 = vld [vmem:[%s2722 + $0x68] sm:$0xff]
    %v2747 = vcombine.low %v2617, %v2618
    %v2748 = vcombine.low %v2619, %v2620
    %v2749 = vcombine.low %v2621, %v2624
    %v2750 = vcombine.low %v2625, %v2626
    %v2752 = vunpack.c.l.s4 1966171168
    %v2753 = vunpack.c.0.s8 %v2752
    %v2754 = vlaneseq
    %v2755 = vshrl.u32 %v2754, 7
    %v2756 = vsub.s32 %v2753, %v2755
    %v2757 = vrot.slane %v2747, %v2756
    %v2759 = vunpack.c.l.s4 1966171168
    %v2760 = vunpack.c.0.s8 %v2759
    %v2761 = vlaneseq
    %v2762 = vshrl.u32 %v2761, 7
    %v2763 = vsub.s32 %v2760, %v2762
    %v2764 = vrot.slane %v2748, %v2763
    %v2766 = vunpack.c.l.s4 1966171168
    %v2767 = vunpack.c.0.s8 %v2766
    %v2768 = vlaneseq
    %v2769 = vshrl.u32 %v2768, 7
    %v2770 = vsub.s32 %v2767, %v2769
    %v2771 = vrot.slane %v2749, %v2770
    %v2773 = vunpack.c.l.s4 1966171168
    %v2774 = vunpack.c.0.s8 %v2773
    %v2775 = vlaneseq
    %v2776 = vshrl.u32 %v2775, 7
    %v2777 = vsub.s32 %v2774, %v2776
    %v2778 = vrot.slane %v2750, %v2777
    %v2779 = vcombine.low %v2757, %v2764
    %v2780 = vcombine.low %v2771, %v2778
    %v2782 = vunpack.c.l.s4 1966171168
    %v2783 = vunpack.c.0.s8 %v2782
    %v2784 = vlaneseq
    %v2785 = vshrl.u32 %v2784, 7
    %v2786 = vsub.s32 %v2783, %v2785
    %v2787 = vrot.slane %v2779, %v2786
    %v2789 = vunpack.c.l.s4 1966171168
    %v2790 = vunpack.c.0.s8 %v2789
    %v2791 = vlaneseq
    %v2792 = vshrl.u32 %v2791, 7
    %v2793 = vsub.s32 %v2790, %v2792
    %v2794 = vrot.slane %v2780, %v2793
    %v2795 = vcombine.low %v2787, %v2794
    %v2796 = vcombine.low %v2627, %v2628
    %v2798 = vunpack.c.l.s4 1966171168
    %v2799 = vunpack.c.0.s8 %v2798
    %v2800 = vlaneseq
    %v2801 = vshrl.u32 %v2800, 7
    %v2802 = vsub.s32 %v2799, %v2801
    %v2803 = vrot.slane %v2796, %v2802
    %v2805 = vunpack.c.l.s4 1966171168
    %v2806 = vunpack.c.0.s8 %v2805
    %v2807 = vlaneseq
    %v2808 = vshrl.u32 %v2807, 7
    %v2809 = vsub.s32 %v2806, %v2808
    %v2810 = vrot.slane %v2803, %v2809
    %v2813 = vpack.c.bf16 %v2810, %v2795
    %v2828 = vunpack.c.l.b16 %v2723
    %v2829 = vunpack.c.h.b16 %v2723
    %v2830 = vunpack.c.l.b16 %v2724
    %v2831 = vunpack.c.h.b16 %v2724
    %v2832 = vunpack.c.l.b16 %v2725
    %v2833 = vunpack.c.h.b16 %v2725
    %v2834 = vunpack.c.l.b16 %v2726
    %v2835 = vunpack.c.h.b16 %v2726
    %v2836 = vunpack.c.l.b16 %v2727
    %v2837 = vunpack.c.h.b16 %v2727
    %v2838 = vunpack.c.l.b16 %v2728
    %v2839 = vunpack.c.h.b16 %v2728
    %v2840 = vunpack.c.l.b16 %v2729
    %v2841 = vunpack.c.h.b16 %v2729
    %v2842 = vunpack.c.l.b16 %v2730
    %v2843 = vunpack.c.h.b16 %v2730
    %v2844 = vunpack.c.l.b16 %v2731
    %v2845 = vunpack.c.h.b16 %v2731
    %v2846 = vunpack.c.l.b16 %v2732
    %v2847 = vunpack.c.h.b16 %v2732
    %v2848 = vunpack.c.l.b16 %v2733
    %v2849 = vunpack.c.h.b16 %v2733
    %v2850 = vunpack.c.l.b16 %v2734
    %v2851 = vunpack.c.h.b16 %v2734
    %v2852 = vunpack.c.l.b16 %v2735
    %v2853 = vunpack.c.h.b16 %v2735
    %v2854 = vunpack.c.l.b16 %v2736
    %v2855 = vunpack.c.h.b16 %v2736
    %v2856 = vpack.c.b16 %v2830, %v2828
    %v2857 = vpack.c.b16 %v2831, %v2829
    %v2858 = vpack.c.b16 %v2834, %v2832
    %v2859 = vpack.c.b16 %v2835, %v2833
    %v2860 = vpack.c.b16 %v2838, %v2836
    %v2861 = vpack.c.b16 %v2839, %v2837
    %v2862 = vpack.c.b16 %v2842, %v2840
    %v2863 = vpack.c.b16 %v2843, %v2841
    %v2864 = vpack.c.b16 %v2846, %v2844
    %v2865 = vpack.c.b16 %v2847, %v2845
    %v2866 = vpack.c.b16 %v2850, %v2848
    %v2867 = vpack.c.b16 %v2851, %v2849
    %v2868 = vpack.c.b16 %v2854, %v2852
    %v2869 = vpack.c.b16 %v2855, %v2853
    %vm2884 = vcmask 916480
    %v2886 = vsel %vm2884, %v2813, 0
    %2888 = vmatprep.subr.bf16.mxu0 %v2857
    %2889 = vmatpush1.bf16.msra.mxu0 %v2856
    %2890 = vmatprep.subr.bf16.mxu0 %v2859
    %2891 = vmatpush1.bf16.msra.mxu0 %v2858
    %2892 = vmatprep.subr.bf16.mxu0 %v2861
    %2893 = vmatpush1.bf16.msra.mxu0 %v2860
    %2894 = vmatprep.subr.bf16.mxu0 %v2863
    %2895 = vmatpush1.bf16.msra.mxu0 %v2862
    %2896 = vmatprep.subr.bf16.mxu0 %v2865
    %2897 = vmatpush1.bf16.msra.mxu0 %v2864
    %2898 = vmatprep.subr.bf16.mxu0 %v2867
    %2899 = vmatpush1.bf16.msra.mxu0 %v2866
    %2900 = vmatprep.subr.bf16.mxu0 %v2869
    %2901 = vmatpush1.bf16.msra.mxu0 %v2868
    %2902 = vmatprep.subr.bf16.mxu0 0
    %2903 = vmatpush1.bf16.msra.mxu0 0
    %2904 = vmatprep.subr.bf16.mxu0 0
    %2905 = vmatpush1.bf16.msra.mxu0 0
    %2906 = vmatprep.subr.bf16.mxu0 0
    %2907 = vmatpush1.bf16.msra.mxu0 0
    %2908 = vmatprep.subr.bf16.mxu0 0
    %2909 = vmatpush1.bf16.msra.mxu0 0
    %2910 = vmatprep.subr.bf16.mxu0 0
    %2911 = vmatpush1.bf16.msra.mxu0 0
    %2912 = vmatprep.subr.bf16.mxu0 0
    %2913 = vmatpush1.bf16.msra.mxu0 0
    %2914 = vmatprep.subr.bf16.mxu0 0
    %2915 = vmatpush1.bf16.msra.mxu0 0
    %2916 = vmatprep.subr.bf16.mxu0 0
    %2917 = vmatpush1.bf16.msra.mxu0 0
    %2918 = vmatprep.subr.bf16.mxu0 0
    %2919 = vmatpush1.bf16.msra.mxu0 0
    %2920 = vmatprep.mubr.bf16.mxu0 0
    %2921 = vmatmul.mubr.bf16.gmra.mrb[0].mxu0 %v2886
    %v2922 = vpop.f32.mrb[0].mxu0
    %v2923 = vadd.f32 0.0, %v2922
    %v2924 = vpop.f32.mrb[0].mxu0
    %v2925 = vadd.f32 0.0, %v2924
    %v2926 = vpop.f32.mrb[0].mxu0
    %v2927 = vadd.f32 0.0, %v2926
    %v2928 = vpop.f32.mrb[0].mxu0
    %v2929 = vadd.f32 0.0, %v2928
    %2930 = vdwg.mxu0
    %v2945 = vunpack.c.l.b16 %v2631
    %v2946 = vunpack.c.h.b16 %v2631
    %v2947 = vunpack.c.l.b16 %v2632
    %v2948 = vunpack.c.h.b16 %v2632
    %v2949 = vunpack.c.l.b16 %v2633
    %v2950 = vunpack.c.h.b16 %v2633
    %v2951 = vunpack.c.l.b16 %v2634
    %v2952 = vunpack.c.h.b16 %v2634
    %v2953 = vunpack.c.l.b16 %v2635
    %v2954 = vunpack.c.h.b16 %v2635
    %v2955 = vunpack.c.l.b16 %v2636
    %v2956 = vunpack.c.h.b16 %v2636
    %v2957 = vunpack.c.l.b16 %v2637
    %v2958 = vunpack.c.h.b16 %v2637
    %v2959 = vunpack.c.l.b16 %v2638
    %v2960 = vunpack.c.h.b16 %v2638
    %v2961 = vunpack.c.l.b16 %v2639
    %v2962 = vunpack.c.h.b16 %v2639
    %v2963 = vunpack.c.l.b16 %v2640
    %v2964 = vunpack.c.h.b16 %v2640
    %v2965 = vunpack.c.l.b16 %v2641
    %v2966 = vunpack.c.h.b16 %v2641
    %v2967 = vunpack.c.l.b16 %v2642
    %v2968 = vunpack.c.h.b16 %v2642
    %v2969 = vunpack.c.l.b16 %v2643
    %v2970 = vunpack.c.h.b16 %v2643
    %v2971 = vunpack.c.l.b16 %v2644
    %v2972 = vunpack.c.h.b16 %v2644
    %v2973 = vpack.c.b16 %v2947, %v2945
    %v2974 = vpack.c.b16 %v2948, %v2946
    %v2975 = vpack.c.b16 %v2951, %v2949
    %v2976 = vpack.c.b16 %v2952, %v2950
    %v2977 = vpack.c.b16 %v2955, %v2953
    %v2978 = vpack.c.b16 %v2956, %v2954
    %v2979 = vpack.c.b16 %v2959, %v2957
    %v2980 = vpack.c.b16 %v2960, %v2958
    %v2981 = vpack.c.b16 %v2963, %v2961
    %v2982 = vpack.c.b16 %v2964, %v2962
    %v2983 = vpack.c.b16 %v2967, %v2965
    %v2984 = vpack.c.b16 %v2968, %v2966
    %v2985 = vpack.c.b16 %v2971, %v2969
    %v2986 = vpack.c.b16 %v2972, %v2970
    %v3002 = vsel %vm2884, %v2721, 0
    %3004 = vmatprep.subr.bf16.mxu0 %v2974
    %3005 = vmatpush1.bf16.msra.mxu0 %v2973
    %3006 = vmatprep.subr.bf16.mxu0 %v2976
    %3007 = vmatpush1.bf16.msra.mxu0 %v2975
    %3008 = vmatprep.subr.bf16.mxu0 %v2978
    %3009 = vmatpush1.bf16.msra.mxu0 %v2977
    %3010 = vmatprep.subr.bf16.mxu0 %v2980
    %3011 = vmatpush1.bf16.msra.mxu0 %v2979
    %3012 = vmatprep.subr.bf16.mxu0 %v2982
    %3013 = vmatpush1.bf16.msra.mxu0 %v2981
    %3014 = vmatprep.subr.bf16.mxu0 %v2984
    %3015 = vmatpush1.bf16.msra.mxu0 %v2983
    %3016 = vmatprep.subr.bf16.mxu0 %v2986
    %3017 = vmatpush1.bf16.msra.mxu0 %v2985
    %3018 = vmatprep.subr.bf16.mxu0 0
    %3019 = vmatpush1.bf16.msra.mxu0 0
    %3020 = vmatprep.subr.bf16.mxu0 0
    %3021 = vmatpush1.bf16.msra.mxu0 0
    %3022 = vmatprep.subr.bf16.mxu0 0
    %3023 = vmatpush1.bf16.msra.mxu0 0
    %3024 = vmatprep.subr.bf16.mxu0 0
    %3025 = vmatpush1.bf16.msra.mxu0 0
    %3026 = vmatprep.subr.bf16.mxu0 0
    %3027 = vmatpush1.bf16.msra.mxu0 0
    %3028 = vmatprep.subr.bf16.mxu0 0
    %3029 = vmatpush1.bf16.msra.mxu0 0
    %3030 = vmatprep.subr.bf16.mxu0 0
    %3031 = vmatpush1.bf16.msra.mxu0 0
    %3032 = vmatprep.subr.bf16.mxu0 0
    %3033 = vmatpush1.bf16.msra.mxu0 0
    %3034 = vmatprep.subr.bf16.mxu0 0
    %3035 = vmatpush1.bf16.msra.mxu0 0
    %3036 = vmatprep.mubr.bf16.mxu0 0
    %3037 = vmatmul.mubr.bf16.gmra.mrb[0].mxu0 %v3002
    %v3038 = vpop.f32.mrb[0].mxu0
    %v3039 = vadd.f32 %v2923, %v3038
    %v3040 = vpop.f32.mrb[0].mxu0
    %v3041 = vadd.f32 %v2925, %v3040
    %v3042 = vpop.f32.mrb[0].mxu0
    %v3043 = vadd.f32 %v2927, %v3042
    %v3044 = vpop.f32.mrb[0].mxu0
    %v3045 = vadd.f32 %v2929, %v3044
    %3046 = vdwg.mxu0
    %s3047 = scalar_lea.vmem %s2, 224
    %v3048 = vld [vmem:[%s3047] sm:$0xff]
    %v3049 = vld [vmem:[%s3047 + $0x8] sm:$0xff]
    %v3050 = vld [vmem:[%s3047 + $0x10] sm:$0xff]
    %v3051 = vld [vmem:[%s3047 + $0x18] sm:$0xff]
    %v3052 = vld [vmem:[%s3047 + $0x20] sm:$0xff]
    %v3053 = vld [vmem:[%s3047 + $0x28] sm:$0xff]
    %v3054 = vld [vmem:[%s3047 + $0x30] sm:$0xff]
    %v3055 = vld [vmem:[%s3047 + $0x38] sm:$0xff]
    %v3056 = vld [vmem:[%s3047 + $0x40] sm:$0xff]
    %v3057 = vld [vmem:[%s3047 + $0x48] sm:$0xff]
    %v3058 = vld [vmem:[%s3047 + $0x50] sm:$0xff]
    %v3059 = vld [vmem:[%s3047 + $0x58] sm:$0xff]
    %v3060 = vld [vmem:[%s3047 + $0x60] sm:$0xff]
    %v3061 = vld [vmem:[%s3047 + $0x68] sm:$0xff]
    %v3064 = vcombine.low %v2604, %v2605
    %v3065 = vcombine.low %v2606, %v2607
    %v3066 = vcombine.low %v2608, %v2611
    %v3067 = vcombine.low %v2612, %v2613
    %v3069 = vunpack.c.l.s4 1966171168
    %v3070 = vunpack.c.0.s8 %v3069
    %v3071 = vlaneseq
    %v3072 = vshrl.u32 %v3071, 7
    %v3073 = vsub.s32 %v3070, %v3072
    %v3074 = vrot.slane %v3064, %v3073
    %v3076 = vunpack.c.l.s4 1966171168
    %v3077 = vunpack.c.0.s8 %v3076
    %v3078 = vlaneseq
    %v3079 = vshrl.u32 %v3078, 7
    %v3080 = vsub.s32 %v3077, %v3079
    %v3081 = vrot.slane %v3065, %v3080
    %v3083 = vunpack.c.l.s4 1966171168
    %v3084 = vunpack.c.0.s8 %v3083
    %v3085 = vlaneseq
    %v3086 = vshrl.u32 %v3085, 7
    %v3087 = vsub.s32 %v3084, %v3086
    %v3088 = vrot.slane %v3066, %v3087
    %v3090 = vunpack.c.l.s4 1966171168
    %v3091 = vunpack.c.0.s8 %v3090
    %v3092 = vlaneseq
    %v3093 = vshrl.u32 %v3092, 7
    %v3094 = vsub.s32 %v3091, %v3093
    %v3095 = vrot.slane %v3067, %v3094
    %v3096 = vcombine.low %v3074, %v3081
    %v3097 = vcombine.low %v3088, %v3095
    %v3099 = vunpack.c.l.s4 1966171168
    %v3100 = vunpack.c.0.s8 %v3099
    %v3101 = vlaneseq
    %v3102 = vshrl.u32 %v3101, 7
    %v3103 = vsub.s32 %v3100, %v3102
    %v3104 = vrot.slane %v3096, %v3103
    %v3106 = vunpack.c.l.s4 1966171168
    %v3107 = vunpack.c.0.s8 %v3106
    %v3108 = vlaneseq
    %v3109 = vshrl.u32 %v3108, 7
    %v3110 = vsub.s32 %v3107, %v3109
    %v3111 = vrot.slane %v3097, %v3110
    %v3112 = vcombine.low %v3104, %v3111
    %v3113 = vcombine.low %v2614, %v2615
    %v3115 = vunpack.c.l.s4 1966171168
    %v3116 = vunpack.c.0.s8 %v3115
    %v3117 = vlaneseq
    %v3118 = vshrl.u32 %v3117, 7
    %v3119 = vsub.s32 %v3116, %v3118
    %v3120 = vrot.slane %v3113, %v3119
    %v3122 = vunpack.c.l.s4 1966171168
    %v3123 = vunpack.c.0.s8 %v3122
    %v3124 = vlaneseq
    %v3125 = vshrl.u32 %v3124, 7
    %v3126 = vsub.s32 %v3123, %v3125
    %v3127 = vrot.slane %v3120, %v3126
    %v3130 = vpack.c.bf16 %v3127, %v3112
    %v3145 = vunpack.c.l.b16 %v3048
    %v3146 = vunpack.c.h.b16 %v3048
    %v3147 = vunpack.c.l.b16 %v3049
    %v3148 = vunpack.c.h.b16 %v3049
    %v3149 = vunpack.c.l.b16 %v3050
    %v3150 = vunpack.c.h.b16 %v3050
    %v3151 = vunpack.c.l.b16 %v3051
    %v3152 = vunpack.c.h.b16 %v3051
    %v3153 = vunpack.c.l.b16 %v3052
    %v3154 = vunpack.c.h.b16 %v3052
    %v3155 = vunpack.c.l.b16 %v3053
    %v3156 = vunpack.c.h.b16 %v3053
    %v3157 = vunpack.c.l.b16 %v3054
    %v3158 = vunpack.c.h.b16 %v3054
    %v3159 = vunpack.c.l.b16 %v3055
    %v3160 = vunpack.c.h.b16 %v3055
    %v3161 = vunpack.c.l.b16 %v3056
    %v3162 = vunpack.c.h.b16 %v3056
    %v3163 = vunpack.c.l.b16 %v3057
    %v3164 = vunpack.c.h.b16 %v3057
    %v3165 = vunpack.c.l.b16 %v3058
    %v3166 = vunpack.c.h.b16 %v3058
    %v3167 = vunpack.c.l.b16 %v3059
    %v3168 = vunpack.c.h.b16 %v3059
    %v3169 = vunpack.c.l.b16 %v3060
    %v3170 = vunpack.c.h.b16 %v3060
    %v3171 = vunpack.c.l.b16 %v3061
    %v3172 = vunpack.c.h.b16 %v3061
    %v3173 = vpack.c.b16 %v3147, %v3145
    %v3174 = vpack.c.b16 %v3148, %v3146
    %v3175 = vpack.c.b16 %v3151, %v3149
    %v3176 = vpack.c.b16 %v3152, %v3150
    %v3177 = vpack.c.b16 %v3155, %v3153
    %v3178 = vpack.c.b16 %v3156, %v3154
    %v3179 = vpack.c.b16 %v3159, %v3157
    %v3180 = vpack.c.b16 %v3160, %v3158
    %v3181 = vpack.c.b16 %v3163, %v3161
    %v3182 = vpack.c.b16 %v3164, %v3162
    %v3183 = vpack.c.b16 %v3167, %v3165
    %v3184 = vpack.c.b16 %v3168, %v3166
    %v3185 = vpack.c.b16 %v3171, %v3169
    %v3186 = vpack.c.b16 %v3172, %v3170
    %v3202 = vsel %vm2884, %v3130, 0
    %3204 = vmatprep.subr.bf16.mxu0 %v3174
    %3205 = vmatpush1.bf16.msra.mxu0 %v3173
    %3206 = vmatprep.subr.bf16.mxu0 %v3176
    %3207 = vmatpush1.bf16.msra.mxu0 %v3175
    %3208 = vmatprep.subr.bf16.mxu0 %v3178
    %3209 = vmatpush1.bf16.msra.mxu0 %v3177
    %3210 = vmatprep.subr.bf16.mxu0 %v3180
    %3211 = vmatpush1.bf16.msra.mxu0 %v3179
    %3212 = vmatprep.subr.bf16.mxu0 %v3182
    %3213 = vmatpush1.bf16.msra.mxu0 %v3181
    %3214 = vmatprep.subr.bf16.mxu0 %v3184
    %3215 = vmatpush1.bf16.msra.mxu0 %v3183
    %3216 = vmatprep.subr.bf16.mxu0 %v3186
    %3217 = vmatpush1.bf16.msra.mxu0 %v3185
    %3218 = vmatprep.subr.bf16.mxu0 0
    %3219 = vmatpush1.bf16.msra.mxu0 0
    %3220 = vmatprep.subr.bf16.mxu0 0
    %3221 = vmatpush1.bf16.msra.mxu0 0
    %3222 = vmatprep.subr.bf16.mxu0 0
    %3223 = vmatpush1.bf16.msra.mxu0 0
    %3224 = vmatprep.subr.bf16.mxu0 0
    %3225 = vmatpush1.bf16.msra.mxu0 0
    %3226 = vmatprep.subr.bf16.mxu0 0
    %3227 = vmatpush1.bf16.msra.mxu0 0
    %3228 = vmatprep.subr.bf16.mxu0 0
    %3229 = vmatpush1.bf16.msra.mxu0 0
    %3230 = vmatprep.subr.bf16.mxu0 0
    %3231 = vmatpush1.bf16.msra.mxu0 0
    %3232 = vmatprep.subr.bf16.mxu0 0
    %3233 = vmatpush1.bf16.msra.mxu0 0
    %3234 = vmatprep.subr.bf16.mxu0 0
    %3235 = vmatpush1.bf16.msra.mxu0 0
    %3236 = vmatprep.mubr.bf16.mxu0 0
    %3237 = vmatmul.mubr.bf16.gmra.mrb[0].mxu0 %v3202
    %v3238 = vpop.f32.mrb[0].mxu0
    %v3239 = vadd.f32 0.0, %v3238
    %v3240 = vpop.f32.mrb[0].mxu0
    %v3241 = vadd.f32 0.0, %v3240
    %v3242 = vpop.f32.mrb[0].mxu0
    %v3243 = vadd.f32 0.0, %v3242
    %v3244 = vpop.f32.mrb[0].mxu0
    %v3245 = vadd.f32 0.0, %v3244
    %3246 = vdwg.mxu0
    %v3247 = vadd.f32 %v3039, %v3239
    %v3248 = vadd.f32 %v3041, %v3241
    %v3249 = vadd.f32 %v3043, %v3243
    %v3250 = vadd.f32 %v3045, %v3245
    %s3251 = scalar_lea.vmem %s2, 336
    %v3252 = vld [vmem:[%s3251] sm:$0xff]
    %v3253 = vld [vmem:[%s3251 + $0x8] sm:$0xff]
    %v3254 = vld [vmem:[%s3251 + $0x10] sm:$0xff]
    %v3255 = vld [vmem:[%s3251 + $0x18] sm:$0xff]
    %v3256 = vld [vmem:[%s3251 + $0x20] sm:$0xff]
    %v3257 = vld [vmem:[%s3251 + $0x28] sm:$0xff]
    %v3258 = vld [vmem:[%s3251 + $0x30] sm:$0xff]
    %v3259 = vld [vmem:[%s3251 + $0x38] sm:$0xff]
    %v3260 = vld [vmem:[%s3251 + $0x40] sm:$0xff]
    %v3261 = vld [vmem:[%s3251 + $0x48] sm:$0xff]
    %v3262 = vld [vmem:[%s3251 + $0x50] sm:$0xff]
    %v3263 = vld [vmem:[%s3251 + $0x58] sm:$0xff]
    %v3264 = vld [vmem:[%s3251 + $0x60] sm:$0xff]
    %v3265 = vld [vmem:[%s3251 + $0x68] sm:$0xff]
    %v3268 = vcombine.low %v2618, %v2619
    %v3269 = vcombine.low %v2620, %v2621
    %v3270 = vcombine.low %v2622, %v2625
    %v3271 = vcombine.low %v2626, %v2627
    %v3273 = vunpack.c.l.s4 1966171168
    %v3274 = vunpack.c.0.s8 %v3273
    %v3275 = vlaneseq
    %v3276 = vshrl.u32 %v3275, 7
    %v3277 = vsub.s32 %v3274, %v3276
    %v3278 = vrot.slane %v3268, %v3277
    %v3280 = vunpack.c.l.s4 1966171168
    %v3281 = vunpack.c.0.s8 %v3280
    %v3282 = vlaneseq
    %v3283 = vshrl.u32 %v3282, 7
    %v3284 = vsub.s32 %v3281, %v3283
    %v3285 = vrot.slane %v3269, %v3284
    %v3287 = vunpack.c.l.s4 1966171168
    %v3288 = vunpack.c.0.s8 %v3287
    %v3289 = vlaneseq
    %v3290 = vshrl.u32 %v3289, 7
    %v3291 = vsub.s32 %v3288, %v3290
    %v3292 = vrot.slane %v3270, %v3291
    %v3294 = vunpack.c.l.s4 1966171168
    %v3295 = vunpack.c.0.s8 %v3294
    %v3296 = vlaneseq
    %v3297 = vshrl.u32 %v3296, 7
    %v3298 = vsub.s32 %v3295, %v3297
    %v3299 = vrot.slane %v3271, %v3298
    %v3300 = vcombine.low %v3278, %v3285
    %v3301 = vcombine.low %v3292, %v3299
    %v3303 = vunpack.c.l.s4 1966171168
    %v3304 = vunpack.c.0.s8 %v3303
    %v3305 = vlaneseq
    %v3306 = vshrl.u32 %v3305, 7
    %v3307 = vsub.s32 %v3304, %v3306
    %v3308 = vrot.slane %v3300, %v3307
    %v3310 = vunpack.c.l.s4 1966171168
    %v3311 = vunpack.c.0.s8 %v3310
    %v3312 = vlaneseq
    %v3313 = vshrl.u32 %v3312, 7
    %v3314 = vsub.s32 %v3311, %v3313
    %v3315 = vrot.slane %v3301, %v3314
    %v3316 = vcombine.low %v3308, %v3315
    %v3317 = vcombine.low %v2628, %v2629
    %v3319 = vunpack.c.l.s4 1966171168
    %v3320 = vunpack.c.0.s8 %v3319
    %v3321 = vlaneseq
    %v3322 = vshrl.u32 %v3321, 7
    %v3323 = vsub.s32 %v3320, %v3322
    %v3324 = vrot.slane %v3317, %v3323
    %v3326 = vunpack.c.l.s4 1966171168
    %v3327 = vunpack.c.0.s8 %v3326
    %v3328 = vlaneseq
    %v3329 = vshrl.u32 %v3328, 7
    %v3330 = vsub.s32 %v3327, %v3329
    %v3331 = vrot.slane %v3324, %v3330
    %v3334 = vpack.c.bf16 %v3331, %v3316
    %v3349 = vunpack.c.l.b16 %v3252
    %v3350 = vunpack.c.h.b16 %v3252
    %v3351 = vunpack.c.l.b16 %v3253
    %v3352 = vunpack.c.h.b16 %v3253
    %v3353 = vunpack.c.l.b16 %v3254
    %v3354 = vunpack.c.h.b16 %v3254
    %v3355 = vunpack.c.l.b16 %v3255
    %v3356 = vunpack.c.h.b16 %v3255
    %v3357 = vunpack.c.l.b16 %v3256
    %v3358 = vunpack.c.h.b16 %v3256
    %v3359 = vunpack.c.l.b16 %v3257
    %v3360 = vunpack.c.h.b16 %v3257
    %v3361 = vunpack.c.l.b16 %v3258
    %v3362 = vunpack.c.h.b16 %v3258
    %v3363 = vunpack.c.l.b16 %v3259
    %v3364 = vunpack.c.h.b16 %v3259
    %v3365 = vunpack.c.l.b16 %v3260
    %v3366 = vunpack.c.h.b16 %v3260
    %v3367 = vunpack.c.l.b16 %v3261
    %v3368 = vunpack.c.h.b16 %v3261
    %v3369 = vunpack.c.l.b16 %v3262
    %v3370 = vunpack.c.h.b16 %v3262
    %v3371 = vunpack.c.l.b16 %v3263
    %v3372 = vunpack.c.h.b16 %v3263
    %v3373 = vunpack.c.l.b16 %v3264
    %v3374 = vunpack.c.h.b16 %v3264
    %v3375 = vunpack.c.l.b16 %v3265
    %v3376 = vunpack.c.h.b16 %v3265
    %v3377 = vpack.c.b16 %v3351, %v3349
    %v3378 = vpack.c.b16 %v3352, %v3350
    %v3379 = vpack.c.b16 %v3355, %v3353
    %v3380 = vpack.c.b16 %v3356, %v3354
    %v3381 = vpack.c.b16 %v3359, %v3357
    %v3382 = vpack.c.b16 %v3360, %v3358
    %v3383 = vpack.c.b16 %v3363, %v3361
    %v3384 = vpack.c.b16 %v3364, %v3362
    %v3385 = vpack.c.b16 %v3367, %v3365
    %v3386 = vpack.c.b16 %v3368, %v3366
    %v3387 = vpack.c.b16 %v3371, %v3369
    %v3388 = vpack.c.b16 %v3372, %v3370
    %v3389 = vpack.c.b16 %v3375, %v3373
    %v3390 = vpack.c.b16 %v3376, %v3374
    %v3406 = vsel %vm2884, %v3334, 0
    %3408 = vmatprep.subr.bf16.mxu0 %v3378
    %3409 = vmatpush1.bf16.msra.mxu0 %v3377
    %3410 = vmatprep.subr.bf16.mxu0 %v3380
    %3411 = vmatpush1.bf16.msra.mxu0 %v3379
    %3412 = vmatprep.subr.bf16.mxu0 %v3382
    %3413 = vmatpush1.bf16.msra.mxu0 %v3381
    %3414 = vmatprep.subr.bf16.mxu0 %v3384
    %3415 = vmatpush1.bf16.msra.mxu0 %v3383
    %3416 = vmatprep.subr.bf16.mxu0 %v3386
    %3417 = vmatpush1.bf16.msra.mxu0 %v3385
    %3418 = vmatprep.subr.bf16.mxu0 %v3388
    %3419 = vmatpush1.bf16.msra.mxu0 %v3387
    %3420 = vmatprep.subr.bf16.mxu0 %v3390
    %3421 = vmatpush1.bf16.msra.mxu0 %v3389
    %3422 = vmatprep.subr.bf16.mxu0 0
    %3423 = vmatpush1.bf16.msra.mxu0 0
    %3424 = vmatprep.subr.bf16.mxu0 0
    %3425 = vmatpush1.bf16.msra.mxu0 0
    %3426 = vmatprep.subr.bf16.mxu0 0
    %3427 = vmatpush1.bf16.msra.mxu0 0
    %3428 = vmatprep.subr.bf16.mxu0 0
    %3429 = vmatpush1.bf16.msra.mxu0 0
    %3430 = vmatprep.subr.bf16.mxu0 0
    %3431 = vmatpush1.bf16.msra.mxu0 0
    %3432 = vmatprep.subr.bf16.mxu0 0
    %3433 = vmatpush1.bf16.msra.mxu0 0
    %3434 = vmatprep.subr.bf16.mxu0 0
    %3435 = vmatpush1.bf16.msra.mxu0 0
    %3436 = vmatprep.subr.bf16.mxu0 0
    %3437 = vmatpush1.bf16.msra.mxu0 0
    %3438 = vmatprep.subr.bf16.mxu0 0
    %3439 = vmatpush1.bf16.msra.mxu0 0
    %3440 = vmatprep.mubr.bf16.mxu0 0
    %3441 = vmatmul.mubr.bf16.gmra.mrb[0].mxu0 %v3406
    %v3442 = vpop.f32.mrb[0].mxu0
    %v3443 = vadd.f32 0.0, %v3442
    %v3444 = vpop.f32.mrb[0].mxu0
    %v3445 = vadd.f32 0.0, %v3444
    %v3446 = vpop.f32.mrb[0].mxu0
    %v3447 = vadd.f32 0.0, %v3446
    %v3448 = vpop.f32.mrb[0].mxu0
    %v3449 = vadd.f32 0.0, %v3448
    %3450 = vdwg.mxu0
    %v3451 = vadd.f32 %v3247, %v3443
    %v3452 = vadd.f32 %v3248, %v3445
    %v3453 = vadd.f32 %v3249, %v3447
    %v3454 = vadd.f32 %v3250, %v3449
    %s3455 = scalar_lea.vmem %s2, 448
    %v3456 = vld [vmem:[%s3455] sm:$0xff]
    %v3457 = vld [vmem:[%s3455 + $0x8] sm:$0xff]
    %v3458 = vld [vmem:[%s3455 + $0x10] sm:$0xff]
    %v3459 = vld [vmem:[%s3455 + $0x18] sm:$0xff]
    %v3460 = vld [vmem:[%s3455 + $0x20] sm:$0xff]
    %v3461 = vld [vmem:[%s3455 + $0x28] sm:$0xff]
    %v3462 = vld [vmem:[%s3455 + $0x30] sm:$0xff]
    %v3463 = vld [vmem:[%s3455 + $0x38] sm:$0xff]
    %v3464 = vld [vmem:[%s3455 + $0x40] sm:$0xff]
    %v3465 = vld [vmem:[%s3455 + $0x48] sm:$0xff]
    %v3466 = vld [vmem:[%s3455 + $0x50] sm:$0xff]
    %v3467 = vld [vmem:[%s3455 + $0x58] sm:$0xff]
    %v3468 = vld [vmem:[%s3455 + $0x60] sm:$0xff]
    %v3469 = vld [vmem:[%s3455 + $0x68] sm:$0xff]
    %v3472 = vcombine.low %v2607, %v2608
    %v3473 = vcombine.low %v2609, %v2612
    %v3475 = vunpack.c.l.s4 1966171168
    %v3476 = vunpack.c.0.s8 %v3475
    %v3477 = vlaneseq
    %v3478 = vshrl.u32 %v3477, 7
    %v3479 = vsub.s32 %v3476, %v3478
    %v3480 = vrot.slane %v3472, %v3479
    %v3482 = vunpack.c.l.s4 1966171168
    %v3483 = vunpack.c.0.s8 %v3482
    %v3484 = vlaneseq
    %v3485 = vshrl.u32 %v3484, 7
    %v3486 = vsub.s32 %v3483, %v3485
    %v3487 = vrot.slane %v3473, %v3486
    %v3488 = vcombine.low %v2672, %v3480
    %v3489 = vcombine.low %v3487, %v2711
    %v3491 = vunpack.c.l.s4 1966171168
    %v3492 = vunpack.c.0.s8 %v3491
    %v3493 = vlaneseq
    %v3494 = vshrl.u32 %v3493, 7
    %v3495 = vsub.s32 %v3492, %v3494
    %v3496 = vrot.slane %v3488, %v3495
    %v3498 = vunpack.c.l.s4 1966171168
    %v3499 = vunpack.c.0.s8 %v3498
    %v3500 = vlaneseq
    %v3501 = vshrl.u32 %v3500, 7
    %v3502 = vsub.s32 %v3499, %v3501
    %v3503 = vrot.slane %v3489, %v3502
    %v3504 = vcombine.low %v3496, %v3503
    %v3505 = vcombine.low %v2615, %v2616
    %v3507 = vunpack.c.l.s4 1966171168
    %v3508 = vunpack.c.0.s8 %v3507
    %v3509 = vlaneseq
    %v3510 = vshrl.u32 %v3509, 7
    %v3511 = vsub.s32 %v3508, %v3510
    %v3512 = vrot.slane %v3505, %v3511
    %v3514 = vunpack.c.l.s4 1966171168
    %v3515 = vunpack.c.0.s8 %v3514
    %v3516 = vlaneseq
    %v3517 = vshrl.u32 %v3516, 7
    %v3518 = vsub.s32 %v3515, %v3517
    %v3519 = vrot.slane %v3512, %v3518
    %v3522 = vpack.c.bf16 %v3519, %v3504
    %v3537 = vunpack.c.l.b16 %v3456
    %v3538 = vunpack.c.h.b16 %v3456
    %v3539 = vunpack.c.l.b16 %v3457
    %v3540 = vunpack.c.h.b16 %v3457
    %v3541 = vunpack.c.l.b16 %v3458
    %v3542 = vunpack.c.h.b16 %v3458
    %v3543 = vunpack.c.l.b16 %v3459
    %v3544 = vunpack.c.h.b16 %v3459
    %v3545 = vunpack.c.l.b16 %v3460
    %v3546 = vunpack.c.h.b16 %v3460
    %v3547 = vunpack.c.l.b16 %v3461
    %v3548 = vunpack.c.h.b16 %v3461
    %v3549 = vunpack.c.l.b16 %v3462
    %v3550 = vunpack.c.h.b16 %v3462
    %v3551 = vunpack.c.l.b16 %v3463
    %v3552 = vunpack.c.h.b16 %v3463
    %v3553 = vunpack.c.l.b16 %v3464
    %v3554 = vunpack.c.h.b16 %v3464
    %v3555 = vunpack.c.l.b16 %v3465
    %v3556 = vunpack.c.h.b16 %v3465
    %v3557 = vunpack.c.l.b16 %v3466
    %v3558 = vunpack.c.h.b16 %v3466
    %v3559 = vunpack.c.l.b16 %v3467
    %v3560 = vunpack.c.h.b16 %v3467
    %v3561 = vunpack.c.l.b16 %v3468
    %v3562 = vunpack.c.h.b16 %v3468
    %v3563 = vunpack.c.l.b16 %v3469
    %v3564 = vunpack.c.h.b16 %v3469
    %v3565 = vpack.c.b16 %v3539, %v3537
    %v3566 = vpack.c.b16 %v3540, %v3538
    %v3567 = vpack.c.b16 %v3543, %v3541
    %v3568 = vpack.c.b16 %v3544, %v3542
    %v3569 = vpack.c.b16 %v3547, %v3545
    %v3570 = vpack.c.b16 %v3548, %v3546
    %v3571 = vpack.c.b16 %v3551, %v3549
    %v3572 = vpack.c.b16 %v3552, %v3550
    %v3573 = vpack.c.b16 %v3555, %v3553
    %v3574 = vpack.c.b16 %v3556, %v3554
    %v3575 = vpack.c.b16 %v3559, %v3557
    %v3576 = vpack.c.b16 %v3560, %v3558
    %v3577 = vpack.c.b16 %v3563, %v3561
    %v3578 = vpack.c.b16 %v3564, %v3562
    %v3594 = vsel %vm2884, %v3522, 0
    %3596 = vmatprep.subr.bf16.mxu0 %v3566
    %3597 = vmatpush1.bf16.msra.mxu0 %v3565
    %3598 = vmatprep.subr.bf16.mxu0 %v3568
    %3599 = vmatpush1.bf16.msra.mxu0 %v3567
    %3600 = vmatprep.subr.bf16.mxu0 %v3570
    %3601 = vmatpush1.bf16.msra.mxu0 %v3569
    %3602 = vmatprep.subr.bf16.mxu0 %v3572
    %3603 = vmatpush1.bf16.msra.mxu0 %v3571
    %3604 = vmatprep.subr.bf16.mxu0 %v3574
    %3605 = vmatpush1.bf16.msra.mxu0 %v3573
    %3606 = vmatprep.subr.bf16.mxu0 %v3576
    %3607 = vmatpush1.bf16.msra.mxu0 %v3575
    %3608 = vmatprep.subr.bf16.mxu0 %v3578
    %3609 = vmatpush1.bf16.msra.mxu0 %v3577
    %3610 = vmatprep.subr.bf16.mxu0 0
    %3611 = vmatpush1.bf16.msra.mxu0 0
    %3612 = vmatprep.subr.bf16.mxu0 0
    %3613 = vmatpush1.bf16.msra.mxu0 0
    %3614 = vmatprep.subr.bf16.mxu0 0
    %3615 = vmatpush1.bf16.msra.mxu0 0
    %3616 = vmatprep.subr.bf16.mxu0 0
    %3617 = vmatpush1.bf16.msra.mxu0 0
    %3618 = vmatprep.subr.bf16.mxu0 0
    %3619 = vmatpush1.bf16.msra.mxu0 0
    %3620 = vmatprep.subr.bf16.mxu0 0
    %3621 = vmatpush1.bf16.msra.mxu0 0
    %3622 = vmatprep.subr.bf16.mxu0 0
    %3623 = vmatpush1.bf16.msra.mxu0 0
    %3624 = vmatprep.subr.bf16.mxu0 0
    %3625 = vmatpush1.bf16.msra.mxu0 0
    %3626 = vmatprep.subr.bf16.mxu0 0
    %3627 = vmatpush1.bf16.msra.mxu0 0
    %3628 = vmatprep.mubr.bf16.mxu0 0
    %3629 = vmatmul.mubr.bf16.gmra.mrb[0].mxu0 %v3594
    %v3630 = vpop.f32.mrb[0].mxu0
    %v3631 = vadd.f32 0.0, %v3630
    %v3632 = vpop.f32.mrb[0].mxu0
    %v3633 = vadd.f32 0.0, %v3632
    %v3634 = vpop.f32.mrb[0].mxu0
    %v3635 = vadd.f32 0.0, %v3634
    %v3636 = vpop.f32.mrb[0].mxu0
    %v3637 = vadd.f32 0.0, %v3636
    %3638 = vdwg.mxu0
    %v3639 = vadd.f32 %v3451, %v3631
    %v3640 = vadd.f32 %v3452, %v3633
    %v3641 = vadd.f32 %v3453, %v3635
    %v3642 = vadd.f32 %v3454, %v3637
    %v3644 = vlaneseq
    %v3645 = vshrl.u32 %v3644, 7
    %v3646 = vsub.s32 0, %v3645
    %v3647 = vrot.slane %v43, %v3646
    %v3648 = vlaneseq
    %v3649 = vshrl.u32 %v3648, 7
    %v3650 = vsub.s32 1, %v3649
    %v3651 = vrot.slane %v43, %v3650
    %v3654 = vadd.f32 %v3639, %v3647
    %v3655 = vadd.f32 %v3640, %v3651
    %v3656 = vadd.f32 %v3641, %v3647
    %v3657 = vadd.f32 %v3642, %v3651
    %v3658 = vmax.f32 %v3654, 0.0
    %v3659 = vmax.f32 %v3655, 0.0
    %v3660 = vmax.f32 %v3656, 0.0
    %v3661 = vmax.f32 %v3657, 0.0
    %v3662 = vadd.f32 %v3658, 0.0
    %v3663 = vadd.f32 %v3659, 0.0
    %v3664 = vadd.f32 %v3660, 0.0
    %v3665 = vadd.f32 %v3661, 0.0
    %3666 = vmatprep.subr.bf16.mxu0 %v2857
    %3667 = vmatpush1.bf16.msra.mxu0 %v2856
    %3668 = vmatprep.subr.bf16.mxu0 %v2859
    %3669 = vmatpush1.bf16.msra.mxu0 %v2858
    %3670 = vmatprep.subr.bf16.mxu0 %v2861
    %3671 = vmatpush1.bf16.msra.mxu0 %v2860
    %3672 = vmatprep.subr.bf16.mxu0 %v2863
    %3673 = vmatpush1.bf16.msra.mxu0 %v2862
    %3674 = vmatprep.subr.bf16.mxu0 %v2865
    %3675 = vmatpush1.bf16.msra.mxu0 %v2864
    %3676 = vmatprep.subr.bf16.mxu0 %v2867
    %3677 = vmatpush1.bf16.msra.mxu0 %v2866
    %3678 = vmatprep.subr.bf16.mxu0 %v2869
    %3679 = vmatpush1.bf16.msra.mxu0 %v2868
    %3680 = vmatprep.subr.bf16.mxu0 0
    %3681 = vmatpush1.bf16.msra.mxu0 0
    %3682 = vmatprep.subr.bf16.mxu0 0
    %3683 = vmatpush1.bf16.msra.mxu0 0
    %3684 = vmatprep.subr.bf16.mxu0 0
    %3685 = vmatpush1.bf16.msra.mxu0 0
    %3686 = vmatprep.subr.bf16.mxu0 0
    %3687 = vmatpush1.bf16.msra.mxu0 0
    %3688 = vmatprep.subr.bf16.mxu0 0
    %3689 = vmatpush1.bf16.msra.mxu0 0
    %3690 = vmatprep.subr.bf16.mxu0 0
    %3691 = vmatpush1.bf16.msra.mxu0 0
    %3692 = vmatprep.subr.bf16.mxu0 0
    %3693 = vmatpush1.bf16.msra.mxu0 0
    %3694 = vmatprep.subr.bf16.mxu0 0
    %3695 = vmatpush1.bf16.msra.mxu0 0
    %3696 = vmatprep.subr.bf16.mxu0 0
    %3697 = vmatpush1.bf16.msra.mxu0 0
    %3698 = vmatprep.mubr.bf16.mxu0 0
    %3699 = vmatmul.mubr.bf16.gmra.mrb[0].mxu0 %v3202
    %v3700 = vpop.f32.mrb[0].mxu0
    %v3701 = vadd.f32 0.0, %v3700
    %v3702 = vpop.f32.mrb[0].mxu0
    %v3703 = vadd.f32 0.0, %v3702
    %v3704 = vpop.f32.mrb[0].mxu0
    %v3705 = vadd.f32 0.0, %v3704
    %v3706 = vpop.f32.mrb[0].mxu0
    %v3707 = vadd.f32 0.0, %v3706
    %3708 = vdwg.mxu0
    %3709 = vmatprep.subr.bf16.mxu0 %v2974
    %3710 = vmatpush1.bf16.msra.mxu0 %v2973
    %3711 = vmatprep.subr.bf16.mxu0 %v2976
    %3712 = vmatpush1.bf16.msra.mxu0 %v2975
    %3713 = vmatprep.subr.bf16.mxu0 %v2978
    %3714 = vmatpush1.bf16.msra.mxu0 %v2977
    %3715 = vmatprep.subr.bf16.mxu0 %v2980
    %3716 = vmatpush1.bf16.msra.mxu0 %v2979
    %3717 = vmatprep.subr.bf16.mxu0 %v2982
    %3718 = vmatpush1.bf16.msra.mxu0 %v2981
    %3719 = vmatprep.subr.bf16.mxu0 %v2984
    %3720 = vmatpush1.bf16.msra.mxu0 %v2983
    %3721 = vmatprep.subr.bf16.mxu0 %v2986
    %3722 = vmatpush1.bf16.msra.mxu0 %v2985
    %3723 = vmatprep.subr.bf16.mxu0 0
    %3724 = vmatpush1.bf16.msra.mxu0 0
    %3725 = vmatprep.subr.bf16.mxu0 0
    %3726 = vmatpush1.bf16.msra.mxu0 0
    %3727 = vmatprep.subr.bf16.mxu0 0
    %3728 = vmatpush1.bf16.msra.mxu0 0
    %3729 = vmatprep.subr.bf16.mxu0 0
    %3730 = vmatpush1.bf16.msra.mxu0 0
    %3731 = vmatprep.subr.bf16.mxu0 0
    %3732 = vmatpush1.bf16.msra.mxu0 0
    %3733 = vmatprep.subr.bf16.mxu0 0
    %3734 = vmatpush1.bf16.msra.mxu0 0
    %3735 = vmatprep.subr.bf16.mxu0 0
    %3736 = vmatpush1.bf16.msra.mxu0 0
    %3737 = vmatprep.subr.bf16.mxu0 0
    %3738 = vmatpush1.bf16.msra.mxu0 0
    %3739 = vmatprep.subr.bf16.mxu0 0
    %3740 = vmatpush1.bf16.msra.mxu0 0
    %3741 = vmatprep.mubr.bf16.mxu0 0
    %3742 = vmatmul.mubr.bf16.gmra.mrb[0].mxu0 %v2886
    %v3743 = vpop.f32.mrb[0].mxu0
    %v3744 = vadd.f32 %v3701, %v3743
    %v3745 = vpop.f32.mrb[0].mxu0
    %v3746 = vadd.f32 %v3703, %v3745
    %v3747 = vpop.f32.mrb[0].mxu0
    %v3748 = vadd.f32 %v3705, %v3747
    %v3749 = vpop.f32.mrb[0].mxu0
    %v3750 = vadd.f32 %v3707, %v3749
    %3751 = vdwg.mxu0
    %3752 = vmatprep.subr.bf16.mxu0 %v3174
    %3753 = vmatpush1.bf16.msra.mxu0 %v3173
    %3754 = vmatprep.subr.bf16.mxu0 %v3176
    %3755 = vmatpush1.bf16.msra.mxu0 %v3175
    %3756 = vmatprep.subr.bf16.mxu0 %v3178
    %3757 = vmatpush1.bf16.msra.mxu0 %v3177
    %3758 = vmatprep.subr.bf16.mxu0 %v3180
    %3759 = vmatpush1.bf16.msra.mxu0 %v3179
    %3760 = vmatprep.subr.bf16.mxu0 %v3182
    %3761 = vmatpush1.bf16.msra.mxu0 %v3181
    %3762 = vmatprep.subr.bf16.mxu0 %v3184
    %3763 = vmatpush1.bf16.msra.mxu0 %v3183
    %3764 = vmatprep.subr.bf16.mxu0 %v3186
    %3765 = vmatpush1.bf16.msra.mxu0 %v3185
    %3766 = vmatprep.subr.bf16.mxu0 0
    %3767 = vmatpush1.bf16.msra.mxu0 0
    %3768 = vmatprep.subr.bf16.mxu0 0
    %3769 = vmatpush1.bf16.msra.mxu0 0
    %3770 = vmatprep.subr.bf16.mxu0 0
    %3771 = vmatpush1.bf16.msra.mxu0 0
    %3772 = vmatprep.subr.bf16.mxu0 0
    %3773 = vmatpush1.bf16.msra.mxu0 0
    %3774 = vmatprep.subr.bf16.mxu0 0
    %3775 = vmatpush1.bf16.msra.mxu0 0
    %3776 = vmatprep.subr.bf16.mxu0 0
    %3777 = vmatpush1.bf16.msra.mxu0 0
    %3778 = vmatprep.subr.bf16.mxu0 0
    %3779 = vmatpush1.bf16.msra.mxu0 0
    %3780 = vmatprep.subr.bf16.mxu0 0
    %3781 = vmatpush1.bf16.msra.mxu0 0
    %3782 = vmatprep.subr.bf16.mxu0 0
    %3783 = vmatpush1.bf16.msra.mxu0 0
    %3784 = vmatprep.mubr.bf16.mxu0 0
    %3785 = vmatmul.mubr.bf16.gmra.mrb[0].mxu0 %v3406
    %v3786 = vpop.f32.mrb[0].mxu0
    %v3787 = vadd.f32 0.0, %v3786
    %v3788 = vpop.f32.mrb[0].mxu0
    %v3789 = vadd.f32 0.0, %v3788
    %v3790 = vpop.f32.mrb[0].mxu0
    %v3791 = vadd.f32 0.0, %v3790
    %v3792 = vpop.f32.mrb[0].mxu0
    %v3793 = vadd.f32 0.0, %v3792
    %3794 = vdwg.mxu0
    %v3795 = vadd.f32 %v3744, %v3787
    %v3796 = vadd.f32 %v3746, %v3789
    %v3797 = vadd.f32 %v3748, %v3791
    %v3798 = vadd.f32 %v3750, %v3793
    %3799 = vmatprep.subr.bf16.mxu0 %v3378
    %3800 = vmatpush1.bf16.msra.mxu0 %v3377
    %3801 = vmatprep.subr.bf16.mxu0 %v3380
    %3802 = vmatpush1.bf16.msra.mxu0 %v3379
    %3803 = vmatprep.subr.bf16.mxu0 %v3382
    %3804 = vmatpush1.bf16.msra.mxu0 %v3381
    %3805 = vmatprep.subr.bf16.mxu0 %v3384
    %3806 = vmatpush1.bf16.msra.mxu0 %v3383
    %3807 = vmatprep.subr.bf16.mxu0 %v3386
    %3808 = vmatpush1.bf16.msra.mxu0 %v3385
    %3809 = vmatprep.subr.bf16.mxu0 %v3388
    %3810 = vmatpush1.bf16.msra.mxu0 %v3387
    %3811 = vmatprep.subr.bf16.mxu0 %v3390
    %3812 = vmatpush1.bf16.msra.mxu0 %v3389
    %3813 = vmatprep.subr.bf16.mxu0 0
    %3814 = vmatpush1.bf16.msra.mxu0 0
    %3815 = vmatprep.subr.bf16.mxu0 0
    %3816 = vmatpush1.bf16.msra.mxu0 0
    %3817 = vmatprep.subr.bf16.mxu0 0
    %3818 = vmatpush1.bf16.msra.mxu0 0
    %3819 = vmatprep.subr.bf16.mxu0 0
    %3820 = vmatpush1.bf16.msra.mxu0 0
    %3821 = vmatprep.subr.bf16.mxu0 0
    %3822 = vmatpush1.bf16.msra.mxu0 0
    %3823 = vmatprep.subr.bf16.mxu0 0
    %3824 = vmatpush1.bf16.msra.mxu0 0
    %3825 = vmatprep.subr.bf16.mxu0 0
    %3826 = vmatpush1.bf16.msra.mxu0 0
    %3827 = vmatprep.subr.bf16.mxu0 0
    %3828 = vmatpush1.bf16.msra.mxu0 0
    %3829 = vmatprep.subr.bf16.mxu0 0
    %3830 = vmatpush1.bf16.msra.mxu0 0
    %3831 = vmatprep.mubr.bf16.mxu0 0
    %3832 = vmatmul.mubr.bf16.gmra.mrb[0].mxu0 %v3594
    %v3833 = vpop.f32.mrb[0].mxu0
    %v3834 = vadd.f32 0.0, %v3833
    %v3835 = vpop.f32.mrb[0].mxu0
    %v3836 = vadd.f32 0.0, %v3835
    %v3837 = vpop.f32.mrb[0].mxu0
    %v3838 = vadd.f32 0.0, %v3837
    %v3839 = vpop.f32.mrb[0].mxu0
    %v3840 = vadd.f32 0.0, %v3839
    %3841 = vdwg.mxu0
    %v3842 = vadd.f32 %v3795, %v3834
    %v3843 = vadd.f32 %v3796, %v3836
    %v3844 = vadd.f32 %v3797, %v3838
    %v3845 = vadd.f32 %v3798, %v3840
    %v3848 = vcombine.low %v2621, %v2622
    %v3849 = vcombine.low %v2623, %v2626
    %v3851 = vunpack.c.l.s4 1966171168
    %v3852 = vunpack.c.0.s8 %v3851
    %v3853 = vlaneseq
    %v3854 = vshrl.u32 %v3853, 7
    %v3855 = vsub.s32 %v3852, %v3854
    %v3856 = vrot.slane %v3848, %v3855
    %v3858 = vunpack.c.l.s4 1966171168
    %v3859 = vunpack.c.0.s8 %v3858
    %v3860 = vlaneseq
    %v3861 = vshrl.u32 %v3860, 7
    %v3862 = vsub.s32 %v3859, %v3861
    %v3863 = vrot.slane %v3849, %v3862
    %v3864 = vcombine.low %v2764, %v3856
    %v3865 = vcombine.low %v3863, %v2803
    %v3867 = vunpack.c.l.s4 1966171168
    %v3868 = vunpack.c.0.s8 %v3867
    %v3869 = vlaneseq
    %v3870 = vshrl.u32 %v3869, 7
    %v3871 = vsub.s32 %v3868, %v3870
    %v3872 = vrot.slane %v3864, %v3871
    %v3874 = vunpack.c.l.s4 1966171168
    %v3875 = vunpack.c.0.s8 %v3874
    %v3876 = vlaneseq
    %v3877 = vshrl.u32 %v3876, 7
    %v3878 = vsub.s32 %v3875, %v3877
    %v3879 = vrot.slane %v3865, %v3878
    %v3880 = vcombine.low %v3872, %v3879
    %v3881 = vcombine.low %v2629, %v2630
    %v3883 = vunpack.c.l.s4 1966171168
    %v3884 = vunpack.c.0.s8 %v3883
    %v3885 = vlaneseq
    %v3886 = vshrl.u32 %v3885, 7
    %v3887 = vsub.s32 %v3884, %v3886
    %v3888 = vrot.slane %v3881, %v3887
    %v3890 = vunpack.c.l.s4 1966171168
    %v3891 = vunpack.c.0.s8 %v3890
    %v3892 = vlaneseq
    %v3893 = vshrl.u32 %v3892, 7
    %v3894 = vsub.s32 %v3891, %v3893
    %v3895 = vrot.slane %v3888, %v3894
    %v3898 = vpack.c.bf16 %v3895, %v3880
    %v3900 = vsel %vm2884, %v3898, 0
    %3902 = vmatprep.subr.bf16.mxu0 %v3566
    %3903 = vmatpush1.bf16.msra.mxu0 %v3565
    %3904 = vmatprep.subr.bf16.mxu0 %v3568
    %3905 = vmatpush1.bf16.msra.mxu0 %v3567
    %3906 = vmatprep.subr.bf16.mxu0 %v3570
    %3907 = vmatpush1.bf16.msra.mxu0 %v3569
    %3908 = vmatprep.subr.bf16.mxu0 %v3572
    %3909 = vmatpush1.bf16.msra.mxu0 %v3571
    %3910 = vmatprep.subr.bf16.mxu0 %v3574
    %3911 = vmatpush1.bf16.msra.mxu0 %v3573
    %3912 = vmatprep.subr.bf16.mxu0 %v3576
    %3913 = vmatpush1.bf16.msra.mxu0 %v3575
    %3914 = vmatprep.subr.bf16.mxu0 %v3578
    %3915 = vmatpush1.bf16.msra.mxu0 %v3577
    %3916 = vmatprep.subr.bf16.mxu0 0
    %3917 = vmatpush1.bf16.msra.mxu0 0
    %3918 = vmatprep.subr.bf16.mxu0 0
    %3919 = vmatpush1.bf16.msra.mxu0 0
    %3920 = vmatprep.subr.bf16.mxu0 0
    %3921 = vmatpush1.bf16.msra.mxu0 0
    %3922 = vmatprep.subr.bf16.mxu0 0
    %3923 = vmatpush1.bf16.msra.mxu0 0
    %3924 = vmatprep.subr.bf16.mxu0 0
    %3925 = vmatpush1.bf16.msra.mxu0 0
    %3926 = vmatprep.subr.bf16.mxu0 0
    %3927 = vmatpush1.bf16.msra.mxu0 0
    %3928 = vmatprep.subr.bf16.mxu0 0
    %3929 = vmatpush1.bf16.msra.mxu0 0
    %3930 = vmatprep.subr.bf16.mxu0 0
    %3931 = vmatpush1.bf16.msra.mxu0 0
    %3932 = vmatprep.subr.bf16.mxu0 0
    %3933 = vmatpush1.bf16.msra.mxu0 0
    %3934 = vmatprep.mubr.bf16.mxu0 0
    %3935 = vmatmul.mubr.bf16.gmra.mrb[0].mxu0 %v3900
    %v3936 = vpop.f32.mrb[0].mxu0
    %v3937 = vadd.f32 0.0, %v3936
    %v3938 = vpop.f32.mrb[0].mxu0
    %v3939 = vadd.f32 0.0, %v3938
    %v3940 = vpop.f32.mrb[0].mxu0
    %v3941 = vadd.f32 0.0, %v3940
    %v3942 = vpop.f32.mrb[0].mxu0
    %v3943 = vadd.f32 0.0, %v3942
    %3944 = vdwg.mxu0
    %v3945 = vadd.f32 %v3842, %v3937
    %v3946 = vadd.f32 %v3843, %v3939
    %v3947 = vadd.f32 %v3844, %v3941
    %v3948 = vadd.f32 %v3845, %v3943
    %v3949 = vadd.f32 %v3945, %v3647
    %v3950 = vadd.f32 %v3946, %v3651
    %v3951 = vadd.f32 %v3947, %v3647
    %v3952 = vadd.f32 %v3948, %v3651
    %v3953 = vmax.f32 %v3949, 0.0
    %v3954 = vmax.f32 %v3950, 0.0
    %v3955 = vmax.f32 %v3951, 0.0
    %v3956 = vmax.f32 %v3952, 0.0
    %v3957 = vadd.f32 %v3662, %v3953
    %v3958 = vadd.f32 %v3663, %v3954
    %v3959 = vadd.f32 %v3664, %v3955
    %v3960 = vadd.f32 %v3665, %v3956
    %v3965 = vcombine.low %v3957, %v3958
    %v3966 = vcombine.high %v3957, %v3958
    %v3968 = vunpack.c.l.s4 1966171168
    %v3969 = vunpack.c.0.s8 %v3968
    %v3970 = vlaneseq
    %v3971 = vshrl.u32 %v3970, 7
    %v3972 = vsub.s32 %v3969, %v3971
    %v3973 = vrot.slane %v3965, %v3972
    %v3975 = vunpack.c.l.s4 1966171168
    %v3976 = vunpack.c.0.s8 %v3975
    %v3977 = vlaneseq
    %v3978 = vshrl.u32 %v3977, 7
    %v3979 = vsub.s32 %v3976, %v3978
    %v3980 = vrot.slane %v3966, %v3979
    %v3981 = vcombine.high %v3973, %v3973
    %v3982 = vcombine.high %v3980, %v3980
    %v3984 = vunpack.c.l.s4 1966171168
    %v3985 = vunpack.c.0.s8 %v3984
    %v3986 = vlaneseq
    %v3987 = vshrl.u32 %v3986, 7
    %v3988 = vsub.s32 %v3985, %v3987
    %v3989 = vrot.slane %v3973, %v3988
    %v3991 = vunpack.c.l.s4 1966171168
    %v3992 = vunpack.c.0.s8 %v3991
    %v3993 = vlaneseq
    %v3994 = vshrl.u32 %v3993, 7
    %v3995 = vsub.s32 %v3992, %v3994
    %v3996 = vrot.slane %v3980, %v3995
    %v3998 = vunpack.c.l.s4 1966171168
    %v3999 = vunpack.c.0.s8 %v3998
    %v4000 = vlaneseq
    %v4001 = vshrl.u32 %v4000, 7
    %v4002 = vsub.s32 %v3999, %v4001
    %v4003 = vrot.slane %v3981, %v4002
    %v4005 = vunpack.c.l.s4 1966171168
    %v4006 = vunpack.c.0.s8 %v4005
    %v4007 = vlaneseq
    %v4008 = vshrl.u32 %v4007, 7
    %v4009 = vsub.s32 %v4006, %v4008
    %v4010 = vrot.slane %v3982, %v4009
    %v4011 = vcombine.high %v3989, %v3989
    %v4012 = vcombine.high %v3996, %v3996
    %v4013 = vcombine.high %v4003, %v4003
    %v4014 = vcombine.high %v4010, %v4010
    %v4015 = vcombine.low %v3959, %v3960
    %v4017 = vunpack.c.l.s4 1966171168
    %v4018 = vunpack.c.0.s8 %v4017
    %v4019 = vlaneseq
    %v4020 = vshrl.u32 %v4019, 7
    %v4021 = vsub.s32 %v4018, %v4020
    %v4022 = vrot.slane %v4015, %v4021
    %v4023 = vcombine.high %v4022, %v4022
    %v4025 = vunpack.c.l.s4 1966171168
    %v4026 = vunpack.c.0.s8 %v4025
    %v4027 = vlaneseq
    %v4028 = vshrl.u32 %v4027, 7
    %v4029 = vsub.s32 %v4026, %v4028
    %v4030 = vrot.slane %v4022, %v4029
    %v4032 = vunpack.c.l.s4 1966171168
    %v4033 = vunpack.c.0.s8 %v4032
    %v4034 = vlaneseq
    %v4035 = vshrl.u32 %v4034, 7
    %v4036 = vsub.s32 %v4033, %v4035
    %v4037 = vrot.slane %v4023, %v4036
    %v4038 = vlaneseq
    %v4039 = vshrl.u32 %v4038, 7
    %v4040 = vsub.s32 0, %v4039
    %v4041 = vrot.slane %v3989, %v4040
    %v4042 = vlaneseq
    %v4043 = vshrl.u32 %v4042, 7
    %v4044 = vsub.s32 1, %v4043
    %v4045 = vrot.slane %v3989, %v4044
    %v4046 = vlaneseq
    %v4047 = vshrl.u32 %v4046, 7
    %v4048 = vsub.s32 0, %v4047
    %v4049 = vrot.slane %v4010, %v4048
    %v4050 = vlaneseq
    %v4051 = vshrl.u32 %v4050, 7
    %v4052 = vsub.s32 1, %v4051
    %v4053 = vrot.slane %v4010, %v4052
    %v4058 = vpack.c.bf16 %v4041, %v4041
    %v4059 = vpack.c.bf16 %v4045, %v4045
    %v4060 = vpack.c.bf16 %v4049, %v4049
    %v4061 = vpack.c.bf16 %v4053, %v4053
    %v4062 = vld [vmem:[%s5] sm:$0xf]
    %v4063 = vld [vmem:[%s5 + $0x4] sm:$0xf]
    %v4064 = vld [vmem:[%s5 + $0x8] sm:$0xf]
    %v4065 = vld [vmem:[%s5 + $0xc] sm:$0xf]
    %v4066 = vld [vmem:[%s5 + $0x10] sm:$0xf]
    %v4067 = vld [vmem:[%s5 + $0x14] sm:$0xf]
    %v4068 = vld [vmem:[%s5 + $0x18] sm:$0xf]
    %v4069 = vld [vmem:[%s5 + $0x1c] sm:$0xf]
    %v4070 = vld [vmem:[%s5 + $0x20] sm:$0xf]
    %v4071 = vld [vmem:[%s5 + $0x24] sm:$0xf]
    %v4072 = vld [vmem:[%s5 + $0x28] sm:$0xf]
    %v4073 = vld [vmem:[%s5 + $0x2c] sm:$0xf]
    %v4074 = vld [vmem:[%s5 + $0x30] sm:$0xf]
    %v4075 = vld [vmem:[%s5 + $0x34] sm:$0xf]
    %v4076 = vld [vmem:[%s5 + $0x38] sm:$0xf]
    %v4077 = vld [vmem:[%s5 + $0x3c] sm:$0xf]
    %v4078 = vld [vmem:[%s5 + $0x40] sm:$0xf]
    %v4079 = vld [vmem:[%s5 + $0x44] sm:$0xf]
    %v4080 = vld [vmem:[%s5 + $0x48] sm:$0xf]
    %v4081 = vld [vmem:[%s5 + $0x4c] sm:$0xf]
    %v4082 = vlaneseq
    %v4083 = vshrl.u32 %v4082, 7
    %v4084 = vsub.s32 0, %v4083
    %v4085 = vrot.slane %v4003, %v4084
    %v4086 = vlaneseq
    %v4087 = vshrl.u32 %v4086, 7
    %v4088 = vsub.s32 1, %v4087
    %v4089 = vrot.slane %v4003, %v4088
    %v4090 = vlaneseq
    %v4091 = vshrl.u32 %v4090, 7
    %v4092 = vsub.s32 0, %v4091
    %v4093 = vrot.slane %v4012, %v4092
    %v4094 = vlaneseq
    %v4095 = vshrl.u32 %v4094, 7
    %v4096 = vsub.s32 1, %v4095
    %v4097 = vrot.slane %v4012, %v4096
    %v4102 = vpack.c.bf16 %v4085, %v4085
    %v4103 = vpack.c.bf16 %v4089, %v4089
    %v4104 = vpack.c.bf16 %v4093, %v4093
    %v4105 = vpack.c.bf16 %v4097, %v4097
    %s4106 = scalar_lea.vmem %s5, 80
    %v4107 = vld [vmem:[%s4106] sm:$0xf]
    %v4108 = vld [vmem:[%s4106 + $0x4] sm:$0xf]
    %v4109 = vld [vmem:[%s4106 + $0x8] sm:$0xf]
    %v4110 = vld [vmem:[%s4106 + $0xc] sm:$0xf]
    %v4111 = vld [vmem:[%s4106 + $0x10] sm:$0xf]
    %v4112 = vld [vmem:[%s4106 + $0x14] sm:$0xf]
    %v4113 = vld [vmem:[%s4106 + $0x18] sm:$0xf]
    %v4114 = vld [vmem:[%s4106 + $0x1c] sm:$0xf]
    %v4115 = vld [vmem:[%s4106 + $0x20] sm:$0xf]
    %v4116 = vld [vmem:[%s4106 + $0x24] sm:$0xf]
    %v4117 = vld [vmem:[%s4106 + $0x28] sm:$0xf]
    %v4118 = vld [vmem:[%s4106 + $0x2c] sm:$0xf]
    %v4119 = vld [vmem:[%s4106 + $0x30] sm:$0xf]
    %v4120 = vld [vmem:[%s4106 + $0x34] sm:$0xf]
    %v4121 = vld [vmem:[%s4106 + $0x38] sm:$0xf]
    %v4122 = vld [vmem:[%s4106 + $0x3c] sm:$0xf]
    %v4123 = vld [vmem:[%s4106 + $0x40] sm:$0xf]
    %v4124 = vld [vmem:[%s4106 + $0x44] sm:$0xf]
    %v4125 = vld [vmem:[%s4106 + $0x48] sm:$0xf]
    %v4126 = vld [vmem:[%s4106 + $0x4c] sm:$0xf]
    %v4131 = vunpack.c.l.b16 %v4102
    %v4132 = vunpack.c.l.b16 %v4103
    %v4133 = vunpack.c.l.b16 %v4104
    %v4134 = vunpack.c.l.b16 %v4105
    %v4135 = vrot.slane %v4133, 7
    %vm4136 = vcmask 1041409
    %v4137 = vsel %vm4136, %v4135, %v4131
    %v4138 = vrot.slane %v4134, 7
    %v4139 = vsel %vm4136, %v4138, %v4132
    %v4140 = vpack.c.b16 %v4137, %v4137
    %v4141 = vpack.c.b16 %v4139, %v4139
    %v4163 = vunpack.c.l.b16 %v4107
    %v4164 = vunpack.c.l.b16 %v4108
    %v4165 = vunpack.c.l.b16 %v4109
    %v4166 = vunpack.c.l.b16 %v4110
    %v4167 = vunpack.c.l.b16 %v4111
    %v4168 = vunpack.c.l.b16 %v4112
    %v4169 = vunpack.c.l.b16 %v4113
    %v4170 = vunpack.c.l.b16 %v4114
    %v4171 = vunpack.c.l.b16 %v4115
    %v4172 = vunpack.c.l.b16 %v4116
    %v4173 = vunpack.c.l.b16 %v4117
    %v4174 = vunpack.c.l.b16 %v4118
    %v4175 = vunpack.c.l.b16 %v4119
    %v4176 = vunpack.c.l.b16 %v4120
    %v4177 = vunpack.c.l.b16 %v4121
    %v4178 = vunpack.c.l.b16 %v4122
    %v4179 = vunpack.c.l.b16 %v4123
    %v4180 = vunpack.c.l.b16 %v4124
    %v4181 = vunpack.c.l.b16 %v4125
    %v4182 = vunpack.c.l.b16 %v4126
    %v4183 = vpack.c.b16 %v4164, %v4163
    %v4184 = vpack.c.b16 %v4166, %v4165
    %v4185 = vpack.c.b16 %v4168, %v4167
    %v4186 = vpack.c.b16 %v4170, %v4169
    %v4187 = vpack.c.b16 %v4172, %v4171
    %v4188 = vpack.c.b16 %v4174, %v4173
    %v4189 = vpack.c.b16 %v4176, %v4175
    %v4190 = vpack.c.b16 %v4178, %v4177
    %v4191 = vpack.c.b16 %v4180, %v4179
    %v4192 = vpack.c.b16 %v4182, %v4181
    %v4204 = vsel %vm445, %v4141, 0
    %4206 = vmatprep.subr.bf16.mxu0 0
    %4207 = vmatpush1.bf16.msra.mxu0 %v4183
    %4208 = vmatprep.subr.bf16.mxu0 0
    %4209 = vmatpush1.bf16.msra.mxu0 %v4184
    %4210 = vmatprep.subr.bf16.mxu0 0
    %4211 = vmatpush1.bf16.msra.mxu0 %v4185
    %4212 = vmatprep.subr.bf16.mxu0 0
    %4213 = vmatpush1.bf16.msra.mxu0 %v4186
    %4214 = vmatprep.subr.bf16.mxu0 0
    %4215 = vmatpush1.bf16.msra.mxu0 %v4187
    %4216 = vmatprep.subr.bf16.mxu0 0
    %4217 = vmatpush1.bf16.msra.mxu0 %v4188
    %4218 = vmatprep.subr.bf16.mxu0 0
    %4219 = vmatpush1.bf16.msra.mxu0 %v4189
    %4220 = vmatprep.subr.bf16.mxu0 0
    %4221 = vmatpush1.bf16.msra.mxu0 %v4190
    %4222 = vmatprep.subr.bf16.mxu0 0
    %4223 = vmatpush1.bf16.msra.mxu0 %v4191
    %4224 = vmatprep.subr.bf16.mxu0 0
    %4225 = vmatpush1.bf16.msra.mxu0 %v4192
    %4226 = vmatprep.subr.bf16.mxu0 0
    %4227 = vmatpush1.bf16.msra.mxu0 0
    %4228 = vmatprep.subr.bf16.mxu0 0
    %4229 = vmatpush1.bf16.msra.mxu0 0
    %4230 = vmatprep.subr.bf16.mxu0 0
    %4231 = vmatpush1.bf16.msra.mxu0 0
    %4232 = vmatprep.subr.bf16.mxu0 0
    %4233 = vmatpush1.bf16.msra.mxu0 0
    %4234 = vmatprep.subr.bf16.mxu0 0
    %4235 = vmatpush1.bf16.msra.mxu0 0
    %4236 = vmatprep.subr.bf16.mxu0 0
    %4237 = vmatpush1.bf16.msra.mxu0 0
    %4238 = vmatprep.mubr.bf16.mxu0 %v4204
    %4239 = vmatmul.mubr.bf16.gmra.mrb[0].mxu0 %v4140
    %v4240 = vpop.f32.mrb[0].mxu0
    %v4241 = vadd.f32 0.0, %v4240
    %v4242 = vpop.f32.mrb[0].mxu0
    %v4243 = vpop.f32.mrb[0].mxu0
    %v4244 = vpop.f32.mrb[0].mxu0
    %4245 = vdwg.mxu0
    %v4250 = vunpack.c.l.b16 %v4058
    %v4251 = vunpack.c.l.b16 %v4059
    %v4252 = vunpack.c.l.b16 %v4060
    %v4253 = vunpack.c.l.b16 %v4061
    %v4254 = vrot.slane %v4252, 7
    %v4255 = vsel %vm4136, %v4254, %v4250
    %v4256 = vrot.slane %v4253, 7
    %v4257 = vsel %vm4136, %v4256, %v4251
    %v4258 = vpack.c.b16 %v4255, %v4255
    %v4259 = vpack.c.b16 %v4257, %v4257
    %v4281 = vunpack.c.l.b16 %v4062
    %v4282 = vunpack.c.l.b16 %v4063
    %v4283 = vunpack.c.l.b16 %v4064
    %v4284 = vunpack.c.l.b16 %v4065
    %v4285 = vunpack.c.l.b16 %v4066
    %v4286 = vunpack.c.l.b16 %v4067
    %v4287 = vunpack.c.l.b16 %v4068
    %v4288 = vunpack.c.l.b16 %v4069
    %v4289 = vunpack.c.l.b16 %v4070
    %v4290 = vunpack.c.l.b16 %v4071
    %v4291 = vunpack.c.l.b16 %v4072
    %v4292 = vunpack.c.l.b16 %v4073
    %v4293 = vunpack.c.l.b16 %v4074
    %v4294 = vunpack.c.l.b16 %v4075
    %v4295 = vunpack.c.l.b16 %v4076
    %v4296 = vunpack.c.l.b16 %v4077
    %v4297 = vunpack.c.l.b16 %v4078
    %v4298 = vunpack.c.l.b16 %v4079
    %v4299 = vunpack.c.l.b16 %v4080
    %v4300 = vunpack.c.l.b16 %v4081
    %v4301 = vpack.c.b16 %v4282, %v4281
    %v4302 = vpack.c.b16 %v4284, %v4283
    %v4303 = vpack.c.b16 %v4286, %v4285
    %v4304 = vpack.c.b16 %v4288, %v4287
    %v4305 = vpack.c.b16 %v4290, %v4289
    %v4306 = vpack.c.b16 %v4292, %v4291
    %v4307 = vpack.c.b16 %v4294, %v4293
    %v4308 = vpack.c.b16 %v4296, %v4295
    %v4309 = vpack.c.b16 %v4298, %v4297
    %v4310 = vpack.c.b16 %v4300, %v4299
    %v4322 = vsel %vm445, %v4259, 0
    %4324 = vmatprep.subr.bf16.mxu0 0
    %4325 = vmatpush1.bf16.msra.mxu0 %v4301
    %4326 = vmatprep.subr.bf16.mxu0 0
    %4327 = vmatpush1.bf16.msra.mxu0 %v4302
    %4328 = vmatprep.subr.bf16.mxu0 0
    %4329 = vmatpush1.bf16.msra.mxu0 %v4303
    %4330 = vmatprep.subr.bf16.mxu0 0
    %4331 = vmatpush1.bf16.msra.mxu0 %v4304
    %4332 = vmatprep.subr.bf16.mxu0 0
    %4333 = vmatpush1.bf16.msra.mxu0 %v4305
    %4334 = vmatprep.subr.bf16.mxu0 0
    %4335 = vmatpush1.bf16.msra.mxu0 %v4306
    %4336 = vmatprep.subr.bf16.mxu0 0
    %4337 = vmatpush1.bf16.msra.mxu0 %v4307
    %4338 = vmatprep.subr.bf16.mxu0 0
    %4339 = vmatpush1.bf16.msra.mxu0 %v4308
    %4340 = vmatprep.subr.bf16.mxu0 0
    %4341 = vmatpush1.bf16.msra.mxu0 %v4309
    %4342 = vmatprep.subr.bf16.mxu0 0
    %4343 = vmatpush1.bf16.msra.mxu0 %v4310
    %4344 = vmatprep.subr.bf16.mxu0 0
    %4345 = vmatpush1.bf16.msra.mxu0 0
    %4346 = vmatprep.subr.bf16.mxu0 0
    %4347 = vmatpush1.bf16.msra.mxu0 0
    %4348 = vmatprep.subr.bf16.mxu0 0
    %4349 = vmatpush1.bf16.msra.mxu0 0
    %4350 = vmatprep.subr.bf16.mxu0 0
    %4351 = vmatpush1.bf16.msra.mxu0 0
    %4352 = vmatprep.subr.bf16.mxu0 0
    %4353 = vmatpush1.bf16.msra.mxu0 0
    %4354 = vmatprep.subr.bf16.mxu0 0
    %4355 = vmatpush1.bf16.msra.mxu0 0
    %4356 = vmatprep.mubr.bf16.mxu0 %v4322
    %4357 = vmatmul.mubr.bf16.gmra.mrb[0].mxu0 %v4258
    %v4358 = vpop.f32.mrb[0].mxu0
    %v4359 = vadd.f32 %v4241, %v4358
    %v4360 = vpop.f32.mrb[0].mxu0
    %v4361 = vpop.f32.mrb[0].mxu0
    %v4362 = vpop.f32.mrb[0].mxu0
    %4363 = vdwg.mxu0
    %v4364 = vlaneseq
    %v4365 = vshrl.u32 %v4364, 7
    %v4366 = vsub.s32 0, %v4365
    %v4367 = vrot.slane %v4011, %v4366
    %v4368 = vlaneseq
    %v4369 = vshrl.u32 %v4368, 7
    %v4370 = vsub.s32 1, %v4369
    %v4371 = vrot.slane %v4011, %v4370
    %v4372 = vlaneseq
    %v4373 = vshrl.u32 %v4372, 7
    %v4374 = vsub.s32 0, %v4373
    %v4375 = vrot.slane %v4014, %v4374
    %v4376 = vlaneseq
    %v4377 = vshrl.u32 %v4376, 7
    %v4378 = vsub.s32 1, %v4377
    %v4379 = vrot.slane %v4014, %v4378
    %v4384 = vpack.c.bf16 %v4367, %v4367
    %v4385 = vpack.c.bf16 %v4371, %v4371
    %v4386 = vpack.c.bf16 %v4375, %v4375
    %v4387 = vpack.c.bf16 %v4379, %v4379
    %s4388 = scalar_lea.vmem %s5, 160
    %v4389 = vld [vmem:[%s4388] sm:$0xf]
    %v4390 = vld [vmem:[%s4388 + $0x4] sm:$0xf]
    %v4391 = vld [vmem:[%s4388 + $0x8] sm:$0xf]
    %v4392 = vld [vmem:[%s4388 + $0xc] sm:$0xf]
    %v4393 = vld [vmem:[%s4388 + $0x10] sm:$0xf]
    %v4394 = vld [vmem:[%s4388 + $0x14] sm:$0xf]
    %v4395 = vld [vmem:[%s4388 + $0x18] sm:$0xf]
    %v4396 = vld [vmem:[%s4388 + $0x1c] sm:$0xf]
    %v4397 = vld [vmem:[%s4388 + $0x20] sm:$0xf]
    %v4398 = vld [vmem:[%s4388 + $0x24] sm:$0xf]
    %v4399 = vld [vmem:[%s4388 + $0x28] sm:$0xf]
    %v4400 = vld [vmem:[%s4388 + $0x2c] sm:$0xf]
    %v4401 = vld [vmem:[%s4388 + $0x30] sm:$0xf]
    %v4402 = vld [vmem:[%s4388 + $0x34] sm:$0xf]
    %v4403 = vld [vmem:[%s4388 + $0x38] sm:$0xf]
    %v4404 = vld [vmem:[%s4388 + $0x3c] sm:$0xf]
    %v4405 = vld [vmem:[%s4388 + $0x40] sm:$0xf]
    %v4406 = vld [vmem:[%s4388 + $0x44] sm:$0xf]
    %v4407 = vld [vmem:[%s4388 + $0x48] sm:$0xf]
    %v4408 = vld [vmem:[%s4388 + $0x4c] sm:$0xf]
    %v4413 = vunpack.c.l.b16 %v4384
    %v4414 = vunpack.c.l.b16 %v4385
    %v4415 = vunpack.c.l.b16 %v4386
    %v4416 = vunpack.c.l.b16 %v4387
    %v4417 = vrot.slane %v4415, 7
    %v4418 = vsel %vm4136, %v4417, %v4413
    %v4419 = vrot.slane %v4416, 7
    %v4420 = vsel %vm4136, %v4419, %v4414
    %v4421 = vpack.c.b16 %v4418, %v4418
    %v4422 = vpack.c.b16 %v4420, %v4420
    %v4444 = vunpack.c.l.b16 %v4389
    %v4445 = vunpack.c.l.b16 %v4390
    %v4446 = vunpack.c.l.b16 %v4391
    %v4447 = vunpack.c.l.b16 %v4392
    %v4448 = vunpack.c.l.b16 %v4393
    %v4449 = vunpack.c.l.b16 %v4394
    %v4450 = vunpack.c.l.b16 %v4395
    %v4451 = vunpack.c.l.b16 %v4396
    %v4452 = vunpack.c.l.b16 %v4397
    %v4453 = vunpack.c.l.b16 %v4398
    %v4454 = vunpack.c.l.b16 %v4399
    %v4455 = vunpack.c.l.b16 %v4400
    %v4456 = vunpack.c.l.b16 %v4401
    %v4457 = vunpack.c.l.b16 %v4402
    %v4458 = vunpack.c.l.b16 %v4403
    %v4459 = vunpack.c.l.b16 %v4404
    %v4460 = vunpack.c.l.b16 %v4405
    %v4461 = vunpack.c.l.b16 %v4406
    %v4462 = vunpack.c.l.b16 %v4407
    %v4463 = vunpack.c.l.b16 %v4408
    %v4464 = vpack.c.b16 %v4445, %v4444
    %v4465 = vpack.c.b16 %v4447, %v4446
    %v4466 = vpack.c.b16 %v4449, %v4448
    %v4467 = vpack.c.b16 %v4451, %v4450
    %v4468 = vpack.c.b16 %v4453, %v4452
    %v4469 = vpack.c.b16 %v4455, %v4454
    %v4470 = vpack.c.b16 %v4457, %v4456
    %v4471 = vpack.c.b16 %v4459, %v4458
    %v4472 = vpack.c.b16 %v4461, %v4460
    %v4473 = vpack.c.b16 %v4463, %v4462
    %v4485 = vsel %vm445, %v4422, 0
    %4487 = vmatprep.subr.bf16.mxu0 0
    %4488 = vmatpush1.bf16.msra.mxu0 %v4464
    %4489 = vmatprep.subr.bf16.mxu0 0
    %4490 = vmatpush1.bf16.msra.mxu0 %v4465
    %4491 = vmatprep.subr.bf16.mxu0 0
    %4492 = vmatpush1.bf16.msra.mxu0 %v4466
    %4493 = vmatprep.subr.bf16.mxu0 0
    %4494 = vmatpush1.bf16.msra.mxu0 %v4467
    %4495 = vmatprep.subr.bf16.mxu0 0
    %4496 = vmatpush1.bf16.msra.mxu0 %v4468
    %4497 = vmatprep.subr.bf16.mxu0 0
    %4498 = vmatpush1.bf16.msra.mxu0 %v4469
    %4499 = vmatprep.subr.bf16.mxu0 0
    %4500 = vmatpush1.bf16.msra.mxu0 %v4470
    %4501 = vmatprep.subr.bf16.mxu0 0
    %4502 = vmatpush1.bf16.msra.mxu0 %v4471
    %4503 = vmatprep.subr.bf16.mxu0 0
    %4504 = vmatpush1.bf16.msra.mxu0 %v4472
    %4505 = vmatprep.subr.bf16.mxu0 0
    %4506 = vmatpush1.bf16.msra.mxu0 %v4473
    %4507 = vmatprep.subr.bf16.mxu0 0
    %4508 = vmatpush1.bf16.msra.mxu0 0
    %4509 = vmatprep.subr.bf16.mxu0 0
    %4510 = vmatpush1.bf16.msra.mxu0 0
    %4511 = vmatprep.subr.bf16.mxu0 0
    %4512 = vmatpush1.bf16.msra.mxu0 0
    %4513 = vmatprep.subr.bf16.mxu0 0
    %4514 = vmatpush1.bf16.msra.mxu0 0
    %4515 = vmatprep.subr.bf16.mxu0 0
    %4516 = vmatpush1.bf16.msra.mxu0 0
    %4517 = vmatprep.subr.bf16.mxu0 0
    %4518 = vmatpush1.bf16.msra.mxu0 0
    %4519 = vmatprep.mubr.bf16.mxu0 %v4485
    %4520 = vmatmul.mubr.bf16.gmra.mrb[0].mxu0 %v4421
    %v4521 = vpop.f32.mrb[0].mxu0
    %v4522 = vadd.f32 0.0, %v4521
    %v4523 = vpop.f32.mrb[0].mxu0
    %v4524 = vpop.f32.mrb[0].mxu0
    %v4525 = vpop.f32.mrb[0].mxu0
    %4526 = vdwg.mxu0
    %v4527 = vadd.f32 %v4359, %v4522
    %v4528 = vlaneseq
    %v4529 = vshrl.u32 %v4528, 7
    %v4530 = vsub.s32 0, %v4529
    %v4531 = vrot.slane %v4013, %v4530
    %v4532 = vlaneseq
    %v4533 = vshrl.u32 %v4532, 7
    %v4534 = vsub.s32 1, %v4533
    %v4535 = vrot.slane %v4013, %v4534
    %v4536 = vlaneseq
    %v4537 = vshrl.u32 %v4536, 7
    %v4538 = vsub.s32 0, %v4537
    %v4539 = vrot.slane %v4030, %v4538
    %v4540 = vlaneseq
    %v4541 = vshrl.u32 %v4540, 7
    %v4542 = vsub.s32 1, %v4541
    %v4543 = vrot.slane %v4030, %v4542
    %v4548 = vpack.c.bf16 %v4531, %v4531
    %v4549 = vpack.c.bf16 %v4535, %v4535
    %v4550 = vpack.c.bf16 %v4539, %v4539
    %v4551 = vpack.c.bf16 %v4543, %v4543
    %s4552 = scalar_lea.vmem %s5, 240
    %v4553 = vld [vmem:[%s4552] sm:$0xf]
    %v4554 = vld [vmem:[%s4552 + $0x4] sm:$0xf]
    %v4555 = vld [vmem:[%s4552 + $0x8] sm:$0xf]
    %v4556 = vld [vmem:[%s4552 + $0xc] sm:$0xf]
    %v4557 = vld [vmem:[%s4552 + $0x10] sm:$0xf]
    %v4558 = vld [vmem:[%s4552 + $0x14] sm:$0xf]
    %v4559 = vld [vmem:[%s4552 + $0x18] sm:$0xf]
    %v4560 = vld [vmem:[%s4552 + $0x1c] sm:$0xf]
    %v4561 = vld [vmem:[%s4552 + $0x20] sm:$0xf]
    %v4562 = vld [vmem:[%s4552 + $0x24] sm:$0xf]
    %v4563 = vld [vmem:[%s4552 + $0x28] sm:$0xf]
    %v4564 = vld [vmem:[%s4552 + $0x2c] sm:$0xf]
    %v4565 = vld [vmem:[%s4552 + $0x30] sm:$0xf]
    %v4566 = vld [vmem:[%s4552 + $0x34] sm:$0xf]
    %v4567 = vld [vmem:[%s4552 + $0x38] sm:$0xf]
    %v4568 = vld [vmem:[%s4552 + $0x3c] sm:$0xf]
    %v4569 = vld [vmem:[%s4552 + $0x40] sm:$0xf]
    %v4570 = vld [vmem:[%s4552 + $0x44] sm:$0xf]
    %v4571 = vld [vmem:[%s4552 + $0x48] sm:$0xf]
    %v4572 = vld [vmem:[%s4552 + $0x4c] sm:$0xf]
    %v4577 = vunpack.c.l.b16 %v4548
    %v4578 = vunpack.c.l.b16 %v4549
    %v4579 = vunpack.c.l.b16 %v4550
    %v4580 = vunpack.c.l.b16 %v4551
    %v4581 = vrot.slane %v4579, 7
    %v4582 = vsel %vm4136, %v4581, %v4577
    %v4583 = vrot.slane %v4580, 7
    %v4584 = vsel %vm4136, %v4583, %v4578
    %v4585 = vpack.c.b16 %v4582, %v4582
    %v4586 = vpack.c.b16 %v4584, %v4584
    %v4608 = vunpack.c.l.b16 %v4553
    %v4609 = vunpack.c.l.b16 %v4554
    %v4610 = vunpack.c.l.b16 %v4555
    %v4611 = vunpack.c.l.b16 %v4556
    %v4612 = vunpack.c.l.b16 %v4557
    %v4613 = vunpack.c.l.b16 %v4558
    %v4614 = vunpack.c.l.b16 %v4559
    %v4615 = vunpack.c.l.b16 %v4560
    %v4616 = vunpack.c.l.b16 %v4561
    %v4617 = vunpack.c.l.b16 %v4562
    %v4618 = vunpack.c.l.b16 %v4563
    %v4619 = vunpack.c.l.b16 %v4564
    %v4620 = vunpack.c.l.b16 %v4565
    %v4621 = vunpack.c.l.b16 %v4566
    %v4622 = vunpack.c.l.b16 %v4567
    %v4623 = vunpack.c.l.b16 %v4568
    %v4624 = vunpack.c.l.b16 %v4569
    %v4625 = vunpack.c.l.b16 %v4570
    %v4626 = vunpack.c.l.b16 %v4571
    %v4627 = vunpack.c.l.b16 %v4572
    %v4628 = vpack.c.b16 %v4609, %v4608
    %v4629 = vpack.c.b16 %v4611, %v4610
    %v4630 = vpack.c.b16 %v4613, %v4612
    %v4631 = vpack.c.b16 %v4615, %v4614
    %v4632 = vpack.c.b16 %v4617, %v4616
    %v4633 = vpack.c.b16 %v4619, %v4618
    %v4634 = vpack.c.b16 %v4621, %v4620
    %v4635 = vpack.c.b16 %v4623, %v4622
    %v4636 = vpack.c.b16 %v4625, %v4624
    %v4637 = vpack.c.b16 %v4627, %v4626
    %v4649 = vsel %vm445, %v4586, 0
    %4651 = vmatprep.subr.bf16.mxu0 0
    %4652 = vmatpush1.bf16.msra.mxu0 %v4628
    %4653 = vmatprep.subr.bf16.mxu0 0
    %4654 = vmatpush1.bf16.msra.mxu0 %v4629
    %4655 = vmatprep.subr.bf16.mxu0 0
    %4656 = vmatpush1.bf16.msra.mxu0 %v4630
    %4657 = vmatprep.subr.bf16.mxu0 0
    %4658 = vmatpush1.bf16.msra.mxu0 %v4631
    %4659 = vmatprep.subr.bf16.mxu0 0
    %4660 = vmatpush1.bf16.msra.mxu0 %v4632
    %4661 = vmatprep.subr.bf16.mxu0 0
    %4662 = vmatpush1.bf16.msra.mxu0 %v4633
    %4663 = vmatprep.subr.bf16.mxu0 0
    %4664 = vmatpush1.bf16.msra.mxu0 %v4634
    %4665 = vmatprep.subr.bf16.mxu0 0
    %4666 = vmatpush1.bf16.msra.mxu0 %v4635
    %4667 = vmatprep.subr.bf16.mxu0 0
    %4668 = vmatpush1.bf16.msra.mxu0 %v4636
    %4669 = vmatprep.subr.bf16.mxu0 0
    %4670 = vmatpush1.bf16.msra.mxu0 %v4637
    %4671 = vmatprep.subr.bf16.mxu0 0
    %4672 = vmatpush1.bf16.msra.mxu0 0
    %4673 = vmatprep.subr.bf16.mxu0 0
    %4674 = vmatpush1.bf16.msra.mxu0 0
    %4675 = vmatprep.subr.bf16.mxu0 0
    %4676 = vmatpush1.bf16.msra.mxu0 0
    %4677 = vmatprep.subr.bf16.mxu0 0
    %4678 = vmatpush1.bf16.msra.mxu0 0
    %4679 = vmatprep.subr.bf16.mxu0 0
    %4680 = vmatpush1.bf16.msra.mxu0 0
    %4681 = vmatprep.subr.bf16.mxu0 0
    %4682 = vmatpush1.bf16.msra.mxu0 0
    %4683 = vmatprep.mubr.bf16.mxu0 %v4649
    %4684 = vmatmul.mubr.bf16.gmra.mrb[0].mxu0 %v4585
    %v4685 = vpop.f32.mrb[0].mxu0
    %v4686 = vadd.f32 0.0, %v4685
    %v4687 = vpop.f32.mrb[0].mxu0
    %v4688 = vpop.f32.mrb[0].mxu0
    %v4689 = vpop.f32.mrb[0].mxu0
    %4690 = vdwg.mxu0
    %v4691 = vadd.f32 %v4527, %v4686
    %v4692 = vlaneseq
    %v4693 = vshrl.u32 %v4692, 7
    %v4694 = vsub.s32 0, %v4693
    %v4695 = vrot.slane %v3996, %v4694
    %v4696 = vlaneseq
    %v4697 = vshrl.u32 %v4696, 7
    %v4698 = vsub.s32 1, %v4697
    %v4699 = vrot.slane %v3996, %v4698
    %v4700 = vlaneseq
    %v4701 = vshrl.u32 %v4700, 7
    %v4702 = vsub.s32 0, %v4701
    %v4703 = vrot.slane %v4037, %v4702
    %v4704 = vlaneseq
    %v4705 = vshrl.u32 %v4704, 7
    %v4706 = vsub.s32 1, %v4705
    %v4707 = vrot.slane %v4037, %v4706
    %v4712 = vpack.c.bf16 %v4695, %v4695
    %v4713 = vpack.c.bf16 %v4699, %v4699
    %v4714 = vpack.c.bf16 %v4703, %v4703
    %v4715 = vpack.c.bf16 %v4707, %v4707
    %s4716 = scalar_lea.vmem %s5, 320
    %v4717 = vld [vmem:[%s4716] sm:$0xf]
    %v4718 = vld [vmem:[%s4716 + $0x4] sm:$0xf]
    %v4719 = vld [vmem:[%s4716 + $0x8] sm:$0xf]
    %v4720 = vld [vmem:[%s4716 + $0xc] sm:$0xf]
    %v4721 = vld [vmem:[%s4716 + $0x10] sm:$0xf]
    %v4722 = vld [vmem:[%s4716 + $0x14] sm:$0xf]
    %v4723 = vld [vmem:[%s4716 + $0x18] sm:$0xf]
    %v4724 = vld [vmem:[%s4716 + $0x1c] sm:$0xf]
    %v4725 = vld [vmem:[%s4716 + $0x20] sm:$0xf]
    %v4726 = vld [vmem:[%s4716 + $0x24] sm:$0xf]
    %v4727 = vld [vmem:[%s4716 + $0x28] sm:$0xf]
    %v4728 = vld [vmem:[%s4716 + $0x2c] sm:$0xf]
    %v4729 = vld [vmem:[%s4716 + $0x30] sm:$0xf]
    %v4730 = vld [vmem:[%s4716 + $0x34] sm:$0xf]
    %v4731 = vld [vmem:[%s4716 + $0x38] sm:$0xf]
    %v4732 = vld [vmem:[%s4716 + $0x3c] sm:$0xf]
    %v4733 = vld [vmem:[%s4716 + $0x40] sm:$0xf]
    %v4734 = vld [vmem:[%s4716 + $0x44] sm:$0xf]
    %v4735 = vld [vmem:[%s4716 + $0x48] sm:$0xf]
    %v4736 = vld [vmem:[%s4716 + $0x4c] sm:$0xf]
    %v4741 = vunpack.c.l.b16 %v4712
    %v4742 = vunpack.c.l.b16 %v4713
    %v4743 = vunpack.c.l.b16 %v4714
    %v4744 = vunpack.c.l.b16 %v4715
    %v4745 = vrot.slane %v4743, 7
    %v4746 = vsel %vm4136, %v4745, %v4741
    %v4747 = vrot.slane %v4744, 7
    %v4748 = vsel %vm4136, %v4747, %v4742
    %v4749 = vpack.c.b16 %v4746, %v4746
    %v4750 = vpack.c.b16 %v4748, %v4748
    %v4772 = vunpack.c.l.b16 %v4717
    %v4773 = vunpack.c.l.b16 %v4718
    %v4774 = vunpack.c.l.b16 %v4719
    %v4775 = vunpack.c.l.b16 %v4720
    %v4776 = vunpack.c.l.b16 %v4721
    %v4777 = vunpack.c.l.b16 %v4722
    %v4778 = vunpack.c.l.b16 %v4723
    %v4779 = vunpack.c.l.b16 %v4724
    %v4780 = vunpack.c.l.b16 %v4725
    %v4781 = vunpack.c.l.b16 %v4726
    %v4782 = vunpack.c.l.b16 %v4727
    %v4783 = vunpack.c.l.b16 %v4728
    %v4784 = vunpack.c.l.b16 %v4729
    %v4785 = vunpack.c.l.b16 %v4730
    %v4786 = vunpack.c.l.b16 %v4731
    %v4787 = vunpack.c.l.b16 %v4732
    %v4788 = vunpack.c.l.b16 %v4733
    %v4789 = vunpack.c.l.b16 %v4734
    %v4790 = vunpack.c.l.b16 %v4735
    %v4791 = vunpack.c.l.b16 %v4736
    %v4792 = vpack.c.b16 %v4773, %v4772
    %v4793 = vpack.c.b16 %v4775, %v4774
    %v4794 = vpack.c.b16 %v4777, %v4776
    %v4795 = vpack.c.b16 %v4779, %v4778
    %v4796 = vpack.c.b16 %v4781, %v4780
    %v4797 = vpack.c.b16 %v4783, %v4782
    %v4798 = vpack.c.b16 %v4785, %v4784
    %v4799 = vpack.c.b16 %v4787, %v4786
    %v4800 = vpack.c.b16 %v4789, %v4788
    %v4801 = vpack.c.b16 %v4791, %v4790
    %v4813 = vsel %vm445, %v4750, 0
    %4815 = vmatprep.subr.bf16.mxu0 0
    %4816 = vmatpush1.bf16.msra.mxu0 %v4792
    %4817 = vmatprep.subr.bf16.mxu0 0
    %4818 = vmatpush1.bf16.msra.mxu0 %v4793
    %4819 = vmatprep.subr.bf16.mxu0 0
    %4820 = vmatpush1.bf16.msra.mxu0 %v4794
    %4821 = vmatprep.subr.bf16.mxu0 0
    %4822 = vmatpush1.bf16.msra.mxu0 %v4795
    %4823 = vmatprep.subr.bf16.mxu0 0
    %4824 = vmatpush1.bf16.msra.mxu0 %v4796
    %4825 = vmatprep.subr.bf16.mxu0 0
    %4826 = vmatpush1.bf16.msra.mxu0 %v4797
    %4827 = vmatprep.subr.bf16.mxu0 0
    %4828 = vmatpush1.bf16.msra.mxu0 %v4798
    %4829 = vmatprep.subr.bf16.mxu0 0
    %4830 = vmatpush1.bf16.msra.mxu0 %v4799
    %4831 = vmatprep.subr.bf16.mxu0 0
    %4832 = vmatpush1.bf16.msra.mxu0 %v4800
    %4833 = vmatprep.subr.bf16.mxu0 0
    %4834 = vmatpush1.bf16.msra.mxu0 %v4801
    %4835 = vmatprep.subr.bf16.mxu0 0
    %4836 = vmatpush1.bf16.msra.mxu0 0
    %4837 = vmatprep.subr.bf16.mxu0 0
    %4838 = vmatpush1.bf16.msra.mxu0 0
    %4839 = vmatprep.subr.bf16.mxu0 0
    %4840 = vmatpush1.bf16.msra.mxu0 0
    %4841 = vmatprep.subr.bf16.mxu0 0
    %4842 = vmatpush1.bf16.msra.mxu0 0
    %4843 = vmatprep.subr.bf16.mxu0 0
    %4844 = vmatpush1.bf16.msra.mxu0 0
    %4845 = vmatprep.subr.bf16.mxu0 0
    %4846 = vmatpush1.bf16.msra.mxu0 0
    %4847 = vmatprep.mubr.bf16.mxu0 %v4813
    %4848 = vmatmul.mubr.bf16.gmra.mrb[0].mxu0 %v4749
    %v4849 = vpop.f32.mrb[0].mxu0
    %v4850 = vadd.f32 0.0, %v4849
    %v4851 = vpop.f32.mrb[0].mxu0
    %v4852 = vpop.f32.mrb[0].mxu0
    %v4853 = vpop.f32.mrb[0].mxu0
    %4854 = vdwg.mxu0
    %v4855 = vadd.f32 %v4691, %v4850
    %v4856 = vld [vmem:[%s6] sm:$0x1]
    %v4858 = vlaneseq
    %v4859 = vshrl.u32 %v4858, 7
    %v4860 = vsub.s32 0, %v4859
    %v4861 = vrot.slane %v4856, %v4860
    %v4863 = vadd.f32 %v4855, %v4861
    %v4864 = vmax.f32 %v4863, 0.0
    %v4865 = vpack.c.bf16 %v4864, %v4864
    %v4866 = vld [vmem:[%s7] sm:$0xf]
    %v4867 = vld [vmem:[%s7 + $0x4] sm:$0xf]
    %v4868 = vld [vmem:[%s7 + $0x8] sm:$0xf]
    %v4869 = vld [vmem:[%s7 + $0xc] sm:$0xf]
    %v4870 = vld [vmem:[%s7 + $0x10] sm:$0xf]
    %v4871 = vld [vmem:[%s7 + $0x14] sm:$0xf]
    %v4872 = vld [vmem:[%s7 + $0x18] sm:$0xf]
    %v4873 = vld [vmem:[%s7 + $0x1c] sm:$0xf]
    %v4874 = vld [vmem:[%s7 + $0x20] sm:$0xf]
    %v4875 = vld [vmem:[%s7 + $0x24] sm:$0xf]
    %v4876 = vld [vmem:[%s7 + $0x28] sm:$0xf]
    %v4877 = vld [vmem:[%s7 + $0x2c] sm:$0xf]
    %v4878 = vld [vmem:[%s7 + $0x30] sm:$0xf]
    %v4879 = vld [vmem:[%s7 + $0x34] sm:$0xf]
    %v4880 = vld [vmem:[%s7 + $0x38] sm:$0xf]
    %v4881 = vld [vmem:[%s8] sm:$0x1]
    %v4883 = vlaneseq
    %v4884 = vshrl.u32 %v4883, 7
    %v4885 = vsub.s32 0, %v4884
    %v4886 = vrot.slane %v4881, %v4885
    %v4903 = vunpack.c.l.b16 %v4866
    %v4904 = vunpack.c.l.b16 %v4867
    %v4905 = vunpack.c.l.b16 %v4868
    %v4906 = vunpack.c.l.b16 %v4869
    %v4907 = vunpack.c.l.b16 %v4870
    %v4908 = vunpack.c.l.b16 %v4871
    %v4909 = vunpack.c.l.b16 %v4872
    %v4910 = vunpack.c.l.b16 %v4873
    %v4911 = vunpack.c.l.b16 %v4874
    %v4912 = vunpack.c.l.b16 %v4875
    %v4913 = vunpack.c.l.b16 %v4876
    %v4914 = vunpack.c.l.b16 %v4877
    %v4915 = vunpack.c.l.b16 %v4878
    %v4916 = vunpack.c.l.b16 %v4879
    %v4917 = vunpack.c.l.b16 %v4880
    %v4918 = vpack.c.b16 %v4904, %v4903
    %v4919 = vpack.c.b16 %v4906, %v4905
    %v4920 = vpack.c.b16 %v4908, %v4907
    %v4921 = vpack.c.b16 %v4910, %v4909
    %v4922 = vpack.c.b16 %v4912, %v4911
    %v4923 = vpack.c.b16 %v4914, %v4913
    %v4924 = vpack.c.b16 %v4916, %v4915
    %v4925 = vpack.c.b16 %v4917, %v4917
    %vm4933 = vcmask 982016
    %v4935 = vsel %vm4933, %v4865, 0
    %vm4937 = vcmask 1043456
    %v4939 = vsel %vm4937, %v4925, 0
    %4941 = vmatprep.subr.bf16.mxu0 0
    %4942 = vmatpush1.bf16.msra.mxu0 %v4918
    %4943 = vmatprep.subr.bf16.mxu0 0
    %4944 = vmatpush1.bf16.msra.mxu0 %v4919
    %4945 = vmatprep.subr.bf16.mxu0 0
    %4946 = vmatpush1.bf16.msra.mxu0 %v4920
    %4947 = vmatprep.subr.bf16.mxu0 0
    %4948 = vmatpush1.bf16.msra.mxu0 %v4921
    %4949 = vmatprep.subr.bf16.mxu0 0
    %4950 = vmatpush1.bf16.msra.mxu0 %v4922
    %4951 = vmatprep.subr.bf16.mxu0 0
    %4952 = vmatpush1.bf16.msra.mxu0 %v4923
    %4953 = vmatprep.subr.bf16.mxu0 0
    %4954 = vmatpush1.bf16.msra.mxu0 %v4924
    %4955 = vmatprep.subr.bf16.mxu0 0
    %4956 = vmatpush1.bf16.msra.mxu0 %v4939
    %4957 = vmatprep.subr.bf16.mxu0 0
    %4958 = vmatpush1.bf16.msra.mxu0 0
    %4959 = vmatprep.subr.bf16.mxu0 0
    %4960 = vmatpush1.bf16.msra.mxu0 0
    %4961 = vmatprep.subr.bf16.mxu0 0
    %4962 = vmatpush1.bf16.msra.mxu0 0
    %4963 = vmatprep.subr.bf16.mxu0 0
    %4964 = vmatpush1.bf16.msra.mxu0 0
    %4965 = vmatprep.subr.bf16.mxu0 0
    %4966 = vmatpush1.bf16.msra.mxu0 0
    %4967 = vmatprep.subr.bf16.mxu0 0
    %4968 = vmatpush1.bf16.msra.mxu0 0
    %4969 = vmatprep.subr.bf16.mxu0 0
    %4970 = vmatpush1.bf16.msra.mxu0 0
    %4971 = vmatprep.subr.bf16.mxu0 0
    %4972 = vmatpush1.bf16.msra.mxu0 0
    %4973 = vmatprep.mubr.bf16.mxu0 0
    %4974 = vmatmul.mubr.bf16.gmra.mrb[0].mxu0 %v4935
    %v4975 = vpop.f32.mrb[0].mxu0
    %v4976 = vadd.f32 %v4886, %v4975
    %v4977 = vpop.f32.mrb[0].mxu0
    %v4978 = vpop.f32.mrb[0].mxu0
    %v4979 = vpop.f32.mrb[0].mxu0
    %4980 = vdwg.mxu0
    %vm4981 = vcmask 214016
    %4982 = vst.msk [vmem:[#allocation2] sm:$0x3] %vm4981, %v4976
    // Predicated region
    $region38: #{lenet4_forward.1} parent=1 // pred_check
      _
    $region39: #{lenet4_forward.1} parent=1 // pred_check_branch
      %4984 = sbr.rel (0) target = $region41
    $region40: #{lenet4_forward.1} parent=1 // pred_region
      %s4986 = ssub.s32 32, 32
      %4987 = vsyncadd [#allocation3], %s4986
      %s4989 = sshll.u32 [#allocation2], 4
      %s4990 = int_to_ptr.vmem [resolvable:$true] %s4989
      %4992 = dma.vmem_to_hbm [thread:$0]  %s4990, 32, %s9, [#allocation3]
    $region41: #{lenet4_forward.1} parent=1 // pred_fallthru
      _
    // Predicated region
    $region42: #{lenet4_forward.1} parent=1 // pred_check
      _
    $region43: #{lenet4_forward.1} parent=1 // pred_check_branch
      %4994 = sbr.rel (0) target = $region45
    $region44: #{lenet4_forward.1} parent=1 // pred_region
      %4995 = dma.done [#allocation3], 32
    $region45: #{lenet4_forward.1} parent=1 // pred_fallthru
      _
    %4996 = vsyncpa [#allocation3], 1

</llo_original>
